<compile_context>
chip_gen: v7x
topology: tpu7x:2x2x1
jax: 0.10.0
libtpu: 0.0.40
codegen_flags: <defaults>
</compile_context>

<pallas_src>
import jax
import jax.numpy as jnp
import numpy as np
from jax import lax
from jax.experimental import pallas as pl
from jax.experimental.pallas import tpu as pltpu

PAD = 0

# Small shapes consistent with the module (embedding_size == hidden_size).
T, B = 6, 2          # decoder steps, batch
V = 20               # vocab size
H = 32               # hidden size
E = H                # embedding size
G4 = 4 * H           # packed gate width i|f|g|o  (= 128 -> exactly one lane tile)
VPAD = 128           # vocab padded to a full lane tile -> lane-dense logits store

# Full f32 MXU precision in BOTH the kernel and the reference so the check can be tight.
HI = jax.lax.Precision.HIGHEST


def _decoder_kernel(tok_ref, h0_ref, c0_ref, emb_ref, w_ih_ref, w_hh_ref, b_ref, bcls_ref,
                    logits_ref, state_ref,
                    x_sc, gx_sc, hs_sc):
    # ---- phase 0: in-kernel embedding gather. Tokens are scalars in SMEM; the padded
    #      [VPAD, E] table sits once in VMEM. Eval-mode embedding dropout is the identity.
    for r in range(T * B):
        x_sc[pl.ds(r, 1), :] = emb_ref[pl.ds(tok_ref[r], 1), :]

    # ---- phase 1 (non-recurrent): input-to-gate projections for ALL timesteps as one
    #      lane-dense MXU matmul; gates packed i|f|g|o along 4H = 128 lanes, bias folded in.
    gx_sc[...] = (jnp.dot(x_sc[...], w_ih_ref[...],
                          precision=HI, preferred_element_type=jnp.float32)
                  + b_ref[...])

    # ---- phase 2 (recurrent): one packed [B,H]x[H,4H] MXU dot per step, two full-vreg
    #      EUP passes (sigmoid + tanh), gate extraction via static lane slices (XLU slot).
    #      Fully unrolled at trace time -> all slice indices are static.
    h = h0_ref[...]                                                     # [B, H]
    c = c0_ref[...]                                                     # [B, H]
    for t in range(T):
        r = t * B
        packed = gx_sc[pl.ds(r, B), :] + jnp.dot(
            h, w_hh_ref[...], precision=HI, preferred_element_type=jnp.float32)  # [B, 4H]
        sig = jax.nn.sigmoid(packed)        # i, f, o lane groups used
        th = jnp.tanh(packed)               # g lane group used
        i_g = sig[:, 0 * H:1 * H]
        f_g = sig[:, 1 * H:2 * H]
        g_g = th[:, 2 * H:3 * H]
        o_g = sig[:, 3 * H:4 * H]
        c = f_g * c + i_g * g_g
        h = o_g * jnp.tanh(c)
        hs_sc[pl.ds(r, B), :] = h                                       # static sublane slice

    # ---- final LSTM state, merged into a single output buffer (one writeback DMA).
    state_ref[0, :, :] = h
    state_ref[1, :, :] = c

    # ---- phase 3 (non-recurrent): tied-embedding classifier. The SAME VMEM table is the
    #      classifier weight (contract dim 1 of both operands = hs @ emb.T); one lane-dense
    #      [T*B, VPAD] store, padded lanes are exactly zero.
    logits_ref[...] = (lax.dot_general(hs_sc[...], emb_ref[...],
                                       (((1,), (1,)), ((), ())),
                                       precision=HI,
                                       preferred_element_type=jnp.float32)
                       + bcls_ref[...])


def prepare_params(params):
    """One-time parameter re-layout (hoisted OUT of the per-call jitted forward)."""
    emb_pad = jnp.zeros((VPAD, E), jnp.float32).at[:V, :].set(params['embedding'])
    return {
        'emb': emb_pad,                                     # [VPAD, E] gather + tied classifier
        'w_ih': jnp.asarray(params['w_ih'].T),              # [E, 4H]  gate blocks i|f|g|o
        'w_hh': jnp.asarray(params['w_hh'].T),              # [H, 4H]
        'b': (params['b_ih'] + params['b_hh'])[None, :],    # [1, 4H]
        'b_cls': jnp.zeros((1, VPAD), jnp.float32).at[0, :V].set(params['b_cls']),
    }


def decoder_forward(tokens, h0, c0, kp):
    """tokens: int32 [T, B] (batch_first=False); h0/c0: f32 [B, H].
    Returns (logits [T, B, VPAD] with lanes >= V exactly zero, state [2, B, H] = (h_T, c_T))."""
    tok_flat = tokens.reshape(T * B)                        # row r = t*B + b (free reshape)
    vmem = pl.BlockSpec(memory_space=pltpu.MemorySpace.VMEM)
    smem = pl.BlockSpec(memory_space=pltpu.MemorySpace.SMEM)
    logits_pad, state = pl.pallas_call(
        _decoder_kernel,
        out_shape=(jax.ShapeDtypeStruct((T * B, VPAD), jnp.float32),    # lane-padded logits
                   jax.ShapeDtypeStruct((2, B, H), jnp.float32)),       # stacked (h_T, c_T)
        in_specs=[smem, vmem, vmem, vmem, vmem, vmem, vmem, vmem],
        out_specs=(vmem, vmem),
        scratch_shapes=[pltpu.VMEM((T * B, E), jnp.float32),            # gathered embeddings
                        pltpu.VMEM((T * B, G4), jnp.float32),           # packed x-projections
                        pltpu.VMEM((T * B, H), jnp.float32)],           # all hidden states
    )(tok_flat, h0, c0, kp['emb'], kp['w_ih'], kp['w_hh'], kp['b'], kp['b_cls'])
    # Lane-padded logits are returned as-is; the [:, :V] slice is deferred to the consumer.
    return logits_pad.reshape(T, B, VPAD), state


def reference_forward(tokens, h0, c0, params):
    """Pure-JAX reference mirroring the PyTorch module."""
    emb = params['embedding'][tokens]                                   # [T, B, E]
    w_ih = params['w_ih'].T                                             # [E, 4H]
    w_hh = params['w_hh'].T                                             # [H, 4H]
    b = params['b_ih'] + params['b_hh']

    def step(carry, x_t):
        h, c = carry
        g = jnp.dot(x_t, w_ih, precision=HI) + jnp.dot(h, w_hh, precision=HI) + b
        i = jax.nn.sigmoid(g[:, 0 * H:1 * H])
        f = jax.nn.sigmoid(g[:, 1 * H:2 * H])
        gg = jnp.tanh(g[:, 2 * H:3 * H])
        o = jax.nn.sigmoid(g[:, 3 * H:4 * H])
        c = f * c + i * gg
        h = o * jnp.tanh(c)
        return (h, c), h

    (h_f, c_f), hs = lax.scan(step, (h0, c0), emb)                      # hs: [T, B, H]
    logits = jnp.dot(hs, params['embedding'].T, precision=HI) + params['b_cls']
    return logits, (h_f, c_f)


if __name__ == "__main__":
    root = jax.random.PRNGKey(0)
    ks = jax.random.split(root, 9)

    def u(k, shape, scale):
        return jax.random.uniform(k, shape, jnp.float32, -scale, scale)

    s = 1.0 / np.sqrt(H)
    params = {
        # nn.Embedding(V, H, padding_idx=PAD): row PAD is zero.
        'embedding': jax.random.normal(ks[0], (V, E), jnp.float32).at[PAD].set(0.0),
        # PyTorch LSTM parameter layout: weight_ih [4H, E], weight_hh [4H, H], biases [4H].
        'w_ih': u(ks[1], (4 * H, E), s),
        'w_hh': u(ks[2], (4 * H, H), s),
        'b_ih': u(ks[3], (4 * H,), s),
        'b_hh': u(ks[4], (4 * H,), s),
        # Classifier bias (classifier weight is tied to the embedding matrix).
        'b_cls': u(ks[5], (V,), s),
    }

    tokens = jax.random.randint(ks[6], (T, B), 0, V, dtype=jnp.int32)   # [T, B]
    h0 = 0.1 * jax.random.normal(ks[7], (B, H), jnp.float32)
    c0 = 0.1 * jax.random.normal(ks[8], (B, H), jnp.float32)

    kparams = prepare_params(params)            # one-time layout prep, outside the jitted path

    fwd = jax.jit(decoder_forward)
    logits_pad, state = fwd(tokens, h0, c0, kparams)
    jax.block_until_ready((logits_pad, state))

    ref_logits, (ref_h, ref_c) = reference_forward(tokens, h0, c0, params)
    logits_np = np.asarray(logits_pad)
    np.testing.assert_allclose(logits_np[..., :V], np.asarray(ref_logits), rtol=1e-4, atol=1e-4)
    np.testing.assert_allclose(np.asarray(state[0]), np.asarray(ref_h), rtol=1e-4, atol=1e-4)
    np.testing.assert_allclose(np.asarray(state[1]), np.asarray(ref_c), rtol=1e-4, atol=1e-4)
    # Padded logit lanes are exactly zero by construction (zero rows of emb_pad + zero bias).
    np.testing.assert_array_equal(logits_np[..., V:], 0.0)

    print("KERNEL_OK")
</pallas_src>

<mosaic_0001>
module attributes {stable_mosaic.version = 11 : i64} {
  func.func @_decoder_kernel(%arg0: memref<12xi32, #tpu.memory_space<smem>>, %arg1: memref<2x32xf32, #tpu.memory_space<vmem>>, %arg2: memref<2x32xf32, #tpu.memory_space<vmem>>, %arg3: memref<128x32xf32, #tpu.memory_space<vmem>>, %arg4: memref<32x128xf32, #tpu.memory_space<vmem>>, %arg5: memref<32x128xf32, #tpu.memory_space<vmem>>, %arg6: memref<1x128xf32, #tpu.memory_space<vmem>>, %arg7: memref<1x128xf32, #tpu.memory_space<vmem>>, %arg8: memref<12x128xf32, #tpu.memory_space<vmem>>, %arg9: memref<2x2x32xf32, #tpu.memory_space<vmem>>, %arg10: memref<12x32xf32, #tpu.memory_space<vmem>>, %arg11: memref<12x128xf32, #tpu.memory_space<vmem>>, %arg12: memref<12x32xf32, #tpu.memory_space<vmem>>) attributes {dimension_semantics = [], scalar_prefetch = 0 : i64, scratch_operands = 3 : i64, tpu.core_type = #tpu.core_type<tc>} {
    %c0 = arith.constant 0 : index
    %0 = memref.load %arg0[%c0] : memref<12xi32, #tpu.memory_space<smem>>
    %1 = arith.index_cast %0 : i32 to index
    %c0_0 = arith.constant 0 : index
    %2 = vector.load %arg3[%1, %c0_0] : memref<128x32xf32, #tpu.memory_space<vmem>>, vector<1x32xf32>
    %c0_1 = arith.constant 0 : index
    %c0_2 = arith.constant 0 : index
    %3 = vector.load %arg10[%c0_1, %c0_2] : memref<12x32xf32, #tpu.memory_space<vmem>>, vector<1x32xf32>
    tpu.vector_store %arg10[%c0_1, %c0_2], %2 {strides = array<i32>} : memref<12x32xf32, #tpu.memory_space<vmem>>, vector<1x32xf32>,
    %c1 = arith.constant 1 : index
    %4 = memref.load %arg0[%c1] : memref<12xi32, #tpu.memory_space<smem>>
    %5 = arith.index_cast %4 : i32 to index
    %c0_3 = arith.constant 0 : index
    %6 = vector.load %arg3[%5, %c0_3] : memref<128x32xf32, #tpu.memory_space<vmem>>, vector<1x32xf32>
    %c1_4 = arith.constant 1 : index
    %c0_5 = arith.constant 0 : index
    %7 = vector.load %arg10[%c1_4, %c0_5] : memref<12x32xf32, #tpu.memory_space<vmem>>, vector<1x32xf32>
    tpu.vector_store %arg10[%c1_4, %c0_5], %6 {strides = array<i32>} : memref<12x32xf32, #tpu.memory_space<vmem>>, vector<1x32xf32>,
    %c2 = arith.constant 2 : index
    %8 = memref.load %arg0[%c2] : memref<12xi32, #tpu.memory_space<smem>>
    %9 = arith.index_cast %8 : i32 to index
    %c0_6 = arith.constant 0 : index
    %10 = vector.load %arg3[%9, %c0_6] : memref<128x32xf32, #tpu.memory_space<vmem>>, vector<1x32xf32>
    %c2_7 = arith.constant 2 : index
    %c0_8 = arith.constant 0 : index
    %11 = vector.load %arg10[%c2_7, %c0_8] : memref<12x32xf32, #tpu.memory_space<vmem>>, vector<1x32xf32>
    tpu.vector_store %arg10[%c2_7, %c0_8], %10 {strides = array<i32>} : memref<12x32xf32, #tpu.memory_space<vmem>>, vector<1x32xf32>,
    %c3 = arith.constant 3 : index
    %12 = memref.load %arg0[%c3] : memref<12xi32, #tpu.memory_space<smem>>
    %13 = arith.index_cast %12 : i32 to index
    %c0_9 = arith.constant 0 : index
    %14 = vector.load %arg3[%13, %c0_9] : memref<128x32xf32, #tpu.memory_space<vmem>>, vector<1x32xf32>
    %c3_10 = arith.constant 3 : index
    %c0_11 = arith.constant 0 : index
    %15 = vector.load %arg10[%c3_10, %c0_11] : memref<12x32xf32, #tpu.memory_space<vmem>>, vector<1x32xf32>
    tpu.vector_store %arg10[%c3_10, %c0_11], %14 {strides = array<i32>} : memref<12x32xf32, #tpu.memory_space<vmem>>, vector<1x32xf32>,
    %c4 = arith.constant 4 : index
    %16 = memref.load %arg0[%c4] : memref<12xi32, #tpu.memory_space<smem>>
    %17 = arith.index_cast %16 : i32 to index
    %c0_12 = arith.constant 0 : index
    %18 = vector.load %arg3[%17, %c0_12] : memref<128x32xf32, #tpu.memory_space<vmem>>, vector<1x32xf32>
    %c4_13 = arith.constant 4 : index
    %c0_14 = arith.constant 0 : index
    %19 = vector.load %arg10[%c4_13, %c0_14] : memref<12x32xf32, #tpu.memory_space<vmem>>, vector<1x32xf32>
    tpu.vector_store %arg10[%c4_13, %c0_14], %18 {strides = array<i32>} : memref<12x32xf32, #tpu.memory_space<vmem>>, vector<1x32xf32>,
    %c5 = arith.constant 5 : index
    %20 = memref.load %arg0[%c5] : memref<12xi32, #tpu.memory_space<smem>>
    %21 = arith.index_cast %20 : i32 to index
    %c0_15 = arith.constant 0 : index
    %22 = vector.load %arg3[%21, %c0_15] : memref<128x32xf32, #tpu.memory_space<vmem>>, vector<1x32xf32>
    %c5_16 = arith.constant 5 : index
    %c0_17 = arith.constant 0 : index
    %23 = vector.load %arg10[%c5_16, %c0_17] : memref<12x32xf32, #tpu.memory_space<vmem>>, vector<1x32xf32>
    tpu.vector_store %arg10[%c5_16, %c0_17], %22 {strides = array<i32>} : memref<12x32xf32, #tpu.memory_space<vmem>>, vector<1x32xf32>,
    %c6 = arith.constant 6 : index
    %24 = memref.load %arg0[%c6] : memref<12xi32, #tpu.memory_space<smem>>
    %25 = arith.index_cast %24 : i32 to index
    %c0_18 = arith.constant 0 : index
    %26 = vector.load %arg3[%25, %c0_18] : memref<128x32xf32, #tpu.memory_space<vmem>>, vector<1x32xf32>
    %c6_19 = arith.constant 6 : index
    %c0_20 = arith.constant 0 : index
    %27 = vector.load %arg10[%c6_19, %c0_20] : memref<12x32xf32, #tpu.memory_space<vmem>>, vector<1x32xf32>
    tpu.vector_store %arg10[%c6_19, %c0_20], %26 {strides = array<i32>} : memref<12x32xf32, #tpu.memory_space<vmem>>, vector<1x32xf32>,
    %c7 = arith.constant 7 : index
    %28 = memref.load %arg0[%c7] : memref<12xi32, #tpu.memory_space<smem>>
    %29 = arith.index_cast %28 : i32 to index
    %c0_21 = arith.constant 0 : index
    %30 = vector.load %arg3[%29, %c0_21] : memref<128x32xf32, #tpu.memory_space<vmem>>, vector<1x32xf32>
    %c7_22 = arith.constant 7 : index
    %c0_23 = arith.constant 0 : index
    %31 = vector.load %arg10[%c7_22, %c0_23] : memref<12x32xf32, #tpu.memory_space<vmem>>, vector<1x32xf32>
    tpu.vector_store %arg10[%c7_22, %c0_23], %30 {strides = array<i32>} : memref<12x32xf32, #tpu.memory_space<vmem>>, vector<1x32xf32>,
    %c8 = arith.constant 8 : index
    %32 = memref.load %arg0[%c8] : memref<12xi32, #tpu.memory_space<smem>>
    %33 = arith.index_cast %32 : i32 to index
    %c0_24 = arith.constant 0 : index
    %34 = vector.load %arg3[%33, %c0_24] : memref<128x32xf32, #tpu.memory_space<vmem>>, vector<1x32xf32>
    %c8_25 = arith.constant 8 : index
    %c0_26 = arith.constant 0 : index
    %35 = vector.load %arg10[%c8_25, %c0_26] : memref<12x32xf32, #tpu.memory_space<vmem>>, vector<1x32xf32>
    tpu.vector_store %arg10[%c8_25, %c0_26], %34 {strides = array<i32>} : memref<12x32xf32, #tpu.memory_space<vmem>>, vector<1x32xf32>,
    %c9 = arith.constant 9 : index
    %36 = memref.load %arg0[%c9] : memref<12xi32, #tpu.memory_space<smem>>
    %37 = arith.index_cast %36 : i32 to index
    %c0_27 = arith.constant 0 : index
    %38 = vector.load %arg3[%37, %c0_27] : memref<128x32xf32, #tpu.memory_space<vmem>>, vector<1x32xf32>
    %c9_28 = arith.constant 9 : index
    %c0_29 = arith.constant 0 : index
    %39 = vector.load %arg10[%c9_28, %c0_29] : memref<12x32xf32, #tpu.memory_space<vmem>>, vector<1x32xf32>
    tpu.vector_store %arg10[%c9_28, %c0_29], %38 {strides = array<i32>} : memref<12x32xf32, #tpu.memory_space<vmem>>, vector<1x32xf32>,
    %c10 = arith.constant 10 : index
    %40 = memref.load %arg0[%c10] : memref<12xi32, #tpu.memory_space<smem>>
    %41 = arith.index_cast %40 : i32 to index
    %c0_30 = arith.constant 0 : index
    %42 = vector.load %arg3[%41, %c0_30] : memref<128x32xf32, #tpu.memory_space<vmem>>, vector<1x32xf32>
    %c10_31 = arith.constant 10 : index
    %c0_32 = arith.constant 0 : index
    %43 = vector.load %arg10[%c10_31, %c0_32] : memref<12x32xf32, #tpu.memory_space<vmem>>, vector<1x32xf32>
    tpu.vector_store %arg10[%c10_31, %c0_32], %42 {strides = array<i32>} : memref<12x32xf32, #tpu.memory_space<vmem>>, vector<1x32xf32>,
    %c11 = arith.constant 11 : index
    %44 = memref.load %arg0[%c11] : memref<12xi32, #tpu.memory_space<smem>>
    %45 = arith.index_cast %44 : i32 to index
    %c0_33 = arith.constant 0 : index
    %46 = vector.load %arg3[%45, %c0_33] : memref<128x32xf32, #tpu.memory_space<vmem>>, vector<1x32xf32>
    %c11_34 = arith.constant 11 : index
    %c0_35 = arith.constant 0 : index
    %47 = vector.load %arg10[%c11_34, %c0_35] : memref<12x32xf32, #tpu.memory_space<vmem>>, vector<1x32xf32>
    tpu.vector_store %arg10[%c11_34, %c0_35], %46 {strides = array<i32>} : memref<12x32xf32, #tpu.memory_space<vmem>>, vector<1x32xf32>,
    %c0_36 = arith.constant 0 : index
    %c0_37 = arith.constant 0 : index
    %48 = vector.load %arg10[%c0_36, %c0_37] : memref<12x32xf32, #tpu.memory_space<vmem>>, vector<12x32xf32>
    %c0_38 = arith.constant 0 : index
    %c0_39 = arith.constant 0 : index
    %49 = vector.load %arg4[%c0_38, %c0_39] : memref<32x128xf32, #tpu.memory_space<vmem>>, vector<32x128xf32>
    %cst = arith.constant dense<0.000000e+00> : vector<12x128xf32>
    %50 = tpu.matmul %48, %49, %cst {dimension_numbers = #tpu.dot_dimension_numbers<[1], [0], [0], [1], [0, 0, 1, 1], [], []>, precision = #tpu.contract_precision<fp32>} : vector<12x32xf32>, vector<32x128xf32>, vector<12x128xf32> -> vector<12x128xf32>
    %c0_40 = arith.constant 0 : index
    %c0_41 = arith.constant 0 : index
    %51 = vector.load %arg6[%c0_40, %c0_41] : memref<1x128xf32, #tpu.memory_space<vmem>>, vector<1x128xf32>
    %52 = vector.broadcast %51 : vector<1x128xf32> to vector<12x128xf32>
    %53 = arith.addf %50, %52 : vector<12x128xf32>
    %c0_42 = arith.constant 0 : index
    %c0_43 = arith.constant 0 : index
    %54 = vector.load %arg11[%c0_42, %c0_43] : memref<12x128xf32, #tpu.memory_space<vmem>>, vector<12x128xf32>
    tpu.vector_store %arg11[%c0_42, %c0_43], %53 {strides = array<i32>} : memref<12x128xf32, #tpu.memory_space<vmem>>, vector<12x128xf32>,
    %c0_44 = arith.constant 0 : index
    %c0_45 = arith.constant 0 : index
    %55 = vector.load %arg1[%c0_44, %c0_45] : memref<2x32xf32, #tpu.memory_space<vmem>>, vector<2x32xf32>
    %c0_46 = arith.constant 0 : index
    %c0_47 = arith.constant 0 : index
    %56 = vector.load %arg2[%c0_46, %c0_47] : memref<2x32xf32, #tpu.memory_space<vmem>>, vector<2x32xf32>
    %c0_48 = arith.constant 0 : index
    %c0_49 = arith.constant 0 : index
    %57 = vector.load %arg11[%c0_48, %c0_49] : memref<12x128xf32, #tpu.memory_space<vmem>>, vector<2x128xf32>
    %c0_50 = arith.constant 0 : index
    %c0_51 = arith.constant 0 : index
    %58 = vector.load %arg5[%c0_50, %c0_51] : memref<32x128xf32, #tpu.memory_space<vmem>>, vector<32x128xf32>
    %cst_52 = arith.constant dense<0.000000e+00> : vector<2x128xf32>
    %59 = tpu.matmul %55, %58, %cst_52 {dimension_numbers = #tpu.dot_dimension_numbers<[1], [0], [0], [1], [0, 0, 1, 1], [], []>, precision = #tpu.contract_precision<fp32>} : vector<2x32xf32>, vector<32x128xf32>, vector<2x128xf32> -> vector<2x128xf32>
    %60 = arith.addf %57, %59 : vector<2x128xf32>
    %61 = arith.negf %60 : vector<2x128xf32>
    %62 = math.exp %61 : vector<2x128xf32>
    %cst_53 = arith.constant 1.000000e+00 : f32
    %63 = vector.broadcast %cst_53 : f32 to vector<2x128xf32>
    %64 = arith.addf %63, %62 : vector<2x128xf32>
    %65 = arith.divf %63, %64 : vector<2x128xf32>
    %66 = math.tanh %60 : vector<2x128xf32>
    %67 = vector.extract_strided_slice %65 {offsets = [0, 0], sizes = [2, 32], strides = [1, 1]} : vector<2x128xf32> to vector<2x32xf32>
    %68 = vector.extract_strided_slice %65 {offsets = [0, 32], sizes = [2, 32], strides = [1, 1]} : vector<2x128xf32> to vector<2x32xf32>
    %69 = vector.extract_strided_slice %66 {offsets = [0, 64], sizes = [2, 32], strides = [1, 1]} : vector<2x128xf32> to vector<2x32xf32>
    %70 = vector.extract_strided_slice %65 {offsets = [0, 96], sizes = [2, 32], strides = [1, 1]} : vector<2x128xf32> to vector<2x32xf32>
    %71 = arith.mulf %68, %56 : vector<2x32xf32>
    %72 = arith.mulf %67, %69 : vector<2x32xf32>
    %73 = arith.addf %71, %72 : vector<2x32xf32>
    %74 = math.tanh %73 : vector<2x32xf32>
    %75 = arith.mulf %70, %74 : vector<2x32xf32>
    %c0_54 = arith.constant 0 : index
    %c0_55 = arith.constant 0 : index
    %76 = vector.load %arg12[%c0_54, %c0_55] : memref<12x32xf32, #tpu.memory_space<vmem>>, vector<2x32xf32>
    tpu.vector_store %arg12[%c0_54, %c0_55], %75 {strides = array<i32>} : memref<12x32xf32, #tpu.memory_space<vmem>>, vector<2x32xf32>,
    %c2_56 = arith.constant 2 : index
    %c0_57 = arith.constant 0 : index
    %77 = vector.load %arg11[%c2_56, %c0_57] : memref<12x128xf32, #tpu.memory_space<vmem>>, vector<2x128xf32>
    %c0_58 = arith.constant 0 : index
    %c0_59 = arith.constant 0 : index
    %78 = vector.load %arg5[%c0_58, %c0_59] : memref<32x128xf32, #tpu.memory_space<vmem>>, vector<32x128xf32>
    %cst_60 = arith.constant dense<0.000000e+00> : vector<2x128xf32>
    %79 = tpu.matmul %75, %78, %cst_60 {dimension_numbers = #tpu.dot_dimension_numbers<[1], [0], [0], [1], [0, 0, 1, 1], [], []>, precision = #tpu.contract_precision<fp32>} : vector<2x32xf32>, vector<32x128xf32>, vector<2x128xf32> -> vector<2x128xf32>
    %80 = arith.addf %77, %79 : vector<2x128xf32>
    %81 = arith.negf %80 : vector<2x128xf32>
    %82 = math.exp %81 : vector<2x128xf32>
    %cst_61 = arith.constant 1.000000e+00 : f32
    %83 = vector.broadcast %cst_61 : f32 to vector<2x128xf32>
    %84 = arith.addf %83, %82 : vector<2x128xf32>
    %85 = arith.divf %83, %84 : vector<2x128xf32>
    %86 = math.tanh %80 : vector<2x128xf32>
    %87 = vector.extract_strided_slice %85 {offsets = [0, 0], sizes = [2, 32], strides = [1, 1]} : vector<2x128xf32> to vector<2x32xf32>
    %88 = vector.extract_strided_slice %85 {offsets = [0, 32], sizes = [2, 32], strides = [1, 1]} : vector<2x128xf32> to vector<2x32xf32>
    %89 = vector.extract_strided_slice %86 {offsets = [0, 64], sizes = [2, 32], strides = [1, 1]} : vector<2x128xf32> to vector<2x32xf32>
    %90 = vector.extract_strided_slice %85 {offsets = [0, 96], sizes = [2, 32], strides = [1, 1]} : vector<2x128xf32> to vector<2x32xf32>
    %91 = arith.mulf %88, %73 : vector<2x32xf32>
    %92 = arith.mulf %87, %89 : vector<2x32xf32>
    %93 = arith.addf %91, %92 : vector<2x32xf32>
    %94 = math.tanh %93 : vector<2x32xf32>
    %95 = arith.mulf %90, %94 : vector<2x32xf32>
    %c2_62 = arith.constant 2 : index
    %c0_63 = arith.constant 0 : index
    %96 = vector.load %arg12[%c2_62, %c0_63] : memref<12x32xf32, #tpu.memory_space<vmem>>, vector<2x32xf32>
    tpu.vector_store %arg12[%c2_62, %c0_63], %95 {strides = array<i32>} : memref<12x32xf32, #tpu.memory_space<vmem>>, vector<2x32xf32>,
    %c4_64 = arith.constant 4 : index
    %c0_65 = arith.constant 0 : index
    %97 = vector.load %arg11[%c4_64, %c0_65] : memref<12x128xf32, #tpu.memory_space<vmem>>, vector<2x128xf32>
    %c0_66 = arith.constant 0 : index
    %c0_67 = arith.constant 0 : index
    %98 = vector.load %arg5[%c0_66, %c0_67] : memref<32x128xf32, #tpu.memory_space<vmem>>, vector<32x128xf32>
    %cst_68 = arith.constant dense<0.000000e+00> : vector<2x128xf32>
    %99 = tpu.matmul %95, %98, %cst_68 {dimension_numbers = #tpu.dot_dimension_numbers<[1], [0], [0], [1], [0, 0, 1, 1], [], []>, precision = #tpu.contract_precision<fp32>} : vector<2x32xf32>, vector<32x128xf32>, vector<2x128xf32> -> vector<2x128xf32>
    %100 = arith.addf %97, %99 : vector<2x128xf32>
    %101 = arith.negf %100 : vector<2x128xf32>
    %102 = math.exp %101 : vector<2x128xf32>
    %cst_69 = arith.constant 1.000000e+00 : f32
    %103 = vector.broadcast %cst_69 : f32 to vector<2x128xf32>
    %104 = arith.addf %103, %102 : vector<2x128xf32>
    %105 = arith.divf %103, %104 : vector<2x128xf32>
    %106 = math.tanh %100 : vector<2x128xf32>
    %107 = vector.extract_strided_slice %105 {offsets = [0, 0], sizes = [2, 32], strides = [1, 1]} : vector<2x128xf32> to vector<2x32xf32>
    %108 = vector.extract_strided_slice %105 {offsets = [0, 32], sizes = [2, 32], strides = [1, 1]} : vector<2x128xf32> to vector<2x32xf32>
    %109 = vector.extract_strided_slice %106 {offsets = [0, 64], sizes = [2, 32], strides = [1, 1]} : vector<2x128xf32> to vector<2x32xf32>
    %110 = vector.extract_strided_slice %105 {offsets = [0, 96], sizes = [2, 32], strides = [1, 1]} : vector<2x128xf32> to vector<2x32xf32>
    %111 = arith.mulf %108, %93 : vector<2x32xf32>
    %112 = arith.mulf %107, %109 : vector<2x32xf32>
    %113 = arith.addf %111, %112 : vector<2x32xf32>
    %114 = math.tanh %113 : vector<2x32xf32>
    %115 = arith.mulf %110, %114 : vector<2x32xf32>
    %c4_70 = arith.constant 4 : index
    %c0_71 = arith.constant 0 : index
    %116 = vector.load %arg12[%c4_70, %c0_71] : memref<12x32xf32, #tpu.memory_space<vmem>>, vector<2x32xf32>
    tpu.vector_store %arg12[%c4_70, %c0_71], %115 {strides = array<i32>} : memref<12x32xf32, #tpu.memory_space<vmem>>, vector<2x32xf32>,
    %c6_72 = arith.constant 6 : index
    %c0_73 = arith.constant 0 : index
    %117 = vector.load %arg11[%c6_72, %c0_73] : memref<12x128xf32, #tpu.memory_space<vmem>>, vector<2x128xf32>
    %c0_74 = arith.constant 0 : index
    %c0_75 = arith.constant 0 : index
    %118 = vector.load %arg5[%c0_74, %c0_75] : memref<32x128xf32, #tpu.memory_space<vmem>>, vector<32x128xf32>
    %cst_76 = arith.constant dense<0.000000e+00> : vector<2x128xf32>
    %119 = tpu.matmul %115, %118, %cst_76 {dimension_numbers = #tpu.dot_dimension_numbers<[1], [0], [0], [1], [0, 0, 1, 1], [], []>, precision = #tpu.contract_precision<fp32>} : vector<2x32xf32>, vector<32x128xf32>, vector<2x128xf32> -> vector<2x128xf32>
    %120 = arith.addf %117, %119 : vector<2x128xf32>
    %121 = arith.negf %120 : vector<2x128xf32>
    %122 = math.exp %121 : vector<2x128xf32>
    %cst_77 = arith.constant 1.000000e+00 : f32
    %123 = vector.broadcast %cst_77 : f32 to vector<2x128xf32>
    %124 = arith.addf %123, %122 : vector<2x128xf32>
    %125 = arith.divf %123, %124 : vector<2x128xf32>
    %126 = math.tanh %120 : vector<2x128xf32>
    %127 = vector.extract_strided_slice %125 {offsets = [0, 0], sizes = [2, 32], strides = [1, 1]} : vector<2x128xf32> to vector<2x32xf32>
    %128 = vector.extract_strided_slice %125 {offsets = [0, 32], sizes = [2, 32], strides = [1, 1]} : vector<2x128xf32> to vector<2x32xf32>
    %129 = vector.extract_strided_slice %126 {offsets = [0, 64], sizes = [2, 32], strides = [1, 1]} : vector<2x128xf32> to vector<2x32xf32>
    %130 = vector.extract_strided_slice %125 {offsets = [0, 96], sizes = [2, 32], strides = [1, 1]} : vector<2x128xf32> to vector<2x32xf32>
    %131 = arith.mulf %128, %113 : vector<2x32xf32>
    %132 = arith.mulf %127, %129 : vector<2x32xf32>
    %133 = arith.addf %131, %132 : vector<2x32xf32>
    %134 = math.tanh %133 : vector<2x32xf32>
    %135 = arith.mulf %130, %134 : vector<2x32xf32>
    %c6_78 = arith.constant 6 : index
    %c0_79 = arith.constant 0 : index
    %136 = vector.load %arg12[%c6_78, %c0_79] : memref<12x32xf32, #tpu.memory_space<vmem>>, vector<2x32xf32>
    tpu.vector_store %arg12[%c6_78, %c0_79], %135 {strides = array<i32>} : memref<12x32xf32, #tpu.memory_space<vmem>>, vector<2x32xf32>,
    %c8_80 = arith.constant 8 : index
    %c0_81 = arith.constant 0 : index
    %137 = vector.load %arg11[%c8_80, %c0_81] : memref<12x128xf32, #tpu.memory_space<vmem>>, vector<2x128xf32>
    %c0_82 = arith.constant 0 : index
    %c0_83 = arith.constant 0 : index
    %138 = vector.load %arg5[%c0_82, %c0_83] : memref<32x128xf32, #tpu.memory_space<vmem>>, vector<32x128xf32>
    %cst_84 = arith.constant dense<0.000000e+00> : vector<2x128xf32>
    %139 = tpu.matmul %135, %138, %cst_84 {dimension_numbers = #tpu.dot_dimension_numbers<[1], [0], [0], [1], [0, 0, 1, 1], [], []>, precision = #tpu.contract_precision<fp32>} : vector<2x32xf32>, vector<32x128xf32>, vector<2x128xf32> -> vector<2x128xf32>
    %140 = arith.addf %137, %139 : vector<2x128xf32>
    %141 = arith.negf %140 : vector<2x128xf32>
    %142 = math.exp %141 : vector<2x128xf32>
    %cst_85 = arith.constant 1.000000e+00 : f32
    %143 = vector.broadcast %cst_85 : f32 to vector<2x128xf32>
    %144 = arith.addf %143, %142 : vector<2x128xf32>
    %145 = arith.divf %143, %144 : vector<2x128xf32>
    %146 = math.tanh %140 : vector<2x128xf32>
    %147 = vector.extract_strided_slice %145 {offsets = [0, 0], sizes = [2, 32], strides = [1, 1]} : vector<2x128xf32> to vector<2x32xf32>
    %148 = vector.extract_strided_slice %145 {offsets = [0, 32], sizes = [2, 32], strides = [1, 1]} : vector<2x128xf32> to vector<2x32xf32>
    %149 = vector.extract_strided_slice %146 {offsets = [0, 64], sizes = [2, 32], strides = [1, 1]} : vector<2x128xf32> to vector<2x32xf32>
    %150 = vector.extract_strided_slice %145 {offsets = [0, 96], sizes = [2, 32], strides = [1, 1]} : vector<2x128xf32> to vector<2x32xf32>
    %151 = arith.mulf %148, %133 : vector<2x32xf32>
    %152 = arith.mulf %147, %149 : vector<2x32xf32>
    %153 = arith.addf %151, %152 : vector<2x32xf32>
    %154 = math.tanh %153 : vector<2x32xf32>
    %155 = arith.mulf %150, %154 : vector<2x32xf32>
    %c8_86 = arith.constant 8 : index
    %c0_87 = arith.constant 0 : index
    %156 = vector.load %arg12[%c8_86, %c0_87] : memref<12x32xf32, #tpu.memory_space<vmem>>, vector<2x32xf32>
    tpu.vector_store %arg12[%c8_86, %c0_87], %155 {strides = array<i32>} : memref<12x32xf32, #tpu.memory_space<vmem>>, vector<2x32xf32>,
    %c10_88 = arith.constant 10 : index
    %c0_89 = arith.constant 0 : index
    %157 = vector.load %arg11[%c10_88, %c0_89] : memref<12x128xf32, #tpu.memory_space<vmem>>, vector<2x128xf32>
    %c0_90 = arith.constant 0 : index
    %c0_91 = arith.constant 0 : index
    %158 = vector.load %arg5[%c0_90, %c0_91] : memref<32x128xf32, #tpu.memory_space<vmem>>, vector<32x128xf32>
    %cst_92 = arith.constant dense<0.000000e+00> : vector<2x128xf32>
    %159 = tpu.matmul %155, %158, %cst_92 {dimension_numbers = #tpu.dot_dimension_numbers<[1], [0], [0], [1], [0, 0, 1, 1], [], []>, precision = #tpu.contract_precision<fp32>} : vector<2x32xf32>, vector<32x128xf32>, vector<2x128xf32> -> vector<2x128xf32>
    %160 = arith.addf %157, %159 : vector<2x128xf32>
    %161 = arith.negf %160 : vector<2x128xf32>
    %162 = math.exp %161 : vector<2x128xf32>
    %cst_93 = arith.constant 1.000000e+00 : f32
    %163 = vector.broadcast %cst_93 : f32 to vector<2x128xf32>
    %164 = arith.addf %163, %162 : vector<2x128xf32>
    %165 = arith.divf %163, %164 : vector<2x128xf32>
    %166 = math.tanh %160 : vector<2x128xf32>
    %167 = vector.extract_strided_slice %165 {offsets = [0, 0], sizes = [2, 32], strides = [1, 1]} : vector<2x128xf32> to vector<2x32xf32>
    %168 = vector.extract_strided_slice %165 {offsets = [0, 32], sizes = [2, 32], strides = [1, 1]} : vector<2x128xf32> to vector<2x32xf32>
    %169 = vector.extract_strided_slice %166 {offsets = [0, 64], sizes = [2, 32], strides = [1, 1]} : vector<2x128xf32> to vector<2x32xf32>
    %170 = vector.extract_strided_slice %165 {offsets = [0, 96], sizes = [2, 32], strides = [1, 1]} : vector<2x128xf32> to vector<2x32xf32>
    %171 = arith.mulf %168, %153 : vector<2x32xf32>
    %172 = arith.mulf %167, %169 : vector<2x32xf32>
    %173 = arith.addf %171, %172 : vector<2x32xf32>
    %174 = math.tanh %173 : vector<2x32xf32>
    %175 = arith.mulf %170, %174 : vector<2x32xf32>
    %c10_94 = arith.constant 10 : index
    %c0_95 = arith.constant 0 : index
    %176 = vector.load %arg12[%c10_94, %c0_95] : memref<12x32xf32, #tpu.memory_space<vmem>>, vector<2x32xf32>
    tpu.vector_store %arg12[%c10_94, %c0_95], %175 {strides = array<i32>} : memref<12x32xf32, #tpu.memory_space<vmem>>, vector<2x32xf32>,
    %c0_96 = arith.constant 0 : index
    %c0_97 = arith.constant 0 : index
    %c0_98 = arith.constant 0 : index
    %177 = vector.load %arg9[%c0_96, %c0_97, %c0_98] : memref<2x2x32xf32, #tpu.memory_space<vmem>>, vector<1x2x32xf32>
    %178 = vector.shape_cast %177 : vector<1x2x32xf32> to vector<2x32xf32>
    %179 = vector.shape_cast %175 : vector<2x32xf32> to vector<1x2x32xf32>
    tpu.vector_store %arg9[%c0_96, %c0_97, %c0_98], %179 {strides = array<i32>} : memref<2x2x32xf32, #tpu.memory_space<vmem>>, vector<1x2x32xf32>,
    %c1_99 = arith.constant 1 : index
    %c0_100 = arith.constant 0 : index
    %c0_101 = arith.constant 0 : index
    %180 = vector.load %arg9[%c1_99, %c0_100, %c0_101] : memref<2x2x32xf32, #tpu.memory_space<vmem>>, vector<1x2x32xf32>
    %181 = vector.shape_cast %180 : vector<1x2x32xf32> to vector<2x32xf32>
    %182 = vector.shape_cast %173 : vector<2x32xf32> to vector<1x2x32xf32>
    tpu.vector_store %arg9[%c1_99, %c0_100, %c0_101], %182 {strides = array<i32>} : memref<2x2x32xf32, #tpu.memory_space<vmem>>, vector<1x2x32xf32>,
    %c0_102 = arith.constant 0 : index
    %c0_103 = arith.constant 0 : index
    %183 = vector.load %arg12[%c0_102, %c0_103] : memref<12x32xf32, #tpu.memory_space<vmem>>, vector<12x32xf32>
    %c0_104 = arith.constant 0 : index
    %c0_105 = arith.constant 0 : index
    %184 = vector.load %arg3[%c0_104, %c0_105] : memref<128x32xf32, #tpu.memory_space<vmem>>, vector<128x32xf32>
    %cst_106 = arith.constant dense<0.000000e+00> : vector<12x128xf32>
    %185 = tpu.matmul %183, %184, %cst_106 {dimension_numbers = #tpu.dot_dimension_numbers<[1], [1], [0], [0], [0, 0, 1, 0], [], []>, precision = #tpu.contract_precision<fp32>} : vector<12x32xf32>, vector<128x32xf32>, vector<12x128xf32> -> vector<12x128xf32>
    %c0_107 = arith.constant 0 : index
    %c0_108 = arith.constant 0 : index
    %186 = vector.load %arg7[%c0_107, %c0_108] : memref<1x128xf32, #tpu.memory_space<vmem>>, vector<1x128xf32>
    %187 = vector.broadcast %186 : vector<1x128xf32> to vector<12x128xf32>
    %188 = arith.addf %185, %187 : vector<12x128xf32>
    %c0_109 = arith.constant 0 : index
    %c0_110 = arith.constant 0 : index
    %189 = vector.load %arg8[%c0_109, %c0_110] : memref<12x128xf32, #tpu.memory_space<vmem>>, vector<12x128xf32>
    tpu.vector_store %arg8[%c0_109, %c0_110], %188 {strides = array<i32>} : memref<12x128xf32, #tpu.memory_space<vmem>>, vector<12x128xf32>,
    return
  }
}

</mosaic_0001>

<llo_original>
// kernel: decoder_forward.1
$region0: #{decoder_forward.1}
  #allocation0 [shape = 'u32[]', space=smem, size = 0x4, offset = 0x4, fixed_abs, tag = 'smem constant byte address 0x4 - core index']
  #allocation1 [shape = 'u32[144,128]{1,0:T(1,128)}', space=vmem, size = 0x12000, scoped, tag = 'internal scratch']
  #allocation2 [shape = 'f32[12,32]{1,0:T(8,128)}', space=vmem, size = 0x2000, scoped, tag = 'scratch operand']
  #allocation3 [shape = 'f32[12,128]{1,0:T(8,128)}', space=vmem, size = 0x2000, scoped, tag = 'scratch operand']
  #allocation4 [shape = 'f32[12,32]{1,0:T(8,128)}', space=vmem, size = 0x2000, scoped, tag = 'scratch operand']
  %s0 = inlined_call_operand.vmem [shape: s32[12], index: 0, kind: input, shape index: {}]
  %s1 = inlined_call_operand.vmem [shape: f32[2,32], index: 1, kind: input, shape index: {}]
  %s2 = inlined_call_operand.vmem [shape: f32[2,32], index: 2, kind: input, shape index: {}]
  %s3 = inlined_call_operand.vmem [shape: f32[128,32], index: 3, kind: input, shape index: {}]
  %s4 = inlined_call_operand.vmem [shape: f32[32,128], index: 4, kind: input, shape index: {}]
  %s5 = inlined_call_operand.vmem [shape: f32[32,128], index: 5, kind: input, shape index: {}]
  %s6 = inlined_call_operand.vmem [shape: f32[1,128], index: 6, kind: input, shape index: {}]
  %s7 = inlined_call_operand.vmem [shape: f32[1,128], index: 7, kind: input, shape index: {}]
  %s8 = inlined_call_operand.vmem [shape: f32[12,128], index: 8, kind: output, shape index: {0}]
  %s9 = inlined_call_operand.hbm [shape: f32[2,2,32], index: 9, kind: output, shape index: {1}]
  %10 = xla_tuple %s8, %s9
  %s11 = sld [smem:[#allocation0]]
  $region54: #{decoder_forward.1} parent=0
    _
  %s13 = ssub.s32 1, %s11
  %s14 = scalar_select 0, %s13, %s11
  $region1: #{decoder_forward.1} parent=0
    #allocation5 [shape = 'u8[512]{0}', space=smem, size = 0x200, scoped, tag = 'input window, operand 0, single buffered']
    #allocation6 [shape = 's32[1]{0}', space=sflag, size = 0x4, scoped, tag = 'scoped memory for decoder_forward.1']
    #allocation7 [shape = 's32[1]{0}', space=sflag, size = 0x4, scoped, tag = 'scoped memory for decoder_forward.1']
    #allocation8 [shape = 'u8[2048]{0}', space=vmem, size = 0x800, scoped, tag = 'output window, operand 1, single buffered']
    %15 = vsyncpa [#allocation7], 0
    %16 = vsyncpa [#allocation6], 0
    // Predicated region
    $region2: #{decoder_forward.1} parent=1 // pred_check
      _
    $region3: #{decoder_forward.1} parent=1 // pred_check_branch
      %18 = sbr.rel (0) target = $region5
    $region4: #{decoder_forward.1} parent=1 // pred_region
      %s20 = ssub.s32 16, 16
      %21 = vsyncadd [#allocation7], %s20
      %s23 = sshll.u32 %s0, 4
      %s24 = int_to_ptr.vmem [resolvable:$true] %s23
      %26 = dma.vmem_to_smem %s24, 16, [#allocation5], [#allocation7]
    $region5: #{decoder_forward.1} parent=1 // pred_fallthru
      _
    // Predicated region
    $region6: #{decoder_forward.1} parent=1 // pred_check
      _
    $region7: #{decoder_forward.1} parent=1 // pred_check_branch
      %28 = sbr.rel (0) target = $region9
    $region8: #{decoder_forward.1} parent=1 // pred_region
      _
    $region9: #{decoder_forward.1} parent=1 // pred_fallthru
      _
    // Predicated region
    $region10: #{decoder_forward.1} parent=1 // pred_check
      _
    $region11: #{decoder_forward.1} parent=1 // pred_check_branch
      %30 = sbr.rel (0) target = $region13
    $region12: #{decoder_forward.1} parent=1 // pred_region
      _
    $region13: #{decoder_forward.1} parent=1 // pred_fallthru
      _
    // Predicated region
    $region14: #{decoder_forward.1} parent=1 // pred_check
      _
    $region15: #{decoder_forward.1} parent=1 // pred_check_branch
      %32 = sbr.rel (0) target = $region17
    $region16: #{decoder_forward.1} parent=1 // pred_region
      _
    $region17: #{decoder_forward.1} parent=1 // pred_fallthru
      _
    // Predicated region
    $region18: #{decoder_forward.1} parent=1 // pred_check
      _
    $region19: #{decoder_forward.1} parent=1 // pred_check_branch
      %34 = sbr.rel (0) target = $region21
    $region20: #{decoder_forward.1} parent=1 // pred_region
      _
    $region21: #{decoder_forward.1} parent=1 // pred_fallthru
      _
    // Predicated region
    $region22: #{decoder_forward.1} parent=1 // pred_check
      _
    $region23: #{decoder_forward.1} parent=1 // pred_check_branch
      %36 = sbr.rel (0) target = $region25
    $region24: #{decoder_forward.1} parent=1 // pred_region
      _
    $region25: #{decoder_forward.1} parent=1 // pred_fallthru
      _
    // Predicated region
    $region26: #{decoder_forward.1} parent=1 // pred_check
      _
    $region27: #{decoder_forward.1} parent=1 // pred_check_branch
      %38 = sbr.rel (0) target = $region29
    $region28: #{decoder_forward.1} parent=1 // pred_region
      _
    $region29: #{decoder_forward.1} parent=1 // pred_fallthru
      _
    // Predicated region
    $region30: #{decoder_forward.1} parent=1 // pred_check
      _
    $region31: #{decoder_forward.1} parent=1 // pred_check_branch
      %40 = sbr.rel (0) target = $region33
    $region32: #{decoder_forward.1} parent=1 // pred_region
      _
    $region33: #{decoder_forward.1} parent=1 // pred_fallthru
      _
    // Predicated region
    $region34: #{decoder_forward.1} parent=1 // pred_check
      _
    $region35: #{decoder_forward.1} parent=1 // pred_check_branch
      %42 = sbr.rel (0) target = $region37
    $region36: #{decoder_forward.1} parent=1 // pred_region
      %43 = dma.done [#allocation7], 16
    $region37: #{decoder_forward.1} parent=1 // pred_fallthru
      _
    %44 = sfence
    %s45 = sld [smem:[#allocation5]]
    %s46 = scalar_lea.vmem %s3, %s45
    %v47 = vld [vmem:[%s46] sm:$0x1]
    %vm48 = vcmask 253952
    %49 = vst.msk [vmem:[#allocation2] sm:$0x1] %vm48, %v47
    %s50 = sld [smem:[#allocation5 + $0x1]]
    %s51 = scalar_lea.vmem %s3, %s50
    %v52 = vld [vmem:[%s51] sm:$0x1]
    %53 = vst.msk [vmem:[#allocation2 + $0x1] sm:$0x1] %vm48, %v52
    %s54 = sld [smem:[#allocation5 + $0x2]]
    %s55 = scalar_lea.vmem %s3, %s54
    %v56 = vld [vmem:[%s55] sm:$0x1]
    %57 = vst.msk [vmem:[#allocation2 + $0x2] sm:$0x1] %vm48, %v56
    %s58 = sld [smem:[#allocation5 + $0x3]]
    %s59 = scalar_lea.vmem %s3, %s58
    %v60 = vld [vmem:[%s59] sm:$0x1]
    %61 = vst.msk [vmem:[#allocation2 + $0x3] sm:$0x1] %vm48, %v60
    %s62 = sld [smem:[#allocation5 + $0x4]]
    %s63 = scalar_lea.vmem %s3, %s62
    %v64 = vld [vmem:[%s63] sm:$0x1]
    %65 = vst.msk [vmem:[#allocation2 + $0x4] sm:$0x1] %vm48, %v64
    %s66 = sld [smem:[#allocation5 + $0x5]]
    %s67 = scalar_lea.vmem %s3, %s66
    %v68 = vld [vmem:[%s67] sm:$0x1]
    %69 = vst.msk [vmem:[#allocation2 + $0x5] sm:$0x1] %vm48, %v68
    %s70 = sld [smem:[#allocation5 + $0x6]]
    %s71 = scalar_lea.vmem %s3, %s70
    %v72 = vld [vmem:[%s71] sm:$0x1]
    %73 = vst.msk [vmem:[#allocation2 + $0x6] sm:$0x1] %vm48, %v72
    %s74 = sld [smem:[#allocation5 + $0x7]]
    %s75 = scalar_lea.vmem %s3, %s74
    %v76 = vld [vmem:[%s75] sm:$0x1]
    %77 = vst.msk [vmem:[#allocation2 + $0x7] sm:$0x1] %vm48, %v76
    %s78 = sld [smem:[#allocation5 + $0x8]]
    %s79 = scalar_lea.vmem %s3, %s78
    %v80 = vld [vmem:[%s79] sm:$0x1]
    %81 = vst.msk [vmem:[#allocation2 + $0x8] sm:$0x1] %vm48, %v80
    %s82 = sld [smem:[#allocation5 + $0x9]]
    %s83 = scalar_lea.vmem %s3, %s82
    %v84 = vld [vmem:[%s83] sm:$0x1]
    %85 = vst.msk [vmem:[#allocation2 + $0x9] sm:$0x1] %vm48, %v84
    %s86 = sld [smem:[#allocation5 + $0xa]]
    %s87 = scalar_lea.vmem %s3, %s86
    %v88 = vld [vmem:[%s87] sm:$0x1]
    %89 = vst.msk [vmem:[#allocation2 + $0xa] sm:$0x1] %vm48, %v88
    %s90 = sld [smem:[#allocation5 + $0xb]]
    %s91 = scalar_lea.vmem %s3, %s90
    %v92 = vld [vmem:[%s91] sm:$0x1]
    %93 = vst.msk [vmem:[#allocation2 + $0xb] sm:$0x1] %vm48, %v92
    %v94 = vld [vmem:[#allocation2] sm:$0xff]
    %v95 = vld [vmem:[#allocation2 + $0x8] sm:$0xf]
    %v96 = vld [vmem:[%s4] sm:$0xff]
    %v97 = vld [vmem:[%s4 + $0x8] sm:$0xff]
    %v98 = vld [vmem:[%s4 + $0x10] sm:$0xff]
    %v99 = vld [vmem:[%s4 + $0x18] sm:$0xff]
    %v100 = vld [vmem:[%s6] sm:$0x1]
    %v102 = vlaneseq
    %v103 = vshrl.u32 %v102, 7
    %v104 = vsub.s32 0, %v103
    %v105 = vrot.slane %v100, %v104
    %vm107 = vcmask 261120
    %v109 = vsel %vm107, %v94, 0
    %v112 = vsel %vm107, %v95, 0
    %114 = vmatprep.subr.mxu0 0.0
    %v115 = vand.u32 %v96, 4294901760
    %116 = vmatpush1.msra.mxu0 %v115
    %117 = vmatprep.subr.mxu0 0.0
    %v118 = vand.u32 %v97, 4294901760
    %119 = vmatpush1.msra.mxu0 %v118
    %120 = vmatprep.subr.mxu0 0.0
    %v121 = vand.u32 %v98, 4294901760
    %122 = vmatpush1.msra.mxu0 %v121
    %123 = vmatprep.subr.mxu0 0.0
    %v124 = vand.u32 %v99, 4294901760
    %125 = vmatpush1.msra.mxu0 %v124
    %126 = vmatprep.subr.mxu0 0.0
    %127 = vmatpush1.msra.mxu0 0.0
    %128 = vmatprep.subr.mxu0 0.0
    %129 = vmatpush1.msra.mxu0 0.0
    %130 = vmatprep.subr.mxu0 0.0
    %131 = vmatpush1.msra.mxu0 0.0
    %132 = vmatprep.subr.mxu0 0.0
    %133 = vmatpush1.msra.mxu0 0.0
    %134 = vmatprep.subr.mxu0 0.0
    %135 = vmatpush1.msra.mxu0 0.0
    %136 = vmatprep.subr.mxu0 0.0
    %137 = vmatpush1.msra.mxu0 0.0
    %138 = vmatprep.subr.mxu0 0.0
    %139 = vmatpush1.msra.mxu0 0.0
    %140 = vmatprep.subr.mxu0 0.0
    %141 = vmatpush1.msra.mxu0 0.0
    %142 = vmatprep.subr.mxu0 0.0
    %143 = vmatpush1.msra.mxu0 0.0
    %144 = vmatprep.subr.mxu0 0.0
    %145 = vmatpush1.msra.mxu0 0.0
    %146 = vmatprep.subr.mxu0 0.0
    %147 = vmatpush1.msra.mxu0 0.0
    %148 = vmatprep.subr.mxu0 0.0
    %149 = vmatpush1.msra.mxu0 0.0
    %150 = vmatprep.subr.mxu0 0.0
    %151 = vmatpush1.msra.mxu0 0.0
    %152 = vmatprep.subr.mxu0 0.0
    %153 = vmatpush1.msra.mxu0 0.0
    %154 = vmatprep.subr.mxu0 0.0
    %155 = vmatpush1.msra.mxu0 0.0
    %156 = vmatprep.subr.mxu0 0.0
    %157 = vmatpush1.msra.mxu0 0.0
    %158 = vmatprep.subr.mxu0 0.0
    %159 = vmatpush1.msra.mxu0 0.0
    %160 = vmatprep.subr.mxu0 0.0
    %161 = vmatpush1.msra.mxu0 0.0
    %162 = vmatprep.subr.mxu0 0.0
    %163 = vmatpush1.msra.mxu0 0.0
    %164 = vmatprep.subr.mxu0 0.0
    %165 = vmatpush1.msra.mxu0 0.0
    %166 = vmatprep.subr.mxu0 0.0
    %167 = vmatpush1.msra.mxu0 0.0
    %168 = vmatprep.subr.mxu0 0.0
    %169 = vmatpush1.msra.mxu0 0.0
    %170 = vmatprep.subr.mxu0 0.0
    %171 = vmatpush1.msra.mxu0 0.0
    %172 = vmatprep.subr.mxu0 0.0
    %173 = vmatpush1.msra.mxu0 0.0
    %174 = vmatprep.subr.mxu0 0.0
    %175 = vmatpush1.msra.mxu0 0.0
    %176 = vmatprep.subr.mxu0 0.0
    %177 = vmatpush1.msra.mxu0 0.0
    %178 = vmatprep.subr.mxu0 0.0
    %179 = vmatpush1.msra.mxu0 0.0
    %180 = vmatprep.subr.mxu0 0.0
    %181 = vmatpush1.msra.mxu0 0.0
    %182 = vmatprep.mubr.f32.mxu0 0.0
    %v183 = vand.u32 %v109, 4294901760
    %v184 = vsub.f32 %v109, %v183
    %v185 = vand.u32 %v184, 4294901760
    %v186 = vsub.f32 %v184, %v185
    %v187 = vand.u32 %v186, 4294901760
    %188 = vmatmul.mubr.f32.gmra.mrb[0].mxu0 %v187
    %v189 = vpop.f32.mrb[0].mxu0
    %v190 = vadd.f32 %v105, %v189
    %v191 = vpop.f32.mrb[0].mxu0
    %192 = vmatprep.mubr.f32.mxu0 0.0
    %v193 = vand.u32 %v112, 4294901760
    %v194 = vsub.f32 %v112, %v193
    %v195 = vand.u32 %v194, 4294901760
    %v196 = vsub.f32 %v194, %v195
    %v197 = vand.u32 %v196, 4294901760
    %198 = vmatmul.mubr.f32.gmra.mrb[0].mxu0 %v197
    %v199 = vpop.f32.mrb[0].mxu0
    %v200 = vadd.f32 %v105, %v199
    %v201 = vpop.f32.mrb[0].mxu0
    %202 = vdwg.mxu0
    %203 = vmatprep.subr.mxu0 0.0
    %v204 = vand.u32 %v96, 4294901760
    %v205 = vsub.f32 %v96, %v204
    %v206 = vand.u32 %v205, 4294901760
    %v207 = vsub.f32 %v205, %v206
    %v208 = vand.u32 %v207, 4294901760
    %209 = vmatpush1.msra.mxu0 %v208
    %210 = vmatprep.subr.mxu0 0.0
    %v211 = vand.u32 %v97, 4294901760
    %v212 = vsub.f32 %v97, %v211
    %v213 = vand.u32 %v212, 4294901760
    %v214 = vsub.f32 %v212, %v213
    %v215 = vand.u32 %v214, 4294901760
    %216 = vmatpush1.msra.mxu0 %v215
    %217 = vmatprep.subr.mxu0 0.0
    %v218 = vand.u32 %v98, 4294901760
    %v219 = vsub.f32 %v98, %v218
    %v220 = vand.u32 %v219, 4294901760
    %v221 = vsub.f32 %v219, %v220
    %v222 = vand.u32 %v221, 4294901760
    %223 = vmatpush1.msra.mxu0 %v222
    %224 = vmatprep.subr.mxu0 0.0
    %v225 = vand.u32 %v99, 4294901760
    %v226 = vsub.f32 %v99, %v225
    %v227 = vand.u32 %v226, 4294901760
    %v228 = vsub.f32 %v226, %v227
    %v229 = vand.u32 %v228, 4294901760
    %230 = vmatpush1.msra.mxu0 %v229
    %231 = vmatprep.subr.mxu0 0.0
    %232 = vmatpush1.msra.mxu0 0.0
    %233 = vmatprep.subr.mxu0 0.0
    %234 = vmatpush1.msra.mxu0 0.0
    %235 = vmatprep.subr.mxu0 0.0
    %236 = vmatpush1.msra.mxu0 0.0
    %237 = vmatprep.subr.mxu0 0.0
    %238 = vmatpush1.msra.mxu0 0.0
    %239 = vmatprep.subr.mxu0 0.0
    %240 = vmatpush1.msra.mxu0 0.0
    %241 = vmatprep.subr.mxu0 0.0
    %242 = vmatpush1.msra.mxu0 0.0
    %243 = vmatprep.subr.mxu0 0.0
    %244 = vmatpush1.msra.mxu0 0.0
    %245 = vmatprep.subr.mxu0 0.0
    %246 = vmatpush1.msra.mxu0 0.0
    %247 = vmatprep.subr.mxu0 0.0
    %248 = vmatpush1.msra.mxu0 0.0
    %249 = vmatprep.subr.mxu0 0.0
    %250 = vmatpush1.msra.mxu0 0.0
    %251 = vmatprep.subr.mxu0 0.0
    %252 = vmatpush1.msra.mxu0 0.0
    %253 = vmatprep.subr.mxu0 0.0
    %254 = vmatpush1.msra.mxu0 0.0
    %255 = vmatprep.subr.mxu0 0.0
    %256 = vmatpush1.msra.mxu0 0.0
    %257 = vmatprep.subr.mxu0 0.0
    %258 = vmatpush1.msra.mxu0 0.0
    %259 = vmatprep.subr.mxu0 0.0
    %260 = vmatpush1.msra.mxu0 0.0
    %261 = vmatprep.subr.mxu0 0.0
    %262 = vmatpush1.msra.mxu0 0.0
    %263 = vmatprep.subr.mxu0 0.0
    %264 = vmatpush1.msra.mxu0 0.0
    %265 = vmatprep.subr.mxu0 0.0
    %266 = vmatpush1.msra.mxu0 0.0
    %267 = vmatprep.subr.mxu0 0.0
    %268 = vmatpush1.msra.mxu0 0.0
    %269 = vmatprep.subr.mxu0 0.0
    %270 = vmatpush1.msra.mxu0 0.0
    %271 = vmatprep.subr.mxu0 0.0
    %272 = vmatpush1.msra.mxu0 0.0
    %273 = vmatprep.subr.mxu0 0.0
    %274 = vmatpush1.msra.mxu0 0.0
    %275 = vmatprep.subr.mxu0 0.0
    %276 = vmatpush1.msra.mxu0 0.0
    %277 = vmatprep.subr.mxu0 0.0
    %278 = vmatpush1.msra.mxu0 0.0
    %279 = vmatprep.subr.mxu0 0.0
    %280 = vmatpush1.msra.mxu0 0.0
    %281 = vmatprep.subr.mxu0 0.0
    %282 = vmatpush1.msra.mxu0 0.0
    %283 = vmatprep.subr.mxu0 0.0
    %284 = vmatpush1.msra.mxu0 0.0
    %285 = vmatprep.subr.mxu0 0.0
    %286 = vmatpush1.msra.mxu0 0.0
    %287 = vmatprep.mubr.f32.mxu0 0.0
    %v288 = vand.u32 %v109, 4294901760
    %289 = vmatmul.mubr.f32.gmra.mrb[0].mxu0 %v288
    %v290 = vpop.f32.mrb[0].mxu0
    %v291 = vadd.f32 %v190, %v290
    %v292 = vpop.f32.mrb[0].mxu0
    %293 = vmatprep.mubr.f32.mxu0 0.0
    %v294 = vand.u32 %v112, 4294901760
    %295 = vmatmul.mubr.f32.gmra.mrb[0].mxu0 %v294
    %v296 = vpop.f32.mrb[0].mxu0
    %v297 = vadd.f32 %v200, %v296
    %v298 = vpop.f32.mrb[0].mxu0
    %299 = vdwg.mxu0
    %300 = vmatprep.subr.mxu0 0.0
    %v301 = vand.u32 %v96, 4294901760
    %v302 = vsub.f32 %v96, %v301
    %303 = vmatpush1.msra.mxu0 %v302
    %304 = vmatprep.subr.mxu0 0.0
    %v305 = vand.u32 %v97, 4294901760
    %v306 = vsub.f32 %v97, %v305
    %307 = vmatpush1.msra.mxu0 %v306
    %308 = vmatprep.subr.mxu0 0.0
    %v309 = vand.u32 %v98, 4294901760
    %v310 = vsub.f32 %v98, %v309
    %311 = vmatpush1.msra.mxu0 %v310
    %312 = vmatprep.subr.mxu0 0.0
    %v313 = vand.u32 %v99, 4294901760
    %v314 = vsub.f32 %v99, %v313
    %315 = vmatpush1.msra.mxu0 %v314
    %316 = vmatprep.subr.mxu0 0.0
    %317 = vmatpush1.msra.mxu0 0.0
    %318 = vmatprep.subr.mxu0 0.0
    %319 = vmatpush1.msra.mxu0 0.0
    %320 = vmatprep.subr.mxu0 0.0
    %321 = vmatpush1.msra.mxu0 0.0
    %322 = vmatprep.subr.mxu0 0.0
    %323 = vmatpush1.msra.mxu0 0.0
    %324 = vmatprep.subr.mxu0 0.0
    %325 = vmatpush1.msra.mxu0 0.0
    %326 = vmatprep.subr.mxu0 0.0
    %327 = vmatpush1.msra.mxu0 0.0
    %328 = vmatprep.subr.mxu0 0.0
    %329 = vmatpush1.msra.mxu0 0.0
    %330 = vmatprep.subr.mxu0 0.0
    %331 = vmatpush1.msra.mxu0 0.0
    %332 = vmatprep.subr.mxu0 0.0
    %333 = vmatpush1.msra.mxu0 0.0
    %334 = vmatprep.subr.mxu0 0.0
    %335 = vmatpush1.msra.mxu0 0.0
    %336 = vmatprep.subr.mxu0 0.0
    %337 = vmatpush1.msra.mxu0 0.0
    %338 = vmatprep.subr.mxu0 0.0
    %339 = vmatpush1.msra.mxu0 0.0
    %340 = vmatprep.subr.mxu0 0.0
    %341 = vmatpush1.msra.mxu0 0.0
    %342 = vmatprep.subr.mxu0 0.0
    %343 = vmatpush1.msra.mxu0 0.0
    %344 = vmatprep.subr.mxu0 0.0
    %345 = vmatpush1.msra.mxu0 0.0
    %346 = vmatprep.subr.mxu0 0.0
    %347 = vmatpush1.msra.mxu0 0.0
    %348 = vmatprep.subr.mxu0 0.0
    %349 = vmatpush1.msra.mxu0 0.0
    %350 = vmatprep.subr.mxu0 0.0
    %351 = vmatpush1.msra.mxu0 0.0
    %352 = vmatprep.subr.mxu0 0.0
    %353 = vmatpush1.msra.mxu0 0.0
    %354 = vmatprep.subr.mxu0 0.0
    %355 = vmatpush1.msra.mxu0 0.0
    %356 = vmatprep.subr.mxu0 0.0
    %357 = vmatpush1.msra.mxu0 0.0
    %358 = vmatprep.subr.mxu0 0.0
    %359 = vmatpush1.msra.mxu0 0.0
    %360 = vmatprep.subr.mxu0 0.0
    %361 = vmatpush1.msra.mxu0 0.0
    %362 = vmatprep.subr.mxu0 0.0
    %363 = vmatpush1.msra.mxu0 0.0
    %364 = vmatprep.subr.mxu0 0.0
    %365 = vmatpush1.msra.mxu0 0.0
    %366 = vmatprep.subr.mxu0 0.0
    %367 = vmatpush1.msra.mxu0 0.0
    %368 = vmatprep.subr.mxu0 0.0
    %369 = vmatpush1.msra.mxu0 0.0
    %370 = vmatprep.subr.mxu0 0.0
    %371 = vmatpush1.msra.mxu0 0.0
    %372 = vmatprep.mubr.f32.mxu0 0.0
    %v373 = vand.u32 %v109, 4294901760
    %v374 = vsub.f32 %v109, %v373
    %375 = vmatmul.mubr.f32.gmra.mrb[0].mxu0 %v374
    %v376 = vpop.f32.mrb[0].mxu0
    %v377 = vadd.f32 %v291, %v376
    %v378 = vpop.f32.mrb[0].mxu0
    %379 = vmatprep.mubr.f32.mxu0 0.0
    %v380 = vand.u32 %v112, 4294901760
    %v381 = vsub.f32 %v112, %v380
    %382 = vmatmul.mubr.f32.gmra.mrb[0].mxu0 %v381
    %v383 = vpop.f32.mrb[0].mxu0
    %v384 = vadd.f32 %v297, %v383
    %v385 = vpop.f32.mrb[0].mxu0
    %386 = vdwg.mxu0
    %387 = vmatprep.subr.mxu0 0.0
    %v388 = vand.u32 %v96, 4294901760
    %389 = vmatpush1.msra.mxu0 %v388
    %390 = vmatprep.subr.mxu0 0.0
    %v391 = vand.u32 %v97, 4294901760
    %392 = vmatpush1.msra.mxu0 %v391
    %393 = vmatprep.subr.mxu0 0.0
    %v394 = vand.u32 %v98, 4294901760
    %395 = vmatpush1.msra.mxu0 %v394
    %396 = vmatprep.subr.mxu0 0.0
    %v397 = vand.u32 %v99, 4294901760
    %398 = vmatpush1.msra.mxu0 %v397
    %399 = vmatprep.subr.mxu0 0.0
    %400 = vmatpush1.msra.mxu0 0.0
    %401 = vmatprep.subr.mxu0 0.0
    %402 = vmatpush1.msra.mxu0 0.0
    %403 = vmatprep.subr.mxu0 0.0
    %404 = vmatpush1.msra.mxu0 0.0
    %405 = vmatprep.subr.mxu0 0.0
    %406 = vmatpush1.msra.mxu0 0.0
    %407 = vmatprep.subr.mxu0 0.0
    %408 = vmatpush1.msra.mxu0 0.0
    %409 = vmatprep.subr.mxu0 0.0
    %410 = vmatpush1.msra.mxu0 0.0
    %411 = vmatprep.subr.mxu0 0.0
    %412 = vmatpush1.msra.mxu0 0.0
    %413 = vmatprep.subr.mxu0 0.0
    %414 = vmatpush1.msra.mxu0 0.0
    %415 = vmatprep.subr.mxu0 0.0
    %416 = vmatpush1.msra.mxu0 0.0
    %417 = vmatprep.subr.mxu0 0.0
    %418 = vmatpush1.msra.mxu0 0.0
    %419 = vmatprep.subr.mxu0 0.0
    %420 = vmatpush1.msra.mxu0 0.0
    %421 = vmatprep.subr.mxu0 0.0
    %422 = vmatpush1.msra.mxu0 0.0
    %423 = vmatprep.subr.mxu0 0.0
    %424 = vmatpush1.msra.mxu0 0.0
    %425 = vmatprep.subr.mxu0 0.0
    %426 = vmatpush1.msra.mxu0 0.0
    %427 = vmatprep.subr.mxu0 0.0
    %428 = vmatpush1.msra.mxu0 0.0
    %429 = vmatprep.subr.mxu0 0.0
    %430 = vmatpush1.msra.mxu0 0.0
    %431 = vmatprep.subr.mxu0 0.0
    %432 = vmatpush1.msra.mxu0 0.0
    %433 = vmatprep.subr.mxu0 0.0
    %434 = vmatpush1.msra.mxu0 0.0
    %435 = vmatprep.subr.mxu0 0.0
    %436 = vmatpush1.msra.mxu0 0.0
    %437 = vmatprep.subr.mxu0 0.0
    %438 = vmatpush1.msra.mxu0 0.0
    %439 = vmatprep.subr.mxu0 0.0
    %440 = vmatpush1.msra.mxu0 0.0
    %441 = vmatprep.subr.mxu0 0.0
    %442 = vmatpush1.msra.mxu0 0.0
    %443 = vmatprep.subr.mxu0 0.0
    %444 = vmatpush1.msra.mxu0 0.0
    %445 = vmatprep.subr.mxu0 0.0
    %446 = vmatpush1.msra.mxu0 0.0
    %447 = vmatprep.subr.mxu0 0.0
    %448 = vmatpush1.msra.mxu0 0.0
    %449 = vmatprep.subr.mxu0 0.0
    %450 = vmatpush1.msra.mxu0 0.0
    %451 = vmatprep.subr.mxu0 0.0
    %452 = vmatpush1.msra.mxu0 0.0
    %453 = vmatprep.subr.mxu0 0.0
    %454 = vmatpush1.msra.mxu0 0.0
    %455 = vmatprep.mubr.f32.mxu0 0.0
    %v456 = vand.u32 %v109, 4294901760
    %v457 = vsub.f32 %v109, %v456
    %v458 = vand.u32 %v457, 4294901760
    %459 = vmatmul.mubr.f32.gmra.mrb[0].mxu0 %v458
    %v460 = vpop.f32.mrb[0].mxu0
    %v461 = vadd.f32 %v377, %v460
    %v462 = vpop.f32.mrb[0].mxu0
    %463 = vmatprep.mubr.f32.mxu0 0.0
    %v464 = vand.u32 %v112, 4294901760
    %v465 = vsub.f32 %v112, %v464
    %v466 = vand.u32 %v465, 4294901760
    %467 = vmatmul.mubr.f32.gmra.mrb[0].mxu0 %v466
    %v468 = vpop.f32.mrb[0].mxu0
    %v469 = vadd.f32 %v384, %v468
    %v470 = vpop.f32.mrb[0].mxu0
    %471 = vdwg.mxu0
    %472 = vmatprep.subr.mxu0 0.0
    %v473 = vand.u32 %v96, 4294901760
    %v474 = vsub.f32 %v96, %v473
    %v475 = vand.u32 %v474, 4294901760
    %476 = vmatpush1.msra.mxu0 %v475
    %477 = vmatprep.subr.mxu0 0.0
    %v478 = vand.u32 %v97, 4294901760
    %v479 = vsub.f32 %v97, %v478
    %v480 = vand.u32 %v479, 4294901760
    %481 = vmatpush1.msra.mxu0 %v480
    %482 = vmatprep.subr.mxu0 0.0
    %v483 = vand.u32 %v98, 4294901760
    %v484 = vsub.f32 %v98, %v483
    %v485 = vand.u32 %v484, 4294901760
    %486 = vmatpush1.msra.mxu0 %v485
    %487 = vmatprep.subr.mxu0 0.0
    %v488 = vand.u32 %v99, 4294901760
    %v489 = vsub.f32 %v99, %v488
    %v490 = vand.u32 %v489, 4294901760
    %491 = vmatpush1.msra.mxu0 %v490
    %492 = vmatprep.subr.mxu0 0.0
    %493 = vmatpush1.msra.mxu0 0.0
    %494 = vmatprep.subr.mxu0 0.0
    %495 = vmatpush1.msra.mxu0 0.0
    %496 = vmatprep.subr.mxu0 0.0
    %497 = vmatpush1.msra.mxu0 0.0
    %498 = vmatprep.subr.mxu0 0.0
    %499 = vmatpush1.msra.mxu0 0.0
    %500 = vmatprep.subr.mxu0 0.0
    %501 = vmatpush1.msra.mxu0 0.0
    %502 = vmatprep.subr.mxu0 0.0
    %503 = vmatpush1.msra.mxu0 0.0
    %504 = vmatprep.subr.mxu0 0.0
    %505 = vmatpush1.msra.mxu0 0.0
    %506 = vmatprep.subr.mxu0 0.0
    %507 = vmatpush1.msra.mxu0 0.0
    %508 = vmatprep.subr.mxu0 0.0
    %509 = vmatpush1.msra.mxu0 0.0
    %510 = vmatprep.subr.mxu0 0.0
    %511 = vmatpush1.msra.mxu0 0.0
    %512 = vmatprep.subr.mxu0 0.0
    %513 = vmatpush1.msra.mxu0 0.0
    %514 = vmatprep.subr.mxu0 0.0
    %515 = vmatpush1.msra.mxu0 0.0
    %516 = vmatprep.subr.mxu0 0.0
    %517 = vmatpush1.msra.mxu0 0.0
    %518 = vmatprep.subr.mxu0 0.0
    %519 = vmatpush1.msra.mxu0 0.0
    %520 = vmatprep.subr.mxu0 0.0
    %521 = vmatpush1.msra.mxu0 0.0
    %522 = vmatprep.subr.mxu0 0.0
    %523 = vmatpush1.msra.mxu0 0.0
    %524 = vmatprep.subr.mxu0 0.0
    %525 = vmatpush1.msra.mxu0 0.0
    %526 = vmatprep.subr.mxu0 0.0
    %527 = vmatpush1.msra.mxu0 0.0
    %528 = vmatprep.subr.mxu0 0.0
    %529 = vmatpush1.msra.mxu0 0.0
    %530 = vmatprep.subr.mxu0 0.0
    %531 = vmatpush1.msra.mxu0 0.0
    %532 = vmatprep.subr.mxu0 0.0
    %533 = vmatpush1.msra.mxu0 0.0
    %534 = vmatprep.subr.mxu0 0.0
    %535 = vmatpush1.msra.mxu0 0.0
    %536 = vmatprep.subr.mxu0 0.0
    %537 = vmatpush1.msra.mxu0 0.0
    %538 = vmatprep.subr.mxu0 0.0
    %539 = vmatpush1.msra.mxu0 0.0
    %540 = vmatprep.subr.mxu0 0.0
    %541 = vmatpush1.msra.mxu0 0.0
    %542 = vmatprep.subr.mxu0 0.0
    %543 = vmatpush1.msra.mxu0 0.0
    %544 = vmatprep.subr.mxu0 0.0
    %545 = vmatpush1.msra.mxu0 0.0
    %546 = vmatprep.subr.mxu0 0.0
    %547 = vmatpush1.msra.mxu0 0.0
    %548 = vmatprep.mubr.f32.mxu0 0.0
    %v549 = vand.u32 %v109, 4294901760
    %550 = vmatmul.mubr.f32.gmra.mrb[0].mxu0 %v549
    %v551 = vpop.f32.mrb[0].mxu0
    %v552 = vadd.f32 %v461, %v551
    %v553 = vpop.f32.mrb[0].mxu0
    %554 = vmatprep.mubr.f32.mxu0 0.0
    %v555 = vand.u32 %v112, 4294901760
    %556 = vmatmul.mubr.f32.gmra.mrb[0].mxu0 %v555
    %v557 = vpop.f32.mrb[0].mxu0
    %v558 = vadd.f32 %v469, %v557
    %v559 = vpop.f32.mrb[0].mxu0
    %560 = vdwg.mxu0
    %561 = vmatprep.subr.mxu0 0.0
    %v562 = vand.u32 %v96, 4294901760
    %563 = vmatpush1.msra.mxu0 %v562
    %564 = vmatprep.subr.mxu0 0.0
    %v565 = vand.u32 %v97, 4294901760
    %566 = vmatpush1.msra.mxu0 %v565
    %567 = vmatprep.subr.mxu0 0.0
    %v568 = vand.u32 %v98, 4294901760
    %569 = vmatpush1.msra.mxu0 %v568
    %570 = vmatprep.subr.mxu0 0.0
    %v571 = vand.u32 %v99, 4294901760
    %572 = vmatpush1.msra.mxu0 %v571
    %573 = vmatprep.subr.mxu0 0.0
    %574 = vmatpush1.msra.mxu0 0.0
    %575 = vmatprep.subr.mxu0 0.0
    %576 = vmatpush1.msra.mxu0 0.0
    %577 = vmatprep.subr.mxu0 0.0
    %578 = vmatpush1.msra.mxu0 0.0
    %579 = vmatprep.subr.mxu0 0.0
    %580 = vmatpush1.msra.mxu0 0.0
    %581 = vmatprep.subr.mxu0 0.0
    %582 = vmatpush1.msra.mxu0 0.0
    %583 = vmatprep.subr.mxu0 0.0
    %584 = vmatpush1.msra.mxu0 0.0
    %585 = vmatprep.subr.mxu0 0.0
    %586 = vmatpush1.msra.mxu0 0.0
    %587 = vmatprep.subr.mxu0 0.0
    %588 = vmatpush1.msra.mxu0 0.0
    %589 = vmatprep.subr.mxu0 0.0
    %590 = vmatpush1.msra.mxu0 0.0
    %591 = vmatprep.subr.mxu0 0.0
    %592 = vmatpush1.msra.mxu0 0.0
    %593 = vmatprep.subr.mxu0 0.0
    %594 = vmatpush1.msra.mxu0 0.0
    %595 = vmatprep.subr.mxu0 0.0
    %596 = vmatpush1.msra.mxu0 0.0
    %597 = vmatprep.subr.mxu0 0.0
    %598 = vmatpush1.msra.mxu0 0.0
    %599 = vmatprep.subr.mxu0 0.0
    %600 = vmatpush1.msra.mxu0 0.0
    %601 = vmatprep.subr.mxu0 0.0
    %602 = vmatpush1.msra.mxu0 0.0
    %603 = vmatprep.subr.mxu0 0.0
    %604 = vmatpush1.msra.mxu0 0.0
    %605 = vmatprep.subr.mxu0 0.0
    %606 = vmatpush1.msra.mxu0 0.0
    %607 = vmatprep.subr.mxu0 0.0
    %608 = vmatpush1.msra.mxu0 0.0
    %609 = vmatprep.subr.mxu0 0.0
    %610 = vmatpush1.msra.mxu0 0.0
    %611 = vmatprep.subr.mxu0 0.0
    %612 = vmatpush1.msra.mxu0 0.0
    %613 = vmatprep.subr.mxu0 0.0
    %614 = vmatpush1.msra.mxu0 0.0
    %615 = vmatprep.subr.mxu0 0.0
    %616 = vmatpush1.msra.mxu0 0.0
    %617 = vmatprep.subr.mxu0 0.0
    %618 = vmatpush1.msra.mxu0 0.0
    %619 = vmatprep.subr.mxu0 0.0
    %620 = vmatpush1.msra.mxu0 0.0
    %621 = vmatprep.subr.mxu0 0.0
    %622 = vmatpush1.msra.mxu0 0.0
    %623 = vmatprep.subr.mxu0 0.0
    %624 = vmatpush1.msra.mxu0 0.0
    %625 = vmatprep.subr.mxu0 0.0
    %626 = vmatpush1.msra.mxu0 0.0
    %627 = vmatprep.subr.mxu0 0.0
    %628 = vmatpush1.msra.mxu0 0.0
    %629 = vmatprep.mubr.f32.mxu0 0.0
    %v630 = vand.u32 %v109, 4294901760
    %631 = vmatmul.mubr.f32.gmra.mrb[0].mxu0 %v630
    %v632 = vpop.f32.mrb[0].mxu0
    %v633 = vadd.f32 %v552, %v632
    %v634 = vpop.f32.mrb[0].mxu0
    %635 = vmatprep.mubr.f32.mxu0 0.0
    %v636 = vand.u32 %v112, 4294901760
    %637 = vmatmul.mubr.f32.gmra.mrb[0].mxu0 %v636
    %v638 = vpop.f32.mrb[0].mxu0
    %v639 = vadd.f32 %v558, %v638
    %v640 = vpop.f32.mrb[0].mxu0
    %641 = vdwg.mxu0
    %642 = vst [vmem:[#allocation3] sm:$0xff] %v633
    %643 = vst [vmem:[#allocation3 + $0x8] sm:$0xf] %v639
    %v644 = vld [vmem:[%s1] sm:$0x3]
    %v645 = vld [vmem:[%s2] sm:$0x3]
    %v646 = vld [vmem:[#allocation3] sm:$0x3]
    %v647 = vld [vmem:[%s5] sm:$0xff]
    %v648 = vld [vmem:[%s5 + $0x8] sm:$0xff]
    %v649 = vld [vmem:[%s5 + $0x10] sm:$0xff]
    %v650 = vld [vmem:[%s5 + $0x18] sm:$0xff]
    %v652 = vsel %vm107, %v644, 0
    %654 = vmatprep.subr.mxu0 0.0
    %v655 = vand.u32 %v647, 4294901760
    %656 = vmatpush1.msra.mxu0 %v655
    %657 = vmatprep.subr.mxu0 0.0
    %v658 = vand.u32 %v648, 4294901760
    %659 = vmatpush1.msra.mxu0 %v658
    %660 = vmatprep.subr.mxu0 0.0
    %v661 = vand.u32 %v649, 4294901760
    %662 = vmatpush1.msra.mxu0 %v661
    %663 = vmatprep.subr.mxu0 0.0
    %v664 = vand.u32 %v650, 4294901760
    %665 = vmatpush1.msra.mxu0 %v664
    %666 = vmatprep.subr.mxu0 0.0
    %667 = vmatpush1.msra.mxu0 0.0
    %668 = vmatprep.subr.mxu0 0.0
    %669 = vmatpush1.msra.mxu0 0.0
    %670 = vmatprep.subr.mxu0 0.0
    %671 = vmatpush1.msra.mxu0 0.0
    %672 = vmatprep.subr.mxu0 0.0
    %673 = vmatpush1.msra.mxu0 0.0
    %674 = vmatprep.subr.mxu0 0.0
    %675 = vmatpush1.msra.mxu0 0.0
    %676 = vmatprep.subr.mxu0 0.0
    %677 = vmatpush1.msra.mxu0 0.0
    %678 = vmatprep.subr.mxu0 0.0
    %679 = vmatpush1.msra.mxu0 0.0
    %680 = vmatprep.subr.mxu0 0.0
    %681 = vmatpush1.msra.mxu0 0.0
    %682 = vmatprep.subr.mxu0 0.0
    %683 = vmatpush1.msra.mxu0 0.0
    %684 = vmatprep.subr.mxu0 0.0
    %685 = vmatpush1.msra.mxu0 0.0
    %686 = vmatprep.subr.mxu0 0.0
    %687 = vmatpush1.msra.mxu0 0.0
    %688 = vmatprep.subr.mxu0 0.0
    %689 = vmatpush1.msra.mxu0 0.0
    %690 = vmatprep.subr.mxu0 0.0
    %691 = vmatpush1.msra.mxu0 0.0
    %692 = vmatprep.subr.mxu0 0.0
    %693 = vmatpush1.msra.mxu0 0.0
    %694 = vmatprep.subr.mxu0 0.0
    %695 = vmatpush1.msra.mxu0 0.0
    %696 = vmatprep.subr.mxu0 0.0
    %697 = vmatpush1.msra.mxu0 0.0
    %698 = vmatprep.subr.mxu0 0.0
    %699 = vmatpush1.msra.mxu0 0.0
    %700 = vmatprep.subr.mxu0 0.0
    %701 = vmatpush1.msra.mxu0 0.0
    %702 = vmatprep.subr.mxu0 0.0
    %703 = vmatpush1.msra.mxu0 0.0
    %704 = vmatprep.subr.mxu0 0.0
    %705 = vmatpush1.msra.mxu0 0.0
    %706 = vmatprep.subr.mxu0 0.0
    %707 = vmatpush1.msra.mxu0 0.0
    %708 = vmatprep.subr.mxu0 0.0
    %709 = vmatpush1.msra.mxu0 0.0
    %710 = vmatprep.subr.mxu0 0.0
    %711 = vmatpush1.msra.mxu0 0.0
    %712 = vmatprep.subr.mxu0 0.0
    %713 = vmatpush1.msra.mxu0 0.0
    %714 = vmatprep.subr.mxu0 0.0
    %715 = vmatpush1.msra.mxu0 0.0
    %716 = vmatprep.subr.mxu0 0.0
    %717 = vmatpush1.msra.mxu0 0.0
    %718 = vmatprep.subr.mxu0 0.0
    %719 = vmatpush1.msra.mxu0 0.0
    %720 = vmatprep.subr.mxu0 0.0
    %721 = vmatpush1.msra.mxu0 0.0
    %722 = vmatprep.mubr.f32.mxu0 0.0
    %v723 = vand.u32 %v652, 4294901760
    %v724 = vsub.f32 %v652, %v723
    %v725 = vand.u32 %v724, 4294901760
    %v726 = vsub.f32 %v724, %v725
    %v727 = vand.u32 %v726, 4294901760
    %728 = vmatmul.mubr.f32.gmra.mrb[0].mxu0 %v727
    %v729 = vpop.f32.mrb[0].mxu0
    %v730 = vadd.f32 0.0, %v729
    %v731 = vpop.f32.mrb[0].mxu0
    %732 = vdwg.mxu0
    %733 = vmatprep.subr.mxu0 0.0
    %v734 = vand.u32 %v647, 4294901760
    %v735 = vsub.f32 %v647, %v734
    %v736 = vand.u32 %v735, 4294901760
    %v737 = vsub.f32 %v735, %v736
    %v738 = vand.u32 %v737, 4294901760
    %739 = vmatpush1.msra.mxu0 %v738
    %740 = vmatprep.subr.mxu0 0.0
    %v741 = vand.u32 %v648, 4294901760
    %v742 = vsub.f32 %v648, %v741
    %v743 = vand.u32 %v742, 4294901760
    %v744 = vsub.f32 %v742, %v743
    %v745 = vand.u32 %v744, 4294901760
    %746 = vmatpush1.msra.mxu0 %v745
    %747 = vmatprep.subr.mxu0 0.0
    %v748 = vand.u32 %v649, 4294901760
    %v749 = vsub.f32 %v649, %v748
    %v750 = vand.u32 %v749, 4294901760
    %v751 = vsub.f32 %v749, %v750
    %v752 = vand.u32 %v751, 4294901760
    %753 = vmatpush1.msra.mxu0 %v752
    %754 = vmatprep.subr.mxu0 0.0
    %v755 = vand.u32 %v650, 4294901760
    %v756 = vsub.f32 %v650, %v755
    %v757 = vand.u32 %v756, 4294901760
    %v758 = vsub.f32 %v756, %v757
    %v759 = vand.u32 %v758, 4294901760
    %760 = vmatpush1.msra.mxu0 %v759
    %761 = vmatprep.subr.mxu0 0.0
    %762 = vmatpush1.msra.mxu0 0.0
    %763 = vmatprep.subr.mxu0 0.0
    %764 = vmatpush1.msra.mxu0 0.0
    %765 = vmatprep.subr.mxu0 0.0
    %766 = vmatpush1.msra.mxu0 0.0
    %767 = vmatprep.subr.mxu0 0.0
    %768 = vmatpush1.msra.mxu0 0.0
    %769 = vmatprep.subr.mxu0 0.0
    %770 = vmatpush1.msra.mxu0 0.0
    %771 = vmatprep.subr.mxu0 0.0
    %772 = vmatpush1.msra.mxu0 0.0
    %773 = vmatprep.subr.mxu0 0.0
    %774 = vmatpush1.msra.mxu0 0.0
    %775 = vmatprep.subr.mxu0 0.0
    %776 = vmatpush1.msra.mxu0 0.0
    %777 = vmatprep.subr.mxu0 0.0
    %778 = vmatpush1.msra.mxu0 0.0
    %779 = vmatprep.subr.mxu0 0.0
    %780 = vmatpush1.msra.mxu0 0.0
    %781 = vmatprep.subr.mxu0 0.0
    %782 = vmatpush1.msra.mxu0 0.0
    %783 = vmatprep.subr.mxu0 0.0
    %784 = vmatpush1.msra.mxu0 0.0
    %785 = vmatprep.subr.mxu0 0.0
    %786 = vmatpush1.msra.mxu0 0.0
    %787 = vmatprep.subr.mxu0 0.0
    %788 = vmatpush1.msra.mxu0 0.0
    %789 = vmatprep.subr.mxu0 0.0
    %790 = vmatpush1.msra.mxu0 0.0
    %791 = vmatprep.subr.mxu0 0.0
    %792 = vmatpush1.msra.mxu0 0.0
    %793 = vmatprep.subr.mxu0 0.0
    %794 = vmatpush1.msra.mxu0 0.0
    %795 = vmatprep.subr.mxu0 0.0
    %796 = vmatpush1.msra.mxu0 0.0
    %797 = vmatprep.subr.mxu0 0.0
    %798 = vmatpush1.msra.mxu0 0.0
    %799 = vmatprep.subr.mxu0 0.0
    %800 = vmatpush1.msra.mxu0 0.0
    %801 = vmatprep.subr.mxu0 0.0
    %802 = vmatpush1.msra.mxu0 0.0
    %803 = vmatprep.subr.mxu0 0.0
    %804 = vmatpush1.msra.mxu0 0.0
    %805 = vmatprep.subr.mxu0 0.0
    %806 = vmatpush1.msra.mxu0 0.0
    %807 = vmatprep.subr.mxu0 0.0
    %808 = vmatpush1.msra.mxu0 0.0
    %809 = vmatprep.subr.mxu0 0.0
    %810 = vmatpush1.msra.mxu0 0.0
    %811 = vmatprep.subr.mxu0 0.0
    %812 = vmatpush1.msra.mxu0 0.0
    %813 = vmatprep.subr.mxu0 0.0
    %814 = vmatpush1.msra.mxu0 0.0
    %815 = vmatprep.subr.mxu0 0.0
    %816 = vmatpush1.msra.mxu0 0.0
    %817 = vmatprep.mubr.f32.mxu0 0.0
    %v818 = vand.u32 %v652, 4294901760
    %819 = vmatmul.mubr.f32.gmra.mrb[0].mxu0 %v818
    %v820 = vpop.f32.mrb[0].mxu0
    %v821 = vadd.f32 %v730, %v820
    %v822 = vpop.f32.mrb[0].mxu0
    %823 = vdwg.mxu0
    %824 = vmatprep.subr.mxu0 0.0
    %v825 = vand.u32 %v647, 4294901760
    %v826 = vsub.f32 %v647, %v825
    %827 = vmatpush1.msra.mxu0 %v826
    %828 = vmatprep.subr.mxu0 0.0
    %v829 = vand.u32 %v648, 4294901760
    %v830 = vsub.f32 %v648, %v829
    %831 = vmatpush1.msra.mxu0 %v830
    %832 = vmatprep.subr.mxu0 0.0
    %v833 = vand.u32 %v649, 4294901760
    %v834 = vsub.f32 %v649, %v833
    %835 = vmatpush1.msra.mxu0 %v834
    %836 = vmatprep.subr.mxu0 0.0
    %v837 = vand.u32 %v650, 4294901760
    %v838 = vsub.f32 %v650, %v837
    %839 = vmatpush1.msra.mxu0 %v838
    %840 = vmatprep.subr.mxu0 0.0
    %841 = vmatpush1.msra.mxu0 0.0
    %842 = vmatprep.subr.mxu0 0.0
    %843 = vmatpush1.msra.mxu0 0.0
    %844 = vmatprep.subr.mxu0 0.0
    %845 = vmatpush1.msra.mxu0 0.0
    %846 = vmatprep.subr.mxu0 0.0
    %847 = vmatpush1.msra.mxu0 0.0
    %848 = vmatprep.subr.mxu0 0.0
    %849 = vmatpush1.msra.mxu0 0.0
    %850 = vmatprep.subr.mxu0 0.0
    %851 = vmatpush1.msra.mxu0 0.0
    %852 = vmatprep.subr.mxu0 0.0
    %853 = vmatpush1.msra.mxu0 0.0
    %854 = vmatprep.subr.mxu0 0.0
    %855 = vmatpush1.msra.mxu0 0.0
    %856 = vmatprep.subr.mxu0 0.0
    %857 = vmatpush1.msra.mxu0 0.0
    %858 = vmatprep.subr.mxu0 0.0
    %859 = vmatpush1.msra.mxu0 0.0
    %860 = vmatprep.subr.mxu0 0.0
    %861 = vmatpush1.msra.mxu0 0.0
    %862 = vmatprep.subr.mxu0 0.0
    %863 = vmatpush1.msra.mxu0 0.0
    %864 = vmatprep.subr.mxu0 0.0
    %865 = vmatpush1.msra.mxu0 0.0
    %866 = vmatprep.subr.mxu0 0.0
    %867 = vmatpush1.msra.mxu0 0.0
    %868 = vmatprep.subr.mxu0 0.0
    %869 = vmatpush1.msra.mxu0 0.0
    %870 = vmatprep.subr.mxu0 0.0
    %871 = vmatpush1.msra.mxu0 0.0
    %872 = vmatprep.subr.mxu0 0.0
    %873 = vmatpush1.msra.mxu0 0.0
    %874 = vmatprep.subr.mxu0 0.0
    %875 = vmatpush1.msra.mxu0 0.0
    %876 = vmatprep.subr.mxu0 0.0
    %877 = vmatpush1.msra.mxu0 0.0
    %878 = vmatprep.subr.mxu0 0.0
    %879 = vmatpush1.msra.mxu0 0.0
    %880 = vmatprep.subr.mxu0 0.0
    %881 = vmatpush1.msra.mxu0 0.0
    %882 = vmatprep.subr.mxu0 0.0
    %883 = vmatpush1.msra.mxu0 0.0
    %884 = vmatprep.subr.mxu0 0.0
    %885 = vmatpush1.msra.mxu0 0.0
    %886 = vmatprep.subr.mxu0 0.0
    %887 = vmatpush1.msra.mxu0 0.0
    %888 = vmatprep.subr.mxu0 0.0
    %889 = vmatpush1.msra.mxu0 0.0
    %890 = vmatprep.subr.mxu0 0.0
    %891 = vmatpush1.msra.mxu0 0.0
    %892 = vmatprep.subr.mxu0 0.0
    %893 = vmatpush1.msra.mxu0 0.0
    %894 = vmatprep.subr.mxu0 0.0
    %895 = vmatpush1.msra.mxu0 0.0
    %896 = vmatprep.mubr.f32.mxu0 0.0
    %v897 = vand.u32 %v652, 4294901760
    %v898 = vsub.f32 %v652, %v897
    %899 = vmatmul.mubr.f32.gmra.mrb[0].mxu0 %v898
    %v900 = vpop.f32.mrb[0].mxu0
    %v901 = vadd.f32 %v821, %v900
    %v902 = vpop.f32.mrb[0].mxu0
    %903 = vdwg.mxu0
    %904 = vmatprep.subr.mxu0 0.0
    %v905 = vand.u32 %v647, 4294901760
    %906 = vmatpush1.msra.mxu0 %v905
    %907 = vmatprep.subr.mxu0 0.0
    %v908 = vand.u32 %v648, 4294901760
    %909 = vmatpush1.msra.mxu0 %v908
    %910 = vmatprep.subr.mxu0 0.0
    %v911 = vand.u32 %v649, 4294901760
    %912 = vmatpush1.msra.mxu0 %v911
    %913 = vmatprep.subr.mxu0 0.0
    %v914 = vand.u32 %v650, 4294901760
    %915 = vmatpush1.msra.mxu0 %v914
    %916 = vmatprep.subr.mxu0 0.0
    %917 = vmatpush1.msra.mxu0 0.0
    %918 = vmatprep.subr.mxu0 0.0
    %919 = vmatpush1.msra.mxu0 0.0
    %920 = vmatprep.subr.mxu0 0.0
    %921 = vmatpush1.msra.mxu0 0.0
    %922 = vmatprep.subr.mxu0 0.0
    %923 = vmatpush1.msra.mxu0 0.0
    %924 = vmatprep.subr.mxu0 0.0
    %925 = vmatpush1.msra.mxu0 0.0
    %926 = vmatprep.subr.mxu0 0.0
    %927 = vmatpush1.msra.mxu0 0.0
    %928 = vmatprep.subr.mxu0 0.0
    %929 = vmatpush1.msra.mxu0 0.0
    %930 = vmatprep.subr.mxu0 0.0
    %931 = vmatpush1.msra.mxu0 0.0
    %932 = vmatprep.subr.mxu0 0.0
    %933 = vmatpush1.msra.mxu0 0.0
    %934 = vmatprep.subr.mxu0 0.0
    %935 = vmatpush1.msra.mxu0 0.0
    %936 = vmatprep.subr.mxu0 0.0
    %937 = vmatpush1.msra.mxu0 0.0
    %938 = vmatprep.subr.mxu0 0.0
    %939 = vmatpush1.msra.mxu0 0.0
    %940 = vmatprep.subr.mxu0 0.0
    %941 = vmatpush1.msra.mxu0 0.0
    %942 = vmatprep.subr.mxu0 0.0
    %943 = vmatpush1.msra.mxu0 0.0
    %944 = vmatprep.subr.mxu0 0.0
    %945 = vmatpush1.msra.mxu0 0.0
    %946 = vmatprep.subr.mxu0 0.0
    %947 = vmatpush1.msra.mxu0 0.0
    %948 = vmatprep.subr.mxu0 0.0
    %949 = vmatpush1.msra.mxu0 0.0
    %950 = vmatprep.subr.mxu0 0.0
    %951 = vmatpush1.msra.mxu0 0.0
    %952 = vmatprep.subr.mxu0 0.0
    %953 = vmatpush1.msra.mxu0 0.0
    %954 = vmatprep.subr.mxu0 0.0
    %955 = vmatpush1.msra.mxu0 0.0
    %956 = vmatprep.subr.mxu0 0.0
    %957 = vmatpush1.msra.mxu0 0.0
    %958 = vmatprep.subr.mxu0 0.0
    %959 = vmatpush1.msra.mxu0 0.0
    %960 = vmatprep.subr.mxu0 0.0
    %961 = vmatpush1.msra.mxu0 0.0
    %962 = vmatprep.subr.mxu0 0.0
    %963 = vmatpush1.msra.mxu0 0.0
    %964 = vmatprep.subr.mxu0 0.0
    %965 = vmatpush1.msra.mxu0 0.0
    %966 = vmatprep.subr.mxu0 0.0
    %967 = vmatpush1.msra.mxu0 0.0
    %968 = vmatprep.subr.mxu0 0.0
    %969 = vmatpush1.msra.mxu0 0.0
    %970 = vmatprep.subr.mxu0 0.0
    %971 = vmatpush1.msra.mxu0 0.0
    %972 = vmatprep.mubr.f32.mxu0 0.0
    %v973 = vand.u32 %v652, 4294901760
    %v974 = vsub.f32 %v652, %v973
    %v975 = vand.u32 %v974, 4294901760
    %976 = vmatmul.mubr.f32.gmra.mrb[0].mxu0 %v975
    %v977 = vpop.f32.mrb[0].mxu0
    %v978 = vadd.f32 %v901, %v977
    %v979 = vpop.f32.mrb[0].mxu0
    %980 = vdwg.mxu0
    %981 = vmatprep.subr.mxu0 0.0
    %v982 = vand.u32 %v647, 4294901760
    %v983 = vsub.f32 %v647, %v982
    %v984 = vand.u32 %v983, 4294901760
    %985 = vmatpush1.msra.mxu0 %v984
    %986 = vmatprep.subr.mxu0 0.0
    %v987 = vand.u32 %v648, 4294901760
    %v988 = vsub.f32 %v648, %v987
    %v989 = vand.u32 %v988, 4294901760
    %990 = vmatpush1.msra.mxu0 %v989
    %991 = vmatprep.subr.mxu0 0.0
    %v992 = vand.u32 %v649, 4294901760
    %v993 = vsub.f32 %v649, %v992
    %v994 = vand.u32 %v993, 4294901760
    %995 = vmatpush1.msra.mxu0 %v994
    %996 = vmatprep.subr.mxu0 0.0
    %v997 = vand.u32 %v650, 4294901760
    %v998 = vsub.f32 %v650, %v997
    %v999 = vand.u32 %v998, 4294901760
    %1000 = vmatpush1.msra.mxu0 %v999
    %1001 = vmatprep.subr.mxu0 0.0
    %1002 = vmatpush1.msra.mxu0 0.0
    %1003 = vmatprep.subr.mxu0 0.0
    %1004 = vmatpush1.msra.mxu0 0.0
    %1005 = vmatprep.subr.mxu0 0.0
    %1006 = vmatpush1.msra.mxu0 0.0
    %1007 = vmatprep.subr.mxu0 0.0
    %1008 = vmatpush1.msra.mxu0 0.0
    %1009 = vmatprep.subr.mxu0 0.0
    %1010 = vmatpush1.msra.mxu0 0.0
    %1011 = vmatprep.subr.mxu0 0.0
    %1012 = vmatpush1.msra.mxu0 0.0
    %1013 = vmatprep.subr.mxu0 0.0
    %1014 = vmatpush1.msra.mxu0 0.0
    %1015 = vmatprep.subr.mxu0 0.0
    %1016 = vmatpush1.msra.mxu0 0.0
    %1017 = vmatprep.subr.mxu0 0.0
    %1018 = vmatpush1.msra.mxu0 0.0
    %1019 = vmatprep.subr.mxu0 0.0
    %1020 = vmatpush1.msra.mxu0 0.0
    %1021 = vmatprep.subr.mxu0 0.0
    %1022 = vmatpush1.msra.mxu0 0.0
    %1023 = vmatprep.subr.mxu0 0.0
    %1024 = vmatpush1.msra.mxu0 0.0
    %1025 = vmatprep.subr.mxu0 0.0
    %1026 = vmatpush1.msra.mxu0 0.0
    %1027 = vmatprep.subr.mxu0 0.0
    %1028 = vmatpush1.msra.mxu0 0.0
    %1029 = vmatprep.subr.mxu0 0.0
    %1030 = vmatpush1.msra.mxu0 0.0
    %1031 = vmatprep.subr.mxu0 0.0
    %1032 = vmatpush1.msra.mxu0 0.0
    %1033 = vmatprep.subr.mxu0 0.0
    %1034 = vmatpush1.msra.mxu0 0.0
    %1035 = vmatprep.subr.mxu0 0.0
    %1036 = vmatpush1.msra.mxu0 0.0
    %1037 = vmatprep.subr.mxu0 0.0
    %1038 = vmatpush1.msra.mxu0 0.0
    %1039 = vmatprep.subr.mxu0 0.0
    %1040 = vmatpush1.msra.mxu0 0.0
    %1041 = vmatprep.subr.mxu0 0.0
    %1042 = vmatpush1.msra.mxu0 0.0
    %1043 = vmatprep.subr.mxu0 0.0
    %1044 = vmatpush1.msra.mxu0 0.0
    %1045 = vmatprep.subr.mxu0 0.0
    %1046 = vmatpush1.msra.mxu0 0.0
    %1047 = vmatprep.subr.mxu0 0.0
    %1048 = vmatpush1.msra.mxu0 0.0
    %1049 = vmatprep.subr.mxu0 0.0
    %1050 = vmatpush1.msra.mxu0 0.0
    %1051 = vmatprep.subr.mxu0 0.0
    %1052 = vmatpush1.msra.mxu0 0.0
    %1053 = vmatprep.subr.mxu0 0.0
    %1054 = vmatpush1.msra.mxu0 0.0
    %1055 = vmatprep.subr.mxu0 0.0
    %1056 = vmatpush1.msra.mxu0 0.0
    %1057 = vmatprep.mubr.f32.mxu0 0.0
    %v1058 = vand.u32 %v652, 4294901760
    %1059 = vmatmul.mubr.f32.gmra.mrb[0].mxu0 %v1058
    %v1060 = vpop.f32.mrb[0].mxu0
    %v1061 = vadd.f32 %v978, %v1060
    %v1062 = vpop.f32.mrb[0].mxu0
    %1063 = vdwg.mxu0
    %1064 = vmatprep.subr.mxu0 0.0
    %v1065 = vand.u32 %v647, 4294901760
    %1066 = vmatpush1.msra.mxu0 %v1065
    %1067 = vmatprep.subr.mxu0 0.0
    %v1068 = vand.u32 %v648, 4294901760
    %1069 = vmatpush1.msra.mxu0 %v1068
    %1070 = vmatprep.subr.mxu0 0.0
    %v1071 = vand.u32 %v649, 4294901760
    %1072 = vmatpush1.msra.mxu0 %v1071
    %1073 = vmatprep.subr.mxu0 0.0
    %v1074 = vand.u32 %v650, 4294901760
    %1075 = vmatpush1.msra.mxu0 %v1074
    %1076 = vmatprep.subr.mxu0 0.0
    %1077 = vmatpush1.msra.mxu0 0.0
    %1078 = vmatprep.subr.mxu0 0.0
    %1079 = vmatpush1.msra.mxu0 0.0
    %1080 = vmatprep.subr.mxu0 0.0
    %1081 = vmatpush1.msra.mxu0 0.0
    %1082 = vmatprep.subr.mxu0 0.0
    %1083 = vmatpush1.msra.mxu0 0.0
    %1084 = vmatprep.subr.mxu0 0.0
    %1085 = vmatpush1.msra.mxu0 0.0
    %1086 = vmatprep.subr.mxu0 0.0
    %1087 = vmatpush1.msra.mxu0 0.0
    %1088 = vmatprep.subr.mxu0 0.0
    %1089 = vmatpush1.msra.mxu0 0.0
    %1090 = vmatprep.subr.mxu0 0.0
    %1091 = vmatpush1.msra.mxu0 0.0
    %1092 = vmatprep.subr.mxu0 0.0
    %1093 = vmatpush1.msra.mxu0 0.0
    %1094 = vmatprep.subr.mxu0 0.0
    %1095 = vmatpush1.msra.mxu0 0.0
    %1096 = vmatprep.subr.mxu0 0.0
    %1097 = vmatpush1.msra.mxu0 0.0
    %1098 = vmatprep.subr.mxu0 0.0
    %1099 = vmatpush1.msra.mxu0 0.0
    %1100 = vmatprep.subr.mxu0 0.0
    %1101 = vmatpush1.msra.mxu0 0.0
    %1102 = vmatprep.subr.mxu0 0.0
    %1103 = vmatpush1.msra.mxu0 0.0
    %1104 = vmatprep.subr.mxu0 0.0
    %1105 = vmatpush1.msra.mxu0 0.0
    %1106 = vmatprep.subr.mxu0 0.0
    %1107 = vmatpush1.msra.mxu0 0.0
    %1108 = vmatprep.subr.mxu0 0.0
    %1109 = vmatpush1.msra.mxu0 0.0
    %1110 = vmatprep.subr.mxu0 0.0
    %1111 = vmatpush1.msra.mxu0 0.0
    %1112 = vmatprep.subr.mxu0 0.0
    %1113 = vmatpush1.msra.mxu0 0.0
    %1114 = vmatprep.subr.mxu0 0.0
    %1115 = vmatpush1.msra.mxu0 0.0
    %1116 = vmatprep.subr.mxu0 0.0
    %1117 = vmatpush1.msra.mxu0 0.0
    %1118 = vmatprep.subr.mxu0 0.0
    %1119 = vmatpush1.msra.mxu0 0.0
    %1120 = vmatprep.subr.mxu0 0.0
    %1121 = vmatpush1.msra.mxu0 0.0
    %1122 = vmatprep.subr.mxu0 0.0
    %1123 = vmatpush1.msra.mxu0 0.0
    %1124 = vmatprep.subr.mxu0 0.0
    %1125 = vmatpush1.msra.mxu0 0.0
    %1126 = vmatprep.subr.mxu0 0.0
    %1127 = vmatpush1.msra.mxu0 0.0
    %1128 = vmatprep.subr.mxu0 0.0
    %1129 = vmatpush1.msra.mxu0 0.0
    %1130 = vmatprep.subr.mxu0 0.0
    %1131 = vmatpush1.msra.mxu0 0.0
    %1132 = vmatprep.mubr.f32.mxu0 0.0
    %v1133 = vand.u32 %v652, 4294901760
    %1134 = vmatmul.mubr.f32.gmra.mrb[0].mxu0 %v1133
    %v1135 = vpop.f32.mrb[0].mxu0
    %v1136 = vadd.f32 %v1061, %v1135
    %v1137 = vpop.f32.mrb[0].mxu0
    %1138 = vdwg.mxu0
    %v1139 = vadd.f32 %v646, %v1136
    %v1140 = vxor.u32 %v1139, 2147483648
    %v1141 = vmul.f32 %v1140, 1.442695
    %v1142 = vpow.pop %v1141
    %v1143 = vadd.f32 %v1142, 1.0
    %v1144 = vrcp.pop %v1143
    %v1145 = vmul.f32 1.0, %v1144
    %v1146 = vtanh.pop %v1139
    %1148 = vrot.lane.b32.xlu0 %v645, 32
    %v1149 = vpop.permute.xlu0 %1148
    %v1151 = vmul.f32 %v1145, %v1149
    %1153 = vrot.lane.b32.xlu0 %v1146, 64
    %v1154 = vpop.permute.xlu0 %1153
    %v1156 = vmul.f32 %v1145, %v1154
    %1158 = vrot.lane.b32.xlu0 %v1156, 32
    %v1159 = vpop.permute.xlu0 %1158
    %v1161 = vadd.f32 %v1151, %v1159
    %v1162 = vtanh.pop %v1161
    %1164 = vrot.lane.b32.xlu0 %v1162, 64
    %v1165 = vpop.permute.xlu0 %1164
    %v1167 = vmul.f32 %v1145, %v1165
    %1169 = vrot.lane.b32.xlu0 %v1167, 32
    %v1170 = vpop.permute.xlu0 %1169
    %vm1172 = vcmask 254976
    %1173 = vst.msk [vmem:[#allocation4] sm:$0x3] %vm1172, %v1170
    %v1174 = vld [vmem:[#allocation3 + $0x2] sm:$0x3]
    %v1175 = vld [vmem:[%s5] sm:$0xff]
    %v1176 = vld [vmem:[%s5 + $0x8] sm:$0xff]
    %v1177 = vld [vmem:[%s5 + $0x10] sm:$0xff]
    %v1178 = vld [vmem:[%s5 + $0x18] sm:$0xff]
    %v1179 = vsel %vm107, %v1170, 0
    %1181 = vmatprep.subr.mxu0 0.0
    %v1182 = vand.u32 %v1175, 4294901760
    %1183 = vmatpush1.msra.mxu0 %v1182
    %1184 = vmatprep.subr.mxu0 0.0
    %v1185 = vand.u32 %v1176, 4294901760
    %1186 = vmatpush1.msra.mxu0 %v1185
    %1187 = vmatprep.subr.mxu0 0.0
    %v1188 = vand.u32 %v1177, 4294901760
    %1189 = vmatpush1.msra.mxu0 %v1188
    %1190 = vmatprep.subr.mxu0 0.0
    %v1191 = vand.u32 %v1178, 4294901760
    %1192 = vmatpush1.msra.mxu0 %v1191
    %1193 = vmatprep.subr.mxu0 0.0
    %1194 = vmatpush1.msra.mxu0 0.0
    %1195 = vmatprep.subr.mxu0 0.0
    %1196 = vmatpush1.msra.mxu0 0.0
    %1197 = vmatprep.subr.mxu0 0.0
    %1198 = vmatpush1.msra.mxu0 0.0
    %1199 = vmatprep.subr.mxu0 0.0
    %1200 = vmatpush1.msra.mxu0 0.0
    %1201 = vmatprep.subr.mxu0 0.0
    %1202 = vmatpush1.msra.mxu0 0.0
    %1203 = vmatprep.subr.mxu0 0.0
    %1204 = vmatpush1.msra.mxu0 0.0
    %1205 = vmatprep.subr.mxu0 0.0
    %1206 = vmatpush1.msra.mxu0 0.0
    %1207 = vmatprep.subr.mxu0 0.0
    %1208 = vmatpush1.msra.mxu0 0.0
    %1209 = vmatprep.subr.mxu0 0.0
    %1210 = vmatpush1.msra.mxu0 0.0
    %1211 = vmatprep.subr.mxu0 0.0
    %1212 = vmatpush1.msra.mxu0 0.0
    %1213 = vmatprep.subr.mxu0 0.0
    %1214 = vmatpush1.msra.mxu0 0.0
    %1215 = vmatprep.subr.mxu0 0.0
    %1216 = vmatpush1.msra.mxu0 0.0
    %1217 = vmatprep.subr.mxu0 0.0
    %1218 = vmatpush1.msra.mxu0 0.0
    %1219 = vmatprep.subr.mxu0 0.0
    %1220 = vmatpush1.msra.mxu0 0.0
    %1221 = vmatprep.subr.mxu0 0.0
    %1222 = vmatpush1.msra.mxu0 0.0
    %1223 = vmatprep.subr.mxu0 0.0
    %1224 = vmatpush1.msra.mxu0 0.0
    %1225 = vmatprep.subr.mxu0 0.0
    %1226 = vmatpush1.msra.mxu0 0.0
    %1227 = vmatprep.subr.mxu0 0.0
    %1228 = vmatpush1.msra.mxu0 0.0
    %1229 = vmatprep.subr.mxu0 0.0
    %1230 = vmatpush1.msra.mxu0 0.0
    %1231 = vmatprep.subr.mxu0 0.0
    %1232 = vmatpush1.msra.mxu0 0.0
    %1233 = vmatprep.subr.mxu0 0.0
    %1234 = vmatpush1.msra.mxu0 0.0
    %1235 = vmatprep.subr.mxu0 0.0
    %1236 = vmatpush1.msra.mxu0 0.0
    %1237 = vmatprep.subr.mxu0 0.0
    %1238 = vmatpush1.msra.mxu0 0.0
    %1239 = vmatprep.subr.mxu0 0.0
    %1240 = vmatpush1.msra.mxu0 0.0
    %1241 = vmatprep.subr.mxu0 0.0
    %1242 = vmatpush1.msra.mxu0 0.0
    %1243 = vmatprep.subr.mxu0 0.0
    %1244 = vmatpush1.msra.mxu0 0.0
    %1245 = vmatprep.subr.mxu0 0.0
    %1246 = vmatpush1.msra.mxu0 0.0
    %1247 = vmatprep.subr.mxu0 0.0
    %1248 = vmatpush1.msra.mxu0 0.0
    %1249 = vmatprep.mubr.f32.mxu0 0.0
    %v1250 = vand.u32 %v1179, 4294901760
    %v1251 = vsub.f32 %v1179, %v1250
    %v1252 = vand.u32 %v1251, 4294901760
    %v1253 = vsub.f32 %v1251, %v1252
    %v1254 = vand.u32 %v1253, 4294901760
    %1255 = vmatmul.mubr.f32.gmra.mrb[0].mxu0 %v1254
    %v1256 = vpop.f32.mrb[0].mxu0
    %v1257 = vadd.f32 0.0, %v1256
    %v1258 = vpop.f32.mrb[0].mxu0
    %1259 = vdwg.mxu0
    %1260 = vmatprep.subr.mxu0 0.0
    %v1261 = vand.u32 %v1175, 4294901760
    %v1262 = vsub.f32 %v1175, %v1261
    %v1263 = vand.u32 %v1262, 4294901760
    %v1264 = vsub.f32 %v1262, %v1263
    %v1265 = vand.u32 %v1264, 4294901760
    %1266 = vmatpush1.msra.mxu0 %v1265
    %1267 = vmatprep.subr.mxu0 0.0
    %v1268 = vand.u32 %v1176, 4294901760
    %v1269 = vsub.f32 %v1176, %v1268
    %v1270 = vand.u32 %v1269, 4294901760
    %v1271 = vsub.f32 %v1269, %v1270
    %v1272 = vand.u32 %v1271, 4294901760
    %1273 = vmatpush1.msra.mxu0 %v1272
    %1274 = vmatprep.subr.mxu0 0.0
    %v1275 = vand.u32 %v1177, 4294901760
    %v1276 = vsub.f32 %v1177, %v1275
    %v1277 = vand.u32 %v1276, 4294901760
    %v1278 = vsub.f32 %v1276, %v1277
    %v1279 = vand.u32 %v1278, 4294901760
    %1280 = vmatpush1.msra.mxu0 %v1279
    %1281 = vmatprep.subr.mxu0 0.0
    %v1282 = vand.u32 %v1178, 4294901760
    %v1283 = vsub.f32 %v1178, %v1282
    %v1284 = vand.u32 %v1283, 4294901760
    %v1285 = vsub.f32 %v1283, %v1284
    %v1286 = vand.u32 %v1285, 4294901760
    %1287 = vmatpush1.msra.mxu0 %v1286
    %1288 = vmatprep.subr.mxu0 0.0
    %1289 = vmatpush1.msra.mxu0 0.0
    %1290 = vmatprep.subr.mxu0 0.0
    %1291 = vmatpush1.msra.mxu0 0.0
    %1292 = vmatprep.subr.mxu0 0.0
    %1293 = vmatpush1.msra.mxu0 0.0
    %1294 = vmatprep.subr.mxu0 0.0
    %1295 = vmatpush1.msra.mxu0 0.0
    %1296 = vmatprep.subr.mxu0 0.0
    %1297 = vmatpush1.msra.mxu0 0.0
    %1298 = vmatprep.subr.mxu0 0.0
    %1299 = vmatpush1.msra.mxu0 0.0
    %1300 = vmatprep.subr.mxu0 0.0
    %1301 = vmatpush1.msra.mxu0 0.0
    %1302 = vmatprep.subr.mxu0 0.0
    %1303 = vmatpush1.msra.mxu0 0.0
    %1304 = vmatprep.subr.mxu0 0.0
    %1305 = vmatpush1.msra.mxu0 0.0
    %1306 = vmatprep.subr.mxu0 0.0
    %1307 = vmatpush1.msra.mxu0 0.0
    %1308 = vmatprep.subr.mxu0 0.0
    %1309 = vmatpush1.msra.mxu0 0.0
    %1310 = vmatprep.subr.mxu0 0.0
    %1311 = vmatpush1.msra.mxu0 0.0
    %1312 = vmatprep.subr.mxu0 0.0
    %1313 = vmatpush1.msra.mxu0 0.0
    %1314 = vmatprep.subr.mxu0 0.0
    %1315 = vmatpush1.msra.mxu0 0.0
    %1316 = vmatprep.subr.mxu0 0.0
    %1317 = vmatpush1.msra.mxu0 0.0
    %1318 = vmatprep.subr.mxu0 0.0
    %1319 = vmatpush1.msra.mxu0 0.0
    %1320 = vmatprep.subr.mxu0 0.0
    %1321 = vmatpush1.msra.mxu0 0.0
    %1322 = vmatprep.subr.mxu0 0.0
    %1323 = vmatpush1.msra.mxu0 0.0
    %1324 = vmatprep.subr.mxu0 0.0
    %1325 = vmatpush1.msra.mxu0 0.0
    %1326 = vmatprep.subr.mxu0 0.0
    %1327 = vmatpush1.msra.mxu0 0.0
    %1328 = vmatprep.subr.mxu0 0.0
    %1329 = vmatpush1.msra.mxu0 0.0
    %1330 = vmatprep.subr.mxu0 0.0
    %1331 = vmatpush1.msra.mxu0 0.0
    %1332 = vmatprep.subr.mxu0 0.0
    %1333 = vmatpush1.msra.mxu0 0.0
    %1334 = vmatprep.subr.mxu0 0.0
    %1335 = vmatpush1.msra.mxu0 0.0
    %1336 = vmatprep.subr.mxu0 0.0
    %1337 = vmatpush1.msra.mxu0 0.0
    %1338 = vmatprep.subr.mxu0 0.0
    %1339 = vmatpush1.msra.mxu0 0.0
    %1340 = vmatprep.subr.mxu0 0.0
    %1341 = vmatpush1.msra.mxu0 0.0
    %1342 = vmatprep.subr.mxu0 0.0
    %1343 = vmatpush1.msra.mxu0 0.0
    %1344 = vmatprep.mubr.f32.mxu0 0.0
    %v1345 = vand.u32 %v1179, 4294901760
    %1346 = vmatmul.mubr.f32.gmra.mrb[0].mxu0 %v1345
    %v1347 = vpop.f32.mrb[0].mxu0
    %v1348 = vadd.f32 %v1257, %v1347
    %v1349 = vpop.f32.mrb[0].mxu0
    %1350 = vdwg.mxu0
    %1351 = vmatprep.subr.mxu0 0.0
    %v1352 = vand.u32 %v1175, 4294901760
    %v1353 = vsub.f32 %v1175, %v1352
    %1354 = vmatpush1.msra.mxu0 %v1353
    %1355 = vmatprep.subr.mxu0 0.0
    %v1356 = vand.u32 %v1176, 4294901760
    %v1357 = vsub.f32 %v1176, %v1356
    %1358 = vmatpush1.msra.mxu0 %v1357
    %1359 = vmatprep.subr.mxu0 0.0
    %v1360 = vand.u32 %v1177, 4294901760
    %v1361 = vsub.f32 %v1177, %v1360
    %1362 = vmatpush1.msra.mxu0 %v1361
    %1363 = vmatprep.subr.mxu0 0.0
    %v1364 = vand.u32 %v1178, 4294901760
    %v1365 = vsub.f32 %v1178, %v1364
    %1366 = vmatpush1.msra.mxu0 %v1365
    %1367 = vmatprep.subr.mxu0 0.0
    %1368 = vmatpush1.msra.mxu0 0.0
    %1369 = vmatprep.subr.mxu0 0.0
    %1370 = vmatpush1.msra.mxu0 0.0
    %1371 = vmatprep.subr.mxu0 0.0
    %1372 = vmatpush1.msra.mxu0 0.0
    %1373 = vmatprep.subr.mxu0 0.0
    %1374 = vmatpush1.msra.mxu0 0.0
    %1375 = vmatprep.subr.mxu0 0.0
    %1376 = vmatpush1.msra.mxu0 0.0
    %1377 = vmatprep.subr.mxu0 0.0
    %1378 = vmatpush1.msra.mxu0 0.0
    %1379 = vmatprep.subr.mxu0 0.0
    %1380 = vmatpush1.msra.mxu0 0.0
    %1381 = vmatprep.subr.mxu0 0.0
    %1382 = vmatpush1.msra.mxu0 0.0
    %1383 = vmatprep.subr.mxu0 0.0
    %1384 = vmatpush1.msra.mxu0 0.0
    %1385 = vmatprep.subr.mxu0 0.0
    %1386 = vmatpush1.msra.mxu0 0.0
    %1387 = vmatprep.subr.mxu0 0.0
    %1388 = vmatpush1.msra.mxu0 0.0
    %1389 = vmatprep.subr.mxu0 0.0
    %1390 = vmatpush1.msra.mxu0 0.0
    %1391 = vmatprep.subr.mxu0 0.0
    %1392 = vmatpush1.msra.mxu0 0.0
    %1393 = vmatprep.subr.mxu0 0.0
    %1394 = vmatpush1.msra.mxu0 0.0
    %1395 = vmatprep.subr.mxu0 0.0
    %1396 = vmatpush1.msra.mxu0 0.0
    %1397 = vmatprep.subr.mxu0 0.0
    %1398 = vmatpush1.msra.mxu0 0.0
    %1399 = vmatprep.subr.mxu0 0.0
    %1400 = vmatpush1.msra.mxu0 0.0
    %1401 = vmatprep.subr.mxu0 0.0
    %1402 = vmatpush1.msra.mxu0 0.0
    %1403 = vmatprep.subr.mxu0 0.0
    %1404 = vmatpush1.msra.mxu0 0.0
    %1405 = vmatprep.subr.mxu0 0.0
    %1406 = vmatpush1.msra.mxu0 0.0
    %1407 = vmatprep.subr.mxu0 0.0
    %1408 = vmatpush1.msra.mxu0 0.0
    %1409 = vmatprep.subr.mxu0 0.0
    %1410 = vmatpush1.msra.mxu0 0.0
    %1411 = vmatprep.subr.mxu0 0.0
    %1412 = vmatpush1.msra.mxu0 0.0
    %1413 = vmatprep.subr.mxu0 0.0
    %1414 = vmatpush1.msra.mxu0 0.0
    %1415 = vmatprep.subr.mxu0 0.0
    %1416 = vmatpush1.msra.mxu0 0.0
    %1417 = vmatprep.subr.mxu0 0.0
    %1418 = vmatpush1.msra.mxu0 0.0
    %1419 = vmatprep.subr.mxu0 0.0
    %1420 = vmatpush1.msra.mxu0 0.0
    %1421 = vmatprep.subr.mxu0 0.0
    %1422 = vmatpush1.msra.mxu0 0.0
    %1423 = vmatprep.mubr.f32.mxu0 0.0
    %v1424 = vand.u32 %v1179, 4294901760
    %v1425 = vsub.f32 %v1179, %v1424
    %1426 = vmatmul.mubr.f32.gmra.mrb[0].mxu0 %v1425
    %v1427 = vpop.f32.mrb[0].mxu0
    %v1428 = vadd.f32 %v1348, %v1427
    %v1429 = vpop.f32.mrb[0].mxu0
    %1430 = vdwg.mxu0
    %1431 = vmatprep.subr.mxu0 0.0
    %v1432 = vand.u32 %v1175, 4294901760
    %1433 = vmatpush1.msra.mxu0 %v1432
    %1434 = vmatprep.subr.mxu0 0.0
    %v1435 = vand.u32 %v1176, 4294901760
    %1436 = vmatpush1.msra.mxu0 %v1435
    %1437 = vmatprep.subr.mxu0 0.0
    %v1438 = vand.u32 %v1177, 4294901760
    %1439 = vmatpush1.msra.mxu0 %v1438
    %1440 = vmatprep.subr.mxu0 0.0
    %v1441 = vand.u32 %v1178, 4294901760
    %1442 = vmatpush1.msra.mxu0 %v1441
    %1443 = vmatprep.subr.mxu0 0.0
    %1444 = vmatpush1.msra.mxu0 0.0
    %1445 = vmatprep.subr.mxu0 0.0
    %1446 = vmatpush1.msra.mxu0 0.0
    %1447 = vmatprep.subr.mxu0 0.0
    %1448 = vmatpush1.msra.mxu0 0.0
    %1449 = vmatprep.subr.mxu0 0.0
    %1450 = vmatpush1.msra.mxu0 0.0
    %1451 = vmatprep.subr.mxu0 0.0
    %1452 = vmatpush1.msra.mxu0 0.0
    %1453 = vmatprep.subr.mxu0 0.0
    %1454 = vmatpush1.msra.mxu0 0.0
    %1455 = vmatprep.subr.mxu0 0.0
    %1456 = vmatpush1.msra.mxu0 0.0
    %1457 = vmatprep.subr.mxu0 0.0
    %1458 = vmatpush1.msra.mxu0 0.0
    %1459 = vmatprep.subr.mxu0 0.0
    %1460 = vmatpush1.msra.mxu0 0.0
    %1461 = vmatprep.subr.mxu0 0.0
    %1462 = vmatpush1.msra.mxu0 0.0
    %1463 = vmatprep.subr.mxu0 0.0
    %1464 = vmatpush1.msra.mxu0 0.0
    %1465 = vmatprep.subr.mxu0 0.0
    %1466 = vmatpush1.msra.mxu0 0.0
    %1467 = vmatprep.subr.mxu0 0.0
    %1468 = vmatpush1.msra.mxu0 0.0
    %1469 = vmatprep.subr.mxu0 0.0
    %1470 = vmatpush1.msra.mxu0 0.0
    %1471 = vmatprep.subr.mxu0 0.0
    %1472 = vmatpush1.msra.mxu0 0.0
    %1473 = vmatprep.subr.mxu0 0.0
    %1474 = vmatpush1.msra.mxu0 0.0
    %1475 = vmatprep.subr.mxu0 0.0
    %1476 = vmatpush1.msra.mxu0 0.0
    %1477 = vmatprep.subr.mxu0 0.0
    %1478 = vmatpush1.msra.mxu0 0.0
    %1479 = vmatprep.subr.mxu0 0.0
    %1480 = vmatpush1.msra.mxu0 0.0
    %1481 = vmatprep.subr.mxu0 0.0
    %1482 = vmatpush1.msra.mxu0 0.0
    %1483 = vmatprep.subr.mxu0 0.0
    %1484 = vmatpush1.msra.mxu0 0.0
    %1485 = vmatprep.subr.mxu0 0.0
    %1486 = vmatpush1.msra.mxu0 0.0
    %1487 = vmatprep.subr.mxu0 0.0
    %1488 = vmatpush1.msra.mxu0 0.0
    %1489 = vmatprep.subr.mxu0 0.0
    %1490 = vmatpush1.msra.mxu0 0.0
    %1491 = vmatprep.subr.mxu0 0.0
    %1492 = vmatpush1.msra.mxu0 0.0
    %1493 = vmatprep.subr.mxu0 0.0
    %1494 = vmatpush1.msra.mxu0 0.0
    %1495 = vmatprep.subr.mxu0 0.0
    %1496 = vmatpush1.msra.mxu0 0.0
    %1497 = vmatprep.subr.mxu0 0.0
    %1498 = vmatpush1.msra.mxu0 0.0
    %1499 = vmatprep.mubr.f32.mxu0 0.0
    %v1500 = vand.u32 %v1179, 4294901760
    %v1501 = vsub.f32 %v1179, %v1500
    %v1502 = vand.u32 %v1501, 4294901760
    %1503 = vmatmul.mubr.f32.gmra.mrb[0].mxu0 %v1502
    %v1504 = vpop.f32.mrb[0].mxu0
    %v1505 = vadd.f32 %v1428, %v1504
    %v1506 = vpop.f32.mrb[0].mxu0
    %1507 = vdwg.mxu0
    %1508 = vmatprep.subr.mxu0 0.0
    %v1509 = vand.u32 %v1175, 4294901760
    %v1510 = vsub.f32 %v1175, %v1509
    %v1511 = vand.u32 %v1510, 4294901760
    %1512 = vmatpush1.msra.mxu0 %v1511
    %1513 = vmatprep.subr.mxu0 0.0
    %v1514 = vand.u32 %v1176, 4294901760
    %v1515 = vsub.f32 %v1176, %v1514
    %v1516 = vand.u32 %v1515, 4294901760
    %1517 = vmatpush1.msra.mxu0 %v1516
    %1518 = vmatprep.subr.mxu0 0.0
    %v1519 = vand.u32 %v1177, 4294901760
    %v1520 = vsub.f32 %v1177, %v1519
    %v1521 = vand.u32 %v1520, 4294901760
    %1522 = vmatpush1.msra.mxu0 %v1521
    %1523 = vmatprep.subr.mxu0 0.0
    %v1524 = vand.u32 %v1178, 4294901760
    %v1525 = vsub.f32 %v1178, %v1524
    %v1526 = vand.u32 %v1525, 4294901760
    %1527 = vmatpush1.msra.mxu0 %v1526
    %1528 = vmatprep.subr.mxu0 0.0
    %1529 = vmatpush1.msra.mxu0 0.0
    %1530 = vmatprep.subr.mxu0 0.0
    %1531 = vmatpush1.msra.mxu0 0.0
    %1532 = vmatprep.subr.mxu0 0.0
    %1533 = vmatpush1.msra.mxu0 0.0
    %1534 = vmatprep.subr.mxu0 0.0
    %1535 = vmatpush1.msra.mxu0 0.0
    %1536 = vmatprep.subr.mxu0 0.0
    %1537 = vmatpush1.msra.mxu0 0.0
    %1538 = vmatprep.subr.mxu0 0.0
    %1539 = vmatpush1.msra.mxu0 0.0
    %1540 = vmatprep.subr.mxu0 0.0
    %1541 = vmatpush1.msra.mxu0 0.0
    %1542 = vmatprep.subr.mxu0 0.0
    %1543 = vmatpush1.msra.mxu0 0.0
    %1544 = vmatprep.subr.mxu0 0.0
    %1545 = vmatpush1.msra.mxu0 0.0
    %1546 = vmatprep.subr.mxu0 0.0
    %1547 = vmatpush1.msra.mxu0 0.0
    %1548 = vmatprep.subr.mxu0 0.0
    %1549 = vmatpush1.msra.mxu0 0.0
    %1550 = vmatprep.subr.mxu0 0.0
    %1551 = vmatpush1.msra.mxu0 0.0
    %1552 = vmatprep.subr.mxu0 0.0
    %1553 = vmatpush1.msra.mxu0 0.0
    %1554 = vmatprep.subr.mxu0 0.0
    %1555 = vmatpush1.msra.mxu0 0.0
    %1556 = vmatprep.subr.mxu0 0.0
    %1557 = vmatpush1.msra.mxu0 0.0
    %1558 = vmatprep.subr.mxu0 0.0
    %1559 = vmatpush1.msra.mxu0 0.0
    %1560 = vmatprep.subr.mxu0 0.0
    %1561 = vmatpush1.msra.mxu0 0.0
    %1562 = vmatprep.subr.mxu0 0.0
    %1563 = vmatpush1.msra.mxu0 0.0
    %1564 = vmatprep.subr.mxu0 0.0
    %1565 = vmatpush1.msra.mxu0 0.0
    %1566 = vmatprep.subr.mxu0 0.0
    %1567 = vmatpush1.msra.mxu0 0.0
    %1568 = vmatprep.subr.mxu0 0.0
    %1569 = vmatpush1.msra.mxu0 0.0
    %1570 = vmatprep.subr.mxu0 0.0
    %1571 = vmatpush1.msra.mxu0 0.0
    %1572 = vmatprep.subr.mxu0 0.0
    %1573 = vmatpush1.msra.mxu0 0.0
    %1574 = vmatprep.subr.mxu0 0.0
    %1575 = vmatpush1.msra.mxu0 0.0
    %1576 = vmatprep.subr.mxu0 0.0
    %1577 = vmatpush1.msra.mxu0 0.0
    %1578 = vmatprep.subr.mxu0 0.0
    %1579 = vmatpush1.msra.mxu0 0.0
    %1580 = vmatprep.subr.mxu0 0.0
    %1581 = vmatpush1.msra.mxu0 0.0
    %1582 = vmatprep.subr.mxu0 0.0
    %1583 = vmatpush1.msra.mxu0 0.0
    %1584 = vmatprep.mubr.f32.mxu0 0.0
    %v1585 = vand.u32 %v1179, 4294901760
    %1586 = vmatmul.mubr.f32.gmra.mrb[0].mxu0 %v1585
    %v1587 = vpop.f32.mrb[0].mxu0
    %v1588 = vadd.f32 %v1505, %v1587
    %v1589 = vpop.f32.mrb[0].mxu0
    %1590 = vdwg.mxu0
    %1591 = vmatprep.subr.mxu0 0.0
    %v1592 = vand.u32 %v1175, 4294901760
    %1593 = vmatpush1.msra.mxu0 %v1592
    %1594 = vmatprep.subr.mxu0 0.0
    %v1595 = vand.u32 %v1176, 4294901760
    %1596 = vmatpush1.msra.mxu0 %v1595
    %1597 = vmatprep.subr.mxu0 0.0
    %v1598 = vand.u32 %v1177, 4294901760
    %1599 = vmatpush1.msra.mxu0 %v1598
    %1600 = vmatprep.subr.mxu0 0.0
    %v1601 = vand.u32 %v1178, 4294901760
    %1602 = vmatpush1.msra.mxu0 %v1601
    %1603 = vmatprep.subr.mxu0 0.0
    %1604 = vmatpush1.msra.mxu0 0.0
    %1605 = vmatprep.subr.mxu0 0.0
    %1606 = vmatpush1.msra.mxu0 0.0
    %1607 = vmatprep.subr.mxu0 0.0
    %1608 = vmatpush1.msra.mxu0 0.0
    %1609 = vmatprep.subr.mxu0 0.0
    %1610 = vmatpush1.msra.mxu0 0.0
    %1611 = vmatprep.subr.mxu0 0.0
    %1612 = vmatpush1.msra.mxu0 0.0
    %1613 = vmatprep.subr.mxu0 0.0
    %1614 = vmatpush1.msra.mxu0 0.0
    %1615 = vmatprep.subr.mxu0 0.0
    %1616 = vmatpush1.msra.mxu0 0.0
    %1617 = vmatprep.subr.mxu0 0.0
    %1618 = vmatpush1.msra.mxu0 0.0
    %1619 = vmatprep.subr.mxu0 0.0
    %1620 = vmatpush1.msra.mxu0 0.0
    %1621 = vmatprep.subr.mxu0 0.0
    %1622 = vmatpush1.msra.mxu0 0.0
    %1623 = vmatprep.subr.mxu0 0.0
    %1624 = vmatpush1.msra.mxu0 0.0
    %1625 = vmatprep.subr.mxu0 0.0
    %1626 = vmatpush1.msra.mxu0 0.0
    %1627 = vmatprep.subr.mxu0 0.0
    %1628 = vmatpush1.msra.mxu0 0.0
    %1629 = vmatprep.subr.mxu0 0.0
    %1630 = vmatpush1.msra.mxu0 0.0
    %1631 = vmatprep.subr.mxu0 0.0
    %1632 = vmatpush1.msra.mxu0 0.0
    %1633 = vmatprep.subr.mxu0 0.0
    %1634 = vmatpush1.msra.mxu0 0.0
    %1635 = vmatprep.subr.mxu0 0.0
    %1636 = vmatpush1.msra.mxu0 0.0
    %1637 = vmatprep.subr.mxu0 0.0
    %1638 = vmatpush1.msra.mxu0 0.0
    %1639 = vmatprep.subr.mxu0 0.0
    %1640 = vmatpush1.msra.mxu0 0.0
    %1641 = vmatprep.subr.mxu0 0.0
    %1642 = vmatpush1.msra.mxu0 0.0
    %1643 = vmatprep.subr.mxu0 0.0
    %1644 = vmatpush1.msra.mxu0 0.0
    %1645 = vmatprep.subr.mxu0 0.0
    %1646 = vmatpush1.msra.mxu0 0.0
    %1647 = vmatprep.subr.mxu0 0.0
    %1648 = vmatpush1.msra.mxu0 0.0
    %1649 = vmatprep.subr.mxu0 0.0
    %1650 = vmatpush1.msra.mxu0 0.0
    %1651 = vmatprep.subr.mxu0 0.0
    %1652 = vmatpush1.msra.mxu0 0.0
    %1653 = vmatprep.subr.mxu0 0.0
    %1654 = vmatpush1.msra.mxu0 0.0
    %1655 = vmatprep.subr.mxu0 0.0
    %1656 = vmatpush1.msra.mxu0 0.0
    %1657 = vmatprep.subr.mxu0 0.0
    %1658 = vmatpush1.msra.mxu0 0.0
    %1659 = vmatprep.mubr.f32.mxu0 0.0
    %v1660 = vand.u32 %v1179, 4294901760
    %1661 = vmatmul.mubr.f32.gmra.mrb[0].mxu0 %v1660
    %v1662 = vpop.f32.mrb[0].mxu0
    %v1663 = vadd.f32 %v1588, %v1662
    %v1664 = vpop.f32.mrb[0].mxu0
    %1665 = vdwg.mxu0
    %v1666 = vadd.f32 %v1174, %v1663
    %v1667 = vxor.u32 %v1666, 2147483648
    %v1668 = vmul.f32 %v1667, 1.442695
    %v1669 = vpow.pop %v1668
    %v1670 = vadd.f32 %v1669, 1.0
    %v1671 = vrcp.pop %v1670
    %v1672 = vmul.f32 1.0, %v1671
    %v1673 = vtanh.pop %v1666
    %v1674 = vmul.f32 %v1672, %v1161
    %1676 = vrot.lane.b32.xlu0 %v1673, 64
    %v1677 = vpop.permute.xlu0 %1676
    %v1679 = vmul.f32 %v1672, %v1677
    %1681 = vrot.lane.b32.xlu0 %v1679, 32
    %v1682 = vpop.permute.xlu0 %1681
    %v1684 = vadd.f32 %v1674, %v1682
    %v1685 = vtanh.pop %v1684
    %1687 = vrot.lane.b32.xlu0 %v1685, 64
    %v1688 = vpop.permute.xlu0 %1687
    %v1690 = vmul.f32 %v1672, %v1688
    %1692 = vrot.lane.b32.xlu0 %v1690, 32
    %v1693 = vpop.permute.xlu0 %1692
    %1695 = vst.msk [vmem:[#allocation4 + $0x2] sm:$0x3] %vm1172, %v1693
    %v1696 = vld [vmem:[#allocation3 + $0x4] sm:$0x3]
    %v1697 = vld [vmem:[%s5] sm:$0xff]
    %v1698 = vld [vmem:[%s5 + $0x8] sm:$0xff]
    %v1699 = vld [vmem:[%s5 + $0x10] sm:$0xff]
    %v1700 = vld [vmem:[%s5 + $0x18] sm:$0xff]
    %v1701 = vsel %vm107, %v1693, 0
    %1703 = vmatprep.subr.mxu0 0.0
    %v1704 = vand.u32 %v1697, 4294901760
    %1705 = vmatpush1.msra.mxu0 %v1704
    %1706 = vmatprep.subr.mxu0 0.0
    %v1707 = vand.u32 %v1698, 4294901760
    %1708 = vmatpush1.msra.mxu0 %v1707
    %1709 = vmatprep.subr.mxu0 0.0
    %v1710 = vand.u32 %v1699, 4294901760
    %1711 = vmatpush1.msra.mxu0 %v1710
    %1712 = vmatprep.subr.mxu0 0.0
    %v1713 = vand.u32 %v1700, 4294901760
    %1714 = vmatpush1.msra.mxu0 %v1713
    %1715 = vmatprep.subr.mxu0 0.0
    %1716 = vmatpush1.msra.mxu0 0.0
    %1717 = vmatprep.subr.mxu0 0.0
    %1718 = vmatpush1.msra.mxu0 0.0
    %1719 = vmatprep.subr.mxu0 0.0
    %1720 = vmatpush1.msra.mxu0 0.0
    %1721 = vmatprep.subr.mxu0 0.0
    %1722 = vmatpush1.msra.mxu0 0.0
    %1723 = vmatprep.subr.mxu0 0.0
    %1724 = vmatpush1.msra.mxu0 0.0
    %1725 = vmatprep.subr.mxu0 0.0
    %1726 = vmatpush1.msra.mxu0 0.0
    %1727 = vmatprep.subr.mxu0 0.0
    %1728 = vmatpush1.msra.mxu0 0.0
    %1729 = vmatprep.subr.mxu0 0.0
    %1730 = vmatpush1.msra.mxu0 0.0
    %1731 = vmatprep.subr.mxu0 0.0
    %1732 = vmatpush1.msra.mxu0 0.0
    %1733 = vmatprep.subr.mxu0 0.0
    %1734 = vmatpush1.msra.mxu0 0.0
    %1735 = vmatprep.subr.mxu0 0.0
    %1736 = vmatpush1.msra.mxu0 0.0
    %1737 = vmatprep.subr.mxu0 0.0
    %1738 = vmatpush1.msra.mxu0 0.0
    %1739 = vmatprep.subr.mxu0 0.0
    %1740 = vmatpush1.msra.mxu0 0.0
    %1741 = vmatprep.subr.mxu0 0.0
    %1742 = vmatpush1.msra.mxu0 0.0
    %1743 = vmatprep.subr.mxu0 0.0
    %1744 = vmatpush1.msra.mxu0 0.0
    %1745 = vmatprep.subr.mxu0 0.0
    %1746 = vmatpush1.msra.mxu0 0.0
    %1747 = vmatprep.subr.mxu0 0.0
    %1748 = vmatpush1.msra.mxu0 0.0
    %1749 = vmatprep.subr.mxu0 0.0
    %1750 = vmatpush1.msra.mxu0 0.0
    %1751 = vmatprep.subr.mxu0 0.0
    %1752 = vmatpush1.msra.mxu0 0.0
    %1753 = vmatprep.subr.mxu0 0.0
    %1754 = vmatpush1.msra.mxu0 0.0
    %1755 = vmatprep.subr.mxu0 0.0
    %1756 = vmatpush1.msra.mxu0 0.0
    %1757 = vmatprep.subr.mxu0 0.0
    %1758 = vmatpush1.msra.mxu0 0.0
    %1759 = vmatprep.subr.mxu0 0.0
    %1760 = vmatpush1.msra.mxu0 0.0
    %1761 = vmatprep.subr.mxu0 0.0
    %1762 = vmatpush1.msra.mxu0 0.0
    %1763 = vmatprep.subr.mxu0 0.0
    %1764 = vmatpush1.msra.mxu0 0.0
    %1765 = vmatprep.subr.mxu0 0.0
    %1766 = vmatpush1.msra.mxu0 0.0
    %1767 = vmatprep.subr.mxu0 0.0
    %1768 = vmatpush1.msra.mxu0 0.0
    %1769 = vmatprep.subr.mxu0 0.0
    %1770 = vmatpush1.msra.mxu0 0.0
    %1771 = vmatprep.mubr.f32.mxu0 0.0
    %v1772 = vand.u32 %v1701, 4294901760
    %v1773 = vsub.f32 %v1701, %v1772
    %v1774 = vand.u32 %v1773, 4294901760
    %v1775 = vsub.f32 %v1773, %v1774
    %v1776 = vand.u32 %v1775, 4294901760
    %1777 = vmatmul.mubr.f32.gmra.mrb[0].mxu0 %v1776
    %v1778 = vpop.f32.mrb[0].mxu0
    %v1779 = vadd.f32 0.0, %v1778
    %v1780 = vpop.f32.mrb[0].mxu0
    %1781 = vdwg.mxu0
    %1782 = vmatprep.subr.mxu0 0.0
    %v1783 = vand.u32 %v1697, 4294901760
    %v1784 = vsub.f32 %v1697, %v1783
    %v1785 = vand.u32 %v1784, 4294901760
    %v1786 = vsub.f32 %v1784, %v1785
    %v1787 = vand.u32 %v1786, 4294901760
    %1788 = vmatpush1.msra.mxu0 %v1787
    %1789 = vmatprep.subr.mxu0 0.0
    %v1790 = vand.u32 %v1698, 4294901760
    %v1791 = vsub.f32 %v1698, %v1790
    %v1792 = vand.u32 %v1791, 4294901760
    %v1793 = vsub.f32 %v1791, %v1792
    %v1794 = vand.u32 %v1793, 4294901760
    %1795 = vmatpush1.msra.mxu0 %v1794
    %1796 = vmatprep.subr.mxu0 0.0
    %v1797 = vand.u32 %v1699, 4294901760
    %v1798 = vsub.f32 %v1699, %v1797
    %v1799 = vand.u32 %v1798, 4294901760
    %v1800 = vsub.f32 %v1798, %v1799
    %v1801 = vand.u32 %v1800, 4294901760
    %1802 = vmatpush1.msra.mxu0 %v1801
    %1803 = vmatprep.subr.mxu0 0.0
    %v1804 = vand.u32 %v1700, 4294901760
    %v1805 = vsub.f32 %v1700, %v1804
    %v1806 = vand.u32 %v1805, 4294901760
    %v1807 = vsub.f32 %v1805, %v1806
    %v1808 = vand.u32 %v1807, 4294901760
    %1809 = vmatpush1.msra.mxu0 %v1808
    %1810 = vmatprep.subr.mxu0 0.0
    %1811 = vmatpush1.msra.mxu0 0.0
    %1812 = vmatprep.subr.mxu0 0.0
    %1813 = vmatpush1.msra.mxu0 0.0
    %1814 = vmatprep.subr.mxu0 0.0
    %1815 = vmatpush1.msra.mxu0 0.0
    %1816 = vmatprep.subr.mxu0 0.0
    %1817 = vmatpush1.msra.mxu0 0.0
    %1818 = vmatprep.subr.mxu0 0.0
    %1819 = vmatpush1.msra.mxu0 0.0
    %1820 = vmatprep.subr.mxu0 0.0
    %1821 = vmatpush1.msra.mxu0 0.0
    %1822 = vmatprep.subr.mxu0 0.0
    %1823 = vmatpush1.msra.mxu0 0.0
    %1824 = vmatprep.subr.mxu0 0.0
    %1825 = vmatpush1.msra.mxu0 0.0
    %1826 = vmatprep.subr.mxu0 0.0
    %1827 = vmatpush1.msra.mxu0 0.0
    %1828 = vmatprep.subr.mxu0 0.0
    %1829 = vmatpush1.msra.mxu0 0.0
    %1830 = vmatprep.subr.mxu0 0.0
    %1831 = vmatpush1.msra.mxu0 0.0
    %1832 = vmatprep.subr.mxu0 0.0
    %1833 = vmatpush1.msra.mxu0 0.0
    %1834 = vmatprep.subr.mxu0 0.0
    %1835 = vmatpush1.msra.mxu0 0.0
    %1836 = vmatprep.subr.mxu0 0.0
    %1837 = vmatpush1.msra.mxu0 0.0
    %1838 = vmatprep.subr.mxu0 0.0
    %1839 = vmatpush1.msra.mxu0 0.0
    %1840 = vmatprep.subr.mxu0 0.0
    %1841 = vmatpush1.msra.mxu0 0.0
    %1842 = vmatprep.subr.mxu0 0.0
    %1843 = vmatpush1.msra.mxu0 0.0
    %1844 = vmatprep.subr.mxu0 0.0
    %1845 = vmatpush1.msra.mxu0 0.0
    %1846 = vmatprep.subr.mxu0 0.0
    %1847 = vmatpush1.msra.mxu0 0.0
    %1848 = vmatprep.subr.mxu0 0.0
    %1849 = vmatpush1.msra.mxu0 0.0
    %1850 = vmatprep.subr.mxu0 0.0
    %1851 = vmatpush1.msra.mxu0 0.0
    %1852 = vmatprep.subr.mxu0 0.0
    %1853 = vmatpush1.msra.mxu0 0.0
    %1854 = vmatprep.subr.mxu0 0.0
    %1855 = vmatpush1.msra.mxu0 0.0
    %1856 = vmatprep.subr.mxu0 0.0
    %1857 = vmatpush1.msra.mxu0 0.0
    %1858 = vmatprep.subr.mxu0 0.0
    %1859 = vmatpush1.msra.mxu0 0.0
    %1860 = vmatprep.subr.mxu0 0.0
    %1861 = vmatpush1.msra.mxu0 0.0
    %1862 = vmatprep.subr.mxu0 0.0
    %1863 = vmatpush1.msra.mxu0 0.0
    %1864 = vmatprep.subr.mxu0 0.0
    %1865 = vmatpush1.msra.mxu0 0.0
    %1866 = vmatprep.mubr.f32.mxu0 0.0
    %v1867 = vand.u32 %v1701, 4294901760
    %1868 = vmatmul.mubr.f32.gmra.mrb[0].mxu0 %v1867
    %v1869 = vpop.f32.mrb[0].mxu0
    %v1870 = vadd.f32 %v1779, %v1869
    %v1871 = vpop.f32.mrb[0].mxu0
    %1872 = vdwg.mxu0
    %1873 = vmatprep.subr.mxu0 0.0
    %v1874 = vand.u32 %v1697, 4294901760
    %v1875 = vsub.f32 %v1697, %v1874
    %1876 = vmatpush1.msra.mxu0 %v1875
    %1877 = vmatprep.subr.mxu0 0.0
    %v1878 = vand.u32 %v1698, 4294901760
    %v1879 = vsub.f32 %v1698, %v1878
    %1880 = vmatpush1.msra.mxu0 %v1879
    %1881 = vmatprep.subr.mxu0 0.0
    %v1882 = vand.u32 %v1699, 4294901760
    %v1883 = vsub.f32 %v1699, %v1882
    %1884 = vmatpush1.msra.mxu0 %v1883
    %1885 = vmatprep.subr.mxu0 0.0
    %v1886 = vand.u32 %v1700, 4294901760
    %v1887 = vsub.f32 %v1700, %v1886
    %1888 = vmatpush1.msra.mxu0 %v1887
    %1889 = vmatprep.subr.mxu0 0.0
    %1890 = vmatpush1.msra.mxu0 0.0
    %1891 = vmatprep.subr.mxu0 0.0
    %1892 = vmatpush1.msra.mxu0 0.0
    %1893 = vmatprep.subr.mxu0 0.0
    %1894 = vmatpush1.msra.mxu0 0.0
    %1895 = vmatprep.subr.mxu0 0.0
    %1896 = vmatpush1.msra.mxu0 0.0
    %1897 = vmatprep.subr.mxu0 0.0
    %1898 = vmatpush1.msra.mxu0 0.0
    %1899 = vmatprep.subr.mxu0 0.0
    %1900 = vmatpush1.msra.mxu0 0.0
    %1901 = vmatprep.subr.mxu0 0.0
    %1902 = vmatpush1.msra.mxu0 0.0
    %1903 = vmatprep.subr.mxu0 0.0
    %1904 = vmatpush1.msra.mxu0 0.0
    %1905 = vmatprep.subr.mxu0 0.0
    %1906 = vmatpush1.msra.mxu0 0.0
    %1907 = vmatprep.subr.mxu0 0.0
    %1908 = vmatpush1.msra.mxu0 0.0
    %1909 = vmatprep.subr.mxu0 0.0
    %1910 = vmatpush1.msra.mxu0 0.0
    %1911 = vmatprep.subr.mxu0 0.0
    %1912 = vmatpush1.msra.mxu0 0.0
    %1913 = vmatprep.subr.mxu0 0.0
    %1914 = vmatpush1.msra.mxu0 0.0
    %1915 = vmatprep.subr.mxu0 0.0
    %1916 = vmatpush1.msra.mxu0 0.0
    %1917 = vmatprep.subr.mxu0 0.0
    %1918 = vmatpush1.msra.mxu0 0.0
    %1919 = vmatprep.subr.mxu0 0.0
    %1920 = vmatpush1.msra.mxu0 0.0
    %1921 = vmatprep.subr.mxu0 0.0
    %1922 = vmatpush1.msra.mxu0 0.0
    %1923 = vmatprep.subr.mxu0 0.0
    %1924 = vmatpush1.msra.mxu0 0.0
    %1925 = vmatprep.subr.mxu0 0.0
    %1926 = vmatpush1.msra.mxu0 0.0
    %1927 = vmatprep.subr.mxu0 0.0
    %1928 = vmatpush1.msra.mxu0 0.0
    %1929 = vmatprep.subr.mxu0 0.0
    %1930 = vmatpush1.msra.mxu0 0.0
    %1931 = vmatprep.subr.mxu0 0.0
    %1932 = vmatpush1.msra.mxu0 0.0
    %1933 = vmatprep.subr.mxu0 0.0
    %1934 = vmatpush1.msra.mxu0 0.0
    %1935 = vmatprep.subr.mxu0 0.0
    %1936 = vmatpush1.msra.mxu0 0.0
    %1937 = vmatprep.subr.mxu0 0.0
    %1938 = vmatpush1.msra.mxu0 0.0
    %1939 = vmatprep.subr.mxu0 0.0
    %1940 = vmatpush1.msra.mxu0 0.0
    %1941 = vmatprep.subr.mxu0 0.0
    %1942 = vmatpush1.msra.mxu0 0.0
    %1943 = vmatprep.subr.mxu0 0.0
    %1944 = vmatpush1.msra.mxu0 0.0
    %1945 = vmatprep.mubr.f32.mxu0 0.0
    %v1946 = vand.u32 %v1701, 4294901760
    %v1947 = vsub.f32 %v1701, %v1946
    %1948 = vmatmul.mubr.f32.gmra.mrb[0].mxu0 %v1947
    %v1949 = vpop.f32.mrb[0].mxu0
    %v1950 = vadd.f32 %v1870, %v1949
    %v1951 = vpop.f32.mrb[0].mxu0
    %1952 = vdwg.mxu0
    %1953 = vmatprep.subr.mxu0 0.0
    %v1954 = vand.u32 %v1697, 4294901760
    %1955 = vmatpush1.msra.mxu0 %v1954
    %1956 = vmatprep.subr.mxu0 0.0
    %v1957 = vand.u32 %v1698, 4294901760
    %1958 = vmatpush1.msra.mxu0 %v1957
    %1959 = vmatprep.subr.mxu0 0.0
    %v1960 = vand.u32 %v1699, 4294901760
    %1961 = vmatpush1.msra.mxu0 %v1960
    %1962 = vmatprep.subr.mxu0 0.0
    %v1963 = vand.u32 %v1700, 4294901760
    %1964 = vmatpush1.msra.mxu0 %v1963
    %1965 = vmatprep.subr.mxu0 0.0
    %1966 = vmatpush1.msra.mxu0 0.0
    %1967 = vmatprep.subr.mxu0 0.0
    %1968 = vmatpush1.msra.mxu0 0.0
    %1969 = vmatprep.subr.mxu0 0.0
    %1970 = vmatpush1.msra.mxu0 0.0
    %1971 = vmatprep.subr.mxu0 0.0
    %1972 = vmatpush1.msra.mxu0 0.0
    %1973 = vmatprep.subr.mxu0 0.0
    %1974 = vmatpush1.msra.mxu0 0.0
    %1975 = vmatprep.subr.mxu0 0.0
    %1976 = vmatpush1.msra.mxu0 0.0
    %1977 = vmatprep.subr.mxu0 0.0
    %1978 = vmatpush1.msra.mxu0 0.0
    %1979 = vmatprep.subr.mxu0 0.0
    %1980 = vmatpush1.msra.mxu0 0.0
    %1981 = vmatprep.subr.mxu0 0.0
    %1982 = vmatpush1.msra.mxu0 0.0
    %1983 = vmatprep.subr.mxu0 0.0
    %1984 = vmatpush1.msra.mxu0 0.0
    %1985 = vmatprep.subr.mxu0 0.0
    %1986 = vmatpush1.msra.mxu0 0.0
    %1987 = vmatprep.subr.mxu0 0.0
    %1988 = vmatpush1.msra.mxu0 0.0
    %1989 = vmatprep.subr.mxu0 0.0
    %1990 = vmatpush1.msra.mxu0 0.0
    %1991 = vmatprep.subr.mxu0 0.0
    %1992 = vmatpush1.msra.mxu0 0.0
    %1993 = vmatprep.subr.mxu0 0.0
    %1994 = vmatpush1.msra.mxu0 0.0
    %1995 = vmatprep.subr.mxu0 0.0
    %1996 = vmatpush1.msra.mxu0 0.0
    %1997 = vmatprep.subr.mxu0 0.0
    %1998 = vmatpush1.msra.mxu0 0.0
    %1999 = vmatprep.subr.mxu0 0.0
    %2000 = vmatpush1.msra.mxu0 0.0
    %2001 = vmatprep.subr.mxu0 0.0
    %2002 = vmatpush1.msra.mxu0 0.0
    %2003 = vmatprep.subr.mxu0 0.0
    %2004 = vmatpush1.msra.mxu0 0.0
    %2005 = vmatprep.subr.mxu0 0.0
    %2006 = vmatpush1.msra.mxu0 0.0
    %2007 = vmatprep.subr.mxu0 0.0
    %2008 = vmatpush1.msra.mxu0 0.0
    %2009 = vmatprep.subr.mxu0 0.0
    %2010 = vmatpush1.msra.mxu0 0.0
    %2011 = vmatprep.subr.mxu0 0.0
    %2012 = vmatpush1.msra.mxu0 0.0
    %2013 = vmatprep.subr.mxu0 0.0
    %2014 = vmatpush1.msra.mxu0 0.0
    %2015 = vmatprep.subr.mxu0 0.0
    %2016 = vmatpush1.msra.mxu0 0.0
    %2017 = vmatprep.subr.mxu0 0.0
    %2018 = vmatpush1.msra.mxu0 0.0
    %2019 = vmatprep.subr.mxu0 0.0
    %2020 = vmatpush1.msra.mxu0 0.0
    %2021 = vmatprep.mubr.f32.mxu0 0.0
    %v2022 = vand.u32 %v1701, 4294901760
    %v2023 = vsub.f32 %v1701, %v2022
    %v2024 = vand.u32 %v2023, 4294901760
    %2025 = vmatmul.mubr.f32.gmra.mrb[0].mxu0 %v2024
    %v2026 = vpop.f32.mrb[0].mxu0
    %v2027 = vadd.f32 %v1950, %v2026
    %v2028 = vpop.f32.mrb[0].mxu0
    %2029 = vdwg.mxu0
    %2030 = vmatprep.subr.mxu0 0.0
    %v2031 = vand.u32 %v1697, 4294901760
    %v2032 = vsub.f32 %v1697, %v2031
    %v2033 = vand.u32 %v2032, 4294901760
    %2034 = vmatpush1.msra.mxu0 %v2033
    %2035 = vmatprep.subr.mxu0 0.0
    %v2036 = vand.u32 %v1698, 4294901760
    %v2037 = vsub.f32 %v1698, %v2036
    %v2038 = vand.u32 %v2037, 4294901760
    %2039 = vmatpush1.msra.mxu0 %v2038
    %2040 = vmatprep.subr.mxu0 0.0
    %v2041 = vand.u32 %v1699, 4294901760
    %v2042 = vsub.f32 %v1699, %v2041
    %v2043 = vand.u32 %v2042, 4294901760
    %2044 = vmatpush1.msra.mxu0 %v2043
    %2045 = vmatprep.subr.mxu0 0.0
    %v2046 = vand.u32 %v1700, 4294901760
    %v2047 = vsub.f32 %v1700, %v2046
    %v2048 = vand.u32 %v2047, 4294901760
    %2049 = vmatpush1.msra.mxu0 %v2048
    %2050 = vmatprep.subr.mxu0 0.0
    %2051 = vmatpush1.msra.mxu0 0.0
    %2052 = vmatprep.subr.mxu0 0.0
    %2053 = vmatpush1.msra.mxu0 0.0
    %2054 = vmatprep.subr.mxu0 0.0
    %2055 = vmatpush1.msra.mxu0 0.0
    %2056 = vmatprep.subr.mxu0 0.0
    %2057 = vmatpush1.msra.mxu0 0.0
    %2058 = vmatprep.subr.mxu0 0.0
    %2059 = vmatpush1.msra.mxu0 0.0
    %2060 = vmatprep.subr.mxu0 0.0
    %2061 = vmatpush1.msra.mxu0 0.0
    %2062 = vmatprep.subr.mxu0 0.0
    %2063 = vmatpush1.msra.mxu0 0.0
    %2064 = vmatprep.subr.mxu0 0.0
    %2065 = vmatpush1.msra.mxu0 0.0
    %2066 = vmatprep.subr.mxu0 0.0
    %2067 = vmatpush1.msra.mxu0 0.0
    %2068 = vmatprep.subr.mxu0 0.0
    %2069 = vmatpush1.msra.mxu0 0.0
    %2070 = vmatprep.subr.mxu0 0.0
    %2071 = vmatpush1.msra.mxu0 0.0
    %2072 = vmatprep.subr.mxu0 0.0
    %2073 = vmatpush1.msra.mxu0 0.0
    %2074 = vmatprep.subr.mxu0 0.0
    %2075 = vmatpush1.msra.mxu0 0.0
    %2076 = vmatprep.subr.mxu0 0.0
    %2077 = vmatpush1.msra.mxu0 0.0
    %2078 = vmatprep.subr.mxu0 0.0
    %2079 = vmatpush1.msra.mxu0 0.0
    %2080 = vmatprep.subr.mxu0 0.0
    %2081 = vmatpush1.msra.mxu0 0.0
    %2082 = vmatprep.subr.mxu0 0.0
    %2083 = vmatpush1.msra.mxu0 0.0
    %2084 = vmatprep.subr.mxu0 0.0
    %2085 = vmatpush1.msra.mxu0 0.0
    %2086 = vmatprep.subr.mxu0 0.0
    %2087 = vmatpush1.msra.mxu0 0.0
    %2088 = vmatprep.subr.mxu0 0.0
    %2089 = vmatpush1.msra.mxu0 0.0
    %2090 = vmatprep.subr.mxu0 0.0
    %2091 = vmatpush1.msra.mxu0 0.0
    %2092 = vmatprep.subr.mxu0 0.0
    %2093 = vmatpush1.msra.mxu0 0.0
    %2094 = vmatprep.subr.mxu0 0.0
    %2095 = vmatpush1.msra.mxu0 0.0
    %2096 = vmatprep.subr.mxu0 0.0
    %2097 = vmatpush1.msra.mxu0 0.0
    %2098 = vmatprep.subr.mxu0 0.0
    %2099 = vmatpush1.msra.mxu0 0.0
    %2100 = vmatprep.subr.mxu0 0.0
    %2101 = vmatpush1.msra.mxu0 0.0
    %2102 = vmatprep.subr.mxu0 0.0
    %2103 = vmatpush1.msra.mxu0 0.0
    %2104 = vmatprep.subr.mxu0 0.0
    %2105 = vmatpush1.msra.mxu0 0.0
    %2106 = vmatprep.mubr.f32.mxu0 0.0
    %v2107 = vand.u32 %v1701, 4294901760
    %2108 = vmatmul.mubr.f32.gmra.mrb[0].mxu0 %v2107
    %v2109 = vpop.f32.mrb[0].mxu0
    %v2110 = vadd.f32 %v2027, %v2109
    %v2111 = vpop.f32.mrb[0].mxu0
    %2112 = vdwg.mxu0
    %2113 = vmatprep.subr.mxu0 0.0
    %v2114 = vand.u32 %v1697, 4294901760
    %2115 = vmatpush1.msra.mxu0 %v2114
    %2116 = vmatprep.subr.mxu0 0.0
    %v2117 = vand.u32 %v1698, 4294901760
    %2118 = vmatpush1.msra.mxu0 %v2117
    %2119 = vmatprep.subr.mxu0 0.0
    %v2120 = vand.u32 %v1699, 4294901760
    %2121 = vmatpush1.msra.mxu0 %v2120
    %2122 = vmatprep.subr.mxu0 0.0
    %v2123 = vand.u32 %v1700, 4294901760
    %2124 = vmatpush1.msra.mxu0 %v2123
    %2125 = vmatprep.subr.mxu0 0.0
    %2126 = vmatpush1.msra.mxu0 0.0
    %2127 = vmatprep.subr.mxu0 0.0
    %2128 = vmatpush1.msra.mxu0 0.0
    %2129 = vmatprep.subr.mxu0 0.0
    %2130 = vmatpush1.msra.mxu0 0.0
    %2131 = vmatprep.subr.mxu0 0.0
    %2132 = vmatpush1.msra.mxu0 0.0
    %2133 = vmatprep.subr.mxu0 0.0
    %2134 = vmatpush1.msra.mxu0 0.0
    %2135 = vmatprep.subr.mxu0 0.0
    %2136 = vmatpush1.msra.mxu0 0.0
    %2137 = vmatprep.subr.mxu0 0.0
    %2138 = vmatpush1.msra.mxu0 0.0
    %2139 = vmatprep.subr.mxu0 0.0
    %2140 = vmatpush1.msra.mxu0 0.0
    %2141 = vmatprep.subr.mxu0 0.0
    %2142 = vmatpush1.msra.mxu0 0.0
    %2143 = vmatprep.subr.mxu0 0.0
    %2144 = vmatpush1.msra.mxu0 0.0
    %2145 = vmatprep.subr.mxu0 0.0
    %2146 = vmatpush1.msra.mxu0 0.0
    %2147 = vmatprep.subr.mxu0 0.0
    %2148 = vmatpush1.msra.mxu0 0.0
    %2149 = vmatprep.subr.mxu0 0.0
    %2150 = vmatpush1.msra.mxu0 0.0
    %2151 = vmatprep.subr.mxu0 0.0
    %2152 = vmatpush1.msra.mxu0 0.0
    %2153 = vmatprep.subr.mxu0 0.0
    %2154 = vmatpush1.msra.mxu0 0.0
    %2155 = vmatprep.subr.mxu0 0.0
    %2156 = vmatpush1.msra.mxu0 0.0
    %2157 = vmatprep.subr.mxu0 0.0
    %2158 = vmatpush1.msra.mxu0 0.0
    %2159 = vmatprep.subr.mxu0 0.0
    %2160 = vmatpush1.msra.mxu0 0.0
    %2161 = vmatprep.subr.mxu0 0.0
    %2162 = vmatpush1.msra.mxu0 0.0
    %2163 = vmatprep.subr.mxu0 0.0
    %2164 = vmatpush1.msra.mxu0 0.0
    %2165 = vmatprep.subr.mxu0 0.0
    %2166 = vmatpush1.msra.mxu0 0.0
    %2167 = vmatprep.subr.mxu0 0.0
    %2168 = vmatpush1.msra.mxu0 0.0
    %2169 = vmatprep.subr.mxu0 0.0
    %2170 = vmatpush1.msra.mxu0 0.0
    %2171 = vmatprep.subr.mxu0 0.0
    %2172 = vmatpush1.msra.mxu0 0.0
    %2173 = vmatprep.subr.mxu0 0.0
    %2174 = vmatpush1.msra.mxu0 0.0
    %2175 = vmatprep.subr.mxu0 0.0
    %2176 = vmatpush1.msra.mxu0 0.0
    %2177 = vmatprep.subr.mxu0 0.0
    %2178 = vmatpush1.msra.mxu0 0.0
    %2179 = vmatprep.subr.mxu0 0.0
    %2180 = vmatpush1.msra.mxu0 0.0
    %2181 = vmatprep.mubr.f32.mxu0 0.0
    %v2182 = vand.u32 %v1701, 4294901760
    %2183 = vmatmul.mubr.f32.gmra.mrb[0].mxu0 %v2182
    %v2184 = vpop.f32.mrb[0].mxu0
    %v2185 = vadd.f32 %v2110, %v2184
    %v2186 = vpop.f32.mrb[0].mxu0
    %2187 = vdwg.mxu0
    %v2188 = vadd.f32 %v1696, %v2185
    %v2189 = vxor.u32 %v2188, 2147483648
    %v2190 = vmul.f32 %v2189, 1.442695
    %v2191 = vpow.pop %v2190
    %v2192 = vadd.f32 %v2191, 1.0
    %v2193 = vrcp.pop %v2192
    %v2194 = vmul.f32 1.0, %v2193
    %v2195 = vtanh.pop %v2188
    %v2196 = vmul.f32 %v2194, %v1684
    %2198 = vrot.lane.b32.xlu0 %v2195, 64
    %v2199 = vpop.permute.xlu0 %2198
    %v2201 = vmul.f32 %v2194, %v2199
    %2203 = vrot.lane.b32.xlu0 %v2201, 32
    %v2204 = vpop.permute.xlu0 %2203
    %v2206 = vadd.f32 %v2196, %v2204
    %v2207 = vtanh.pop %v2206
    %2209 = vrot.lane.b32.xlu0 %v2207, 64
    %v2210 = vpop.permute.xlu0 %2209
    %v2212 = vmul.f32 %v2194, %v2210
    %2214 = vrot.lane.b32.xlu0 %v2212, 32
    %v2215 = vpop.permute.xlu0 %2214
    %2217 = vst.msk [vmem:[#allocation4 + $0x4] sm:$0x3] %vm1172, %v2215
    %v2218 = vld [vmem:[#allocation3 + $0x6] sm:$0x3]
    %v2219 = vld [vmem:[%s5] sm:$0xff]
    %v2220 = vld [vmem:[%s5 + $0x8] sm:$0xff]
    %v2221 = vld [vmem:[%s5 + $0x10] sm:$0xff]
    %v2222 = vld [vmem:[%s5 + $0x18] sm:$0xff]
    %v2223 = vsel %vm107, %v2215, 0
    %2225 = vmatprep.subr.mxu0 0.0
    %v2226 = vand.u32 %v2219, 4294901760
    %2227 = vmatpush1.msra.mxu0 %v2226
    %2228 = vmatprep.subr.mxu0 0.0
    %v2229 = vand.u32 %v2220, 4294901760
    %2230 = vmatpush1.msra.mxu0 %v2229
    %2231 = vmatprep.subr.mxu0 0.0
    %v2232 = vand.u32 %v2221, 4294901760
    %2233 = vmatpush1.msra.mxu0 %v2232
    %2234 = vmatprep.subr.mxu0 0.0
    %v2235 = vand.u32 %v2222, 4294901760
    %2236 = vmatpush1.msra.mxu0 %v2235
    %2237 = vmatprep.subr.mxu0 0.0
    %2238 = vmatpush1.msra.mxu0 0.0
    %2239 = vmatprep.subr.mxu0 0.0
    %2240 = vmatpush1.msra.mxu0 0.0
    %2241 = vmatprep.subr.mxu0 0.0
    %2242 = vmatpush1.msra.mxu0 0.0
    %2243 = vmatprep.subr.mxu0 0.0
    %2244 = vmatpush1.msra.mxu0 0.0
    %2245 = vmatprep.subr.mxu0 0.0
    %2246 = vmatpush1.msra.mxu0 0.0
    %2247 = vmatprep.subr.mxu0 0.0
    %2248 = vmatpush1.msra.mxu0 0.0
    %2249 = vmatprep.subr.mxu0 0.0
    %2250 = vmatpush1.msra.mxu0 0.0
    %2251 = vmatprep.subr.mxu0 0.0
    %2252 = vmatpush1.msra.mxu0 0.0
    %2253 = vmatprep.subr.mxu0 0.0
    %2254 = vmatpush1.msra.mxu0 0.0
    %2255 = vmatprep.subr.mxu0 0.0
    %2256 = vmatpush1.msra.mxu0 0.0
    %2257 = vmatprep.subr.mxu0 0.0
    %2258 = vmatpush1.msra.mxu0 0.0
    %2259 = vmatprep.subr.mxu0 0.0
    %2260 = vmatpush1.msra.mxu0 0.0
    %2261 = vmatprep.subr.mxu0 0.0
    %2262 = vmatpush1.msra.mxu0 0.0
    %2263 = vmatprep.subr.mxu0 0.0
    %2264 = vmatpush1.msra.mxu0 0.0
    %2265 = vmatprep.subr.mxu0 0.0
    %2266 = vmatpush1.msra.mxu0 0.0
    %2267 = vmatprep.subr.mxu0 0.0
    %2268 = vmatpush1.msra.mxu0 0.0
    %2269 = vmatprep.subr.mxu0 0.0
    %2270 = vmatpush1.msra.mxu0 0.0
    %2271 = vmatprep.subr.mxu0 0.0
    %2272 = vmatpush1.msra.mxu0 0.0
    %2273 = vmatprep.subr.mxu0 0.0
    %2274 = vmatpush1.msra.mxu0 0.0
    %2275 = vmatprep.subr.mxu0 0.0
    %2276 = vmatpush1.msra.mxu0 0.0
    %2277 = vmatprep.subr.mxu0 0.0
    %2278 = vmatpush1.msra.mxu0 0.0
    %2279 = vmatprep.subr.mxu0 0.0
    %2280 = vmatpush1.msra.mxu0 0.0
    %2281 = vmatprep.subr.mxu0 0.0
    %2282 = vmatpush1.msra.mxu0 0.0
    %2283 = vmatprep.subr.mxu0 0.0
    %2284 = vmatpush1.msra.mxu0 0.0
    %2285 = vmatprep.subr.mxu0 0.0
    %2286 = vmatpush1.msra.mxu0 0.0
    %2287 = vmatprep.subr.mxu0 0.0
    %2288 = vmatpush1.msra.mxu0 0.0
    %2289 = vmatprep.subr.mxu0 0.0
    %2290 = vmatpush1.msra.mxu0 0.0
    %2291 = vmatprep.subr.mxu0 0.0
    %2292 = vmatpush1.msra.mxu0 0.0
    %2293 = vmatprep.mubr.f32.mxu0 0.0
    %v2294 = vand.u32 %v2223, 4294901760
    %v2295 = vsub.f32 %v2223, %v2294
    %v2296 = vand.u32 %v2295, 4294901760
    %v2297 = vsub.f32 %v2295, %v2296
    %v2298 = vand.u32 %v2297, 4294901760
    %2299 = vmatmul.mubr.f32.gmra.mrb[0].mxu0 %v2298
    %v2300 = vpop.f32.mrb[0].mxu0
    %v2301 = vadd.f32 0.0, %v2300
    %v2302 = vpop.f32.mrb[0].mxu0
    %2303 = vdwg.mxu0
    %2304 = vmatprep.subr.mxu0 0.0
    %v2305 = vand.u32 %v2219, 4294901760
    %v2306 = vsub.f32 %v2219, %v2305
    %v2307 = vand.u32 %v2306, 4294901760
    %v2308 = vsub.f32 %v2306, %v2307
    %v2309 = vand.u32 %v2308, 4294901760
    %2310 = vmatpush1.msra.mxu0 %v2309
    %2311 = vmatprep.subr.mxu0 0.0
    %v2312 = vand.u32 %v2220, 4294901760
    %v2313 = vsub.f32 %v2220, %v2312
    %v2314 = vand.u32 %v2313, 4294901760
    %v2315 = vsub.f32 %v2313, %v2314
    %v2316 = vand.u32 %v2315, 4294901760
    %2317 = vmatpush1.msra.mxu0 %v2316
    %2318 = vmatprep.subr.mxu0 0.0
    %v2319 = vand.u32 %v2221, 4294901760
    %v2320 = vsub.f32 %v2221, %v2319
    %v2321 = vand.u32 %v2320, 4294901760
    %v2322 = vsub.f32 %v2320, %v2321
    %v2323 = vand.u32 %v2322, 4294901760
    %2324 = vmatpush1.msra.mxu0 %v2323
    %2325 = vmatprep.subr.mxu0 0.0
    %v2326 = vand.u32 %v2222, 4294901760
    %v2327 = vsub.f32 %v2222, %v2326
    %v2328 = vand.u32 %v2327, 4294901760
    %v2329 = vsub.f32 %v2327, %v2328
    %v2330 = vand.u32 %v2329, 4294901760
    %2331 = vmatpush1.msra.mxu0 %v2330
    %2332 = vmatprep.subr.mxu0 0.0
    %2333 = vmatpush1.msra.mxu0 0.0
    %2334 = vmatprep.subr.mxu0 0.0
    %2335 = vmatpush1.msra.mxu0 0.0
    %2336 = vmatprep.subr.mxu0 0.0
    %2337 = vmatpush1.msra.mxu0 0.0
    %2338 = vmatprep.subr.mxu0 0.0
    %2339 = vmatpush1.msra.mxu0 0.0
    %2340 = vmatprep.subr.mxu0 0.0
    %2341 = vmatpush1.msra.mxu0 0.0
    %2342 = vmatprep.subr.mxu0 0.0
    %2343 = vmatpush1.msra.mxu0 0.0
    %2344 = vmatprep.subr.mxu0 0.0
    %2345 = vmatpush1.msra.mxu0 0.0
    %2346 = vmatprep.subr.mxu0 0.0
    %2347 = vmatpush1.msra.mxu0 0.0
    %2348 = vmatprep.subr.mxu0 0.0
    %2349 = vmatpush1.msra.mxu0 0.0
    %2350 = vmatprep.subr.mxu0 0.0
    %2351 = vmatpush1.msra.mxu0 0.0
    %2352 = vmatprep.subr.mxu0 0.0
    %2353 = vmatpush1.msra.mxu0 0.0
    %2354 = vmatprep.subr.mxu0 0.0
    %2355 = vmatpush1.msra.mxu0 0.0
    %2356 = vmatprep.subr.mxu0 0.0
    %2357 = vmatpush1.msra.mxu0 0.0
    %2358 = vmatprep.subr.mxu0 0.0
    %2359 = vmatpush1.msra.mxu0 0.0
    %2360 = vmatprep.subr.mxu0 0.0
    %2361 = vmatpush1.msra.mxu0 0.0
    %2362 = vmatprep.subr.mxu0 0.0
    %2363 = vmatpush1.msra.mxu0 0.0
    %2364 = vmatprep.subr.mxu0 0.0
    %2365 = vmatpush1.msra.mxu0 0.0
    %2366 = vmatprep.subr.mxu0 0.0
    %2367 = vmatpush1.msra.mxu0 0.0
    %2368 = vmatprep.subr.mxu0 0.0
    %2369 = vmatpush1.msra.mxu0 0.0
    %2370 = vmatprep.subr.mxu0 0.0
    %2371 = vmatpush1.msra.mxu0 0.0
    %2372 = vmatprep.subr.mxu0 0.0
    %2373 = vmatpush1.msra.mxu0 0.0
    %2374 = vmatprep.subr.mxu0 0.0
    %2375 = vmatpush1.msra.mxu0 0.0
    %2376 = vmatprep.subr.mxu0 0.0
    %2377 = vmatpush1.msra.mxu0 0.0
    %2378 = vmatprep.subr.mxu0 0.0
    %2379 = vmatpush1.msra.mxu0 0.0
    %2380 = vmatprep.subr.mxu0 0.0
    %2381 = vmatpush1.msra.mxu0 0.0
    %2382 = vmatprep.subr.mxu0 0.0
    %2383 = vmatpush1.msra.mxu0 0.0
    %2384 = vmatprep.subr.mxu0 0.0
    %2385 = vmatpush1.msra.mxu0 0.0
    %2386 = vmatprep.subr.mxu0 0.0
    %2387 = vmatpush1.msra.mxu0 0.0
    %2388 = vmatprep.mubr.f32.mxu0 0.0
    %v2389 = vand.u32 %v2223, 4294901760
    %2390 = vmatmul.mubr.f32.gmra.mrb[0].mxu0 %v2389
    %v2391 = vpop.f32.mrb[0].mxu0
    %v2392 = vadd.f32 %v2301, %v2391
    %v2393 = vpop.f32.mrb[0].mxu0
    %2394 = vdwg.mxu0
    %2395 = vmatprep.subr.mxu0 0.0
    %v2396 = vand.u32 %v2219, 4294901760
    %v2397 = vsub.f32 %v2219, %v2396
    %2398 = vmatpush1.msra.mxu0 %v2397
    %2399 = vmatprep.subr.mxu0 0.0
    %v2400 = vand.u32 %v2220, 4294901760
    %v2401 = vsub.f32 %v2220, %v2400
    %2402 = vmatpush1.msra.mxu0 %v2401
    %2403 = vmatprep.subr.mxu0 0.0
    %v2404 = vand.u32 %v2221, 4294901760
    %v2405 = vsub.f32 %v2221, %v2404
    %2406 = vmatpush1.msra.mxu0 %v2405
    %2407 = vmatprep.subr.mxu0 0.0
    %v2408 = vand.u32 %v2222, 4294901760
    %v2409 = vsub.f32 %v2222, %v2408
    %2410 = vmatpush1.msra.mxu0 %v2409
    %2411 = vmatprep.subr.mxu0 0.0
    %2412 = vmatpush1.msra.mxu0 0.0
    %2413 = vmatprep.subr.mxu0 0.0
    %2414 = vmatpush1.msra.mxu0 0.0
    %2415 = vmatprep.subr.mxu0 0.0
    %2416 = vmatpush1.msra.mxu0 0.0
    %2417 = vmatprep.subr.mxu0 0.0
    %2418 = vmatpush1.msra.mxu0 0.0
    %2419 = vmatprep.subr.mxu0 0.0
    %2420 = vmatpush1.msra.mxu0 0.0
    %2421 = vmatprep.subr.mxu0 0.0
    %2422 = vmatpush1.msra.mxu0 0.0
    %2423 = vmatprep.subr.mxu0 0.0
    %2424 = vmatpush1.msra.mxu0 0.0
    %2425 = vmatprep.subr.mxu0 0.0
    %2426 = vmatpush1.msra.mxu0 0.0
    %2427 = vmatprep.subr.mxu0 0.0
    %2428 = vmatpush1.msra.mxu0 0.0
    %2429 = vmatprep.subr.mxu0 0.0
    %2430 = vmatpush1.msra.mxu0 0.0
    %2431 = vmatprep.subr.mxu0 0.0
    %2432 = vmatpush1.msra.mxu0 0.0
    %2433 = vmatprep.subr.mxu0 0.0
    %2434 = vmatpush1.msra.mxu0 0.0
    %2435 = vmatprep.subr.mxu0 0.0
    %2436 = vmatpush1.msra.mxu0 0.0
    %2437 = vmatprep.subr.mxu0 0.0
    %2438 = vmatpush1.msra.mxu0 0.0
    %2439 = vmatprep.subr.mxu0 0.0
    %2440 = vmatpush1.msra.mxu0 0.0
    %2441 = vmatprep.subr.mxu0 0.0
    %2442 = vmatpush1.msra.mxu0 0.0
    %2443 = vmatprep.subr.mxu0 0.0
    %2444 = vmatpush1.msra.mxu0 0.0
    %2445 = vmatprep.subr.mxu0 0.0
    %2446 = vmatpush1.msra.mxu0 0.0
    %2447 = vmatprep.subr.mxu0 0.0
    %2448 = vmatpush1.msra.mxu0 0.0
    %2449 = vmatprep.subr.mxu0 0.0
    %2450 = vmatpush1.msra.mxu0 0.0
    %2451 = vmatprep.subr.mxu0 0.0
    %2452 = vmatpush1.msra.mxu0 0.0
    %2453 = vmatprep.subr.mxu0 0.0
    %2454 = vmatpush1.msra.mxu0 0.0
    %2455 = vmatprep.subr.mxu0 0.0
    %2456 = vmatpush1.msra.mxu0 0.0
    %2457 = vmatprep.subr.mxu0 0.0
    %2458 = vmatpush1.msra.mxu0 0.0
    %2459 = vmatprep.subr.mxu0 0.0
    %2460 = vmatpush1.msra.mxu0 0.0
    %2461 = vmatprep.subr.mxu0 0.0
    %2462 = vmatpush1.msra.mxu0 0.0
    %2463 = vmatprep.subr.mxu0 0.0
    %2464 = vmatpush1.msra.mxu0 0.0
    %2465 = vmatprep.subr.mxu0 0.0
    %2466 = vmatpush1.msra.mxu0 0.0
    %2467 = vmatprep.mubr.f32.mxu0 0.0
    %v2468 = vand.u32 %v2223, 4294901760
    %v2469 = vsub.f32 %v2223, %v2468
    %2470 = vmatmul.mubr.f32.gmra.mrb[0].mxu0 %v2469
    %v2471 = vpop.f32.mrb[0].mxu0
    %v2472 = vadd.f32 %v2392, %v2471
    %v2473 = vpop.f32.mrb[0].mxu0
    %2474 = vdwg.mxu0
    %2475 = vmatprep.subr.mxu0 0.0
    %v2476 = vand.u32 %v2219, 4294901760
    %2477 = vmatpush1.msra.mxu0 %v2476
    %2478 = vmatprep.subr.mxu0 0.0
    %v2479 = vand.u32 %v2220, 4294901760
    %2480 = vmatpush1.msra.mxu0 %v2479
    %2481 = vmatprep.subr.mxu0 0.0
    %v2482 = vand.u32 %v2221, 4294901760
    %2483 = vmatpush1.msra.mxu0 %v2482
    %2484 = vmatprep.subr.mxu0 0.0
    %v2485 = vand.u32 %v2222, 4294901760
    %2486 = vmatpush1.msra.mxu0 %v2485
    %2487 = vmatprep.subr.mxu0 0.0
    %2488 = vmatpush1.msra.mxu0 0.0
    %2489 = vmatprep.subr.mxu0 0.0
    %2490 = vmatpush1.msra.mxu0 0.0
    %2491 = vmatprep.subr.mxu0 0.0
    %2492 = vmatpush1.msra.mxu0 0.0
    %2493 = vmatprep.subr.mxu0 0.0
    %2494 = vmatpush1.msra.mxu0 0.0
    %2495 = vmatprep.subr.mxu0 0.0
    %2496 = vmatpush1.msra.mxu0 0.0
    %2497 = vmatprep.subr.mxu0 0.0
    %2498 = vmatpush1.msra.mxu0 0.0
    %2499 = vmatprep.subr.mxu0 0.0
    %2500 = vmatpush1.msra.mxu0 0.0
    %2501 = vmatprep.subr.mxu0 0.0
    %2502 = vmatpush1.msra.mxu0 0.0
    %2503 = vmatprep.subr.mxu0 0.0
    %2504 = vmatpush1.msra.mxu0 0.0
    %2505 = vmatprep.subr.mxu0 0.0
    %2506 = vmatpush1.msra.mxu0 0.0
    %2507 = vmatprep.subr.mxu0 0.0
    %2508 = vmatpush1.msra.mxu0 0.0
    %2509 = vmatprep.subr.mxu0 0.0
    %2510 = vmatpush1.msra.mxu0 0.0
    %2511 = vmatprep.subr.mxu0 0.0
    %2512 = vmatpush1.msra.mxu0 0.0
    %2513 = vmatprep.subr.mxu0 0.0
    %2514 = vmatpush1.msra.mxu0 0.0
    %2515 = vmatprep.subr.mxu0 0.0
    %2516 = vmatpush1.msra.mxu0 0.0
    %2517 = vmatprep.subr.mxu0 0.0
    %2518 = vmatpush1.msra.mxu0 0.0
    %2519 = vmatprep.subr.mxu0 0.0
    %2520 = vmatpush1.msra.mxu0 0.0
    %2521 = vmatprep.subr.mxu0 0.0
    %2522 = vmatpush1.msra.mxu0 0.0
    %2523 = vmatprep.subr.mxu0 0.0
    %2524 = vmatpush1.msra.mxu0 0.0
    %2525 = vmatprep.subr.mxu0 0.0
    %2526 = vmatpush1.msra.mxu0 0.0
    %2527 = vmatprep.subr.mxu0 0.0
    %2528 = vmatpush1.msra.mxu0 0.0
    %2529 = vmatprep.subr.mxu0 0.0
    %2530 = vmatpush1.msra.mxu0 0.0
    %2531 = vmatprep.subr.mxu0 0.0
    %2532 = vmatpush1.msra.mxu0 0.0
    %2533 = vmatprep.subr.mxu0 0.0
    %2534 = vmatpush1.msra.mxu0 0.0
    %2535 = vmatprep.subr.mxu0 0.0
    %2536 = vmatpush1.msra.mxu0 0.0
    %2537 = vmatprep.subr.mxu0 0.0
    %2538 = vmatpush1.msra.mxu0 0.0
    %2539 = vmatprep.subr.mxu0 0.0
    %2540 = vmatpush1.msra.mxu0 0.0
    %2541 = vmatprep.subr.mxu0 0.0
    %2542 = vmatpush1.msra.mxu0 0.0
    %2543 = vmatprep.mubr.f32.mxu0 0.0
    %v2544 = vand.u32 %v2223, 4294901760
    %v2545 = vsub.f32 %v2223, %v2544
    %v2546 = vand.u32 %v2545, 4294901760
    %2547 = vmatmul.mubr.f32.gmra.mrb[0].mxu0 %v2546
    %v2548 = vpop.f32.mrb[0].mxu0
    %v2549 = vadd.f32 %v2472, %v2548
    %v2550 = vpop.f32.mrb[0].mxu0
    %2551 = vdwg.mxu0
    %2552 = vmatprep.subr.mxu0 0.0
    %v2553 = vand.u32 %v2219, 4294901760
    %v2554 = vsub.f32 %v2219, %v2553
    %v2555 = vand.u32 %v2554, 4294901760
    %2556 = vmatpush1.msra.mxu0 %v2555
    %2557 = vmatprep.subr.mxu0 0.0
    %v2558 = vand.u32 %v2220, 4294901760
    %v2559 = vsub.f32 %v2220, %v2558
    %v2560 = vand.u32 %v2559, 4294901760
    %2561 = vmatpush1.msra.mxu0 %v2560
    %2562 = vmatprep.subr.mxu0 0.0
    %v2563 = vand.u32 %v2221, 4294901760
    %v2564 = vsub.f32 %v2221, %v2563
    %v2565 = vand.u32 %v2564, 4294901760
    %2566 = vmatpush1.msra.mxu0 %v2565
    %2567 = vmatprep.subr.mxu0 0.0
    %v2568 = vand.u32 %v2222, 4294901760
    %v2569 = vsub.f32 %v2222, %v2568
    %v2570 = vand.u32 %v2569, 4294901760
    %2571 = vmatpush1.msra.mxu0 %v2570
    %2572 = vmatprep.subr.mxu0 0.0
    %2573 = vmatpush1.msra.mxu0 0.0
    %2574 = vmatprep.subr.mxu0 0.0
    %2575 = vmatpush1.msra.mxu0 0.0
    %2576 = vmatprep.subr.mxu0 0.0
    %2577 = vmatpush1.msra.mxu0 0.0
    %2578 = vmatprep.subr.mxu0 0.0
    %2579 = vmatpush1.msra.mxu0 0.0
    %2580 = vmatprep.subr.mxu0 0.0
    %2581 = vmatpush1.msra.mxu0 0.0
    %2582 = vmatprep.subr.mxu0 0.0
    %2583 = vmatpush1.msra.mxu0 0.0
    %2584 = vmatprep.subr.mxu0 0.0
    %2585 = vmatpush1.msra.mxu0 0.0
    %2586 = vmatprep.subr.mxu0 0.0
    %2587 = vmatpush1.msra.mxu0 0.0
    %2588 = vmatprep.subr.mxu0 0.0
    %2589 = vmatpush1.msra.mxu0 0.0
    %2590 = vmatprep.subr.mxu0 0.0
    %2591 = vmatpush1.msra.mxu0 0.0
    %2592 = vmatprep.subr.mxu0 0.0
    %2593 = vmatpush1.msra.mxu0 0.0
    %2594 = vmatprep.subr.mxu0 0.0
    %2595 = vmatpush1.msra.mxu0 0.0
    %2596 = vmatprep.subr.mxu0 0.0
    %2597 = vmatpush1.msra.mxu0 0.0
    %2598 = vmatprep.subr.mxu0 0.0
    %2599 = vmatpush1.msra.mxu0 0.0
    %2600 = vmatprep.subr.mxu0 0.0
    %2601 = vmatpush1.msra.mxu0 0.0
    %2602 = vmatprep.subr.mxu0 0.0
    %2603 = vmatpush1.msra.mxu0 0.0
    %2604 = vmatprep.subr.mxu0 0.0
    %2605 = vmatpush1.msra.mxu0 0.0
    %2606 = vmatprep.subr.mxu0 0.0
    %2607 = vmatpush1.msra.mxu0 0.0
    %2608 = vmatprep.subr.mxu0 0.0
    %2609 = vmatpush1.msra.mxu0 0.0
    %2610 = vmatprep.subr.mxu0 0.0
    %2611 = vmatpush1.msra.mxu0 0.0
    %2612 = vmatprep.subr.mxu0 0.0
    %2613 = vmatpush1.msra.mxu0 0.0
    %2614 = vmatprep.subr.mxu0 0.0
    %2615 = vmatpush1.msra.mxu0 0.0
    %2616 = vmatprep.subr.mxu0 0.0
    %2617 = vmatpush1.msra.mxu0 0.0
    %2618 = vmatprep.subr.mxu0 0.0
    %2619 = vmatpush1.msra.mxu0 0.0
    %2620 = vmatprep.subr.mxu0 0.0
    %2621 = vmatpush1.msra.mxu0 0.0
    %2622 = vmatprep.subr.mxu0 0.0
    %2623 = vmatpush1.msra.mxu0 0.0
    %2624 = vmatprep.subr.mxu0 0.0
    %2625 = vmatpush1.msra.mxu0 0.0
    %2626 = vmatprep.subr.mxu0 0.0
    %2627 = vmatpush1.msra.mxu0 0.0
    %2628 = vmatprep.mubr.f32.mxu0 0.0
    %v2629 = vand.u32 %v2223, 4294901760
    %2630 = vmatmul.mubr.f32.gmra.mrb[0].mxu0 %v2629
    %v2631 = vpop.f32.mrb[0].mxu0
    %v2632 = vadd.f32 %v2549, %v2631
    %v2633 = vpop.f32.mrb[0].mxu0
    %2634 = vdwg.mxu0
    %2635 = vmatprep.subr.mxu0 0.0
    %v2636 = vand.u32 %v2219, 4294901760
    %2637 = vmatpush1.msra.mxu0 %v2636
    %2638 = vmatprep.subr.mxu0 0.0
    %v2639 = vand.u32 %v2220, 4294901760
    %2640 = vmatpush1.msra.mxu0 %v2639
    %2641 = vmatprep.subr.mxu0 0.0
    %v2642 = vand.u32 %v2221, 4294901760
    %2643 = vmatpush1.msra.mxu0 %v2642
    %2644 = vmatprep.subr.mxu0 0.0
    %v2645 = vand.u32 %v2222, 4294901760
    %2646 = vmatpush1.msra.mxu0 %v2645
    %2647 = vmatprep.subr.mxu0 0.0
    %2648 = vmatpush1.msra.mxu0 0.0
    %2649 = vmatprep.subr.mxu0 0.0
    %2650 = vmatpush1.msra.mxu0 0.0
    %2651 = vmatprep.subr.mxu0 0.0
    %2652 = vmatpush1.msra.mxu0 0.0
    %2653 = vmatprep.subr.mxu0 0.0
    %2654 = vmatpush1.msra.mxu0 0.0
    %2655 = vmatprep.subr.mxu0 0.0
    %2656 = vmatpush1.msra.mxu0 0.0
    %2657 = vmatprep.subr.mxu0 0.0
    %2658 = vmatpush1.msra.mxu0 0.0
    %2659 = vmatprep.subr.mxu0 0.0
    %2660 = vmatpush1.msra.mxu0 0.0
    %2661 = vmatprep.subr.mxu0 0.0
    %2662 = vmatpush1.msra.mxu0 0.0
    %2663 = vmatprep.subr.mxu0 0.0
    %2664 = vmatpush1.msra.mxu0 0.0
    %2665 = vmatprep.subr.mxu0 0.0
    %2666 = vmatpush1.msra.mxu0 0.0
    %2667 = vmatprep.subr.mxu0 0.0
    %2668 = vmatpush1.msra.mxu0 0.0
    %2669 = vmatprep.subr.mxu0 0.0
    %2670 = vmatpush1.msra.mxu0 0.0
    %2671 = vmatprep.subr.mxu0 0.0
    %2672 = vmatpush1.msra.mxu0 0.0
    %2673 = vmatprep.subr.mxu0 0.0
    %2674 = vmatpush1.msra.mxu0 0.0
    %2675 = vmatprep.subr.mxu0 0.0
    %2676 = vmatpush1.msra.mxu0 0.0
    %2677 = vmatprep.subr.mxu0 0.0
    %2678 = vmatpush1.msra.mxu0 0.0
    %2679 = vmatprep.subr.mxu0 0.0
    %2680 = vmatpush1.msra.mxu0 0.0
    %2681 = vmatprep.subr.mxu0 0.0
    %2682 = vmatpush1.msra.mxu0 0.0
    %2683 = vmatprep.subr.mxu0 0.0
    %2684 = vmatpush1.msra.mxu0 0.0
    %2685 = vmatprep.subr.mxu0 0.0
    %2686 = vmatpush1.msra.mxu0 0.0
    %2687 = vmatprep.subr.mxu0 0.0
    %2688 = vmatpush1.msra.mxu0 0.0
    %2689 = vmatprep.subr.mxu0 0.0
    %2690 = vmatpush1.msra.mxu0 0.0
    %2691 = vmatprep.subr.mxu0 0.0
    %2692 = vmatpush1.msra.mxu0 0.0
    %2693 = vmatprep.subr.mxu0 0.0
    %2694 = vmatpush1.msra.mxu0 0.0
    %2695 = vmatprep.subr.mxu0 0.0
    %2696 = vmatpush1.msra.mxu0 0.0
    %2697 = vmatprep.subr.mxu0 0.0
    %2698 = vmatpush1.msra.mxu0 0.0
    %2699 = vmatprep.subr.mxu0 0.0
    %2700 = vmatpush1.msra.mxu0 0.0
    %2701 = vmatprep.subr.mxu0 0.0
    %2702 = vmatpush1.msra.mxu0 0.0
    %2703 = vmatprep.mubr.f32.mxu0 0.0
    %v2704 = vand.u32 %v2223, 4294901760
    %2705 = vmatmul.mubr.f32.gmra.mrb[0].mxu0 %v2704
    %v2706 = vpop.f32.mrb[0].mxu0
    %v2707 = vadd.f32 %v2632, %v2706
    %v2708 = vpop.f32.mrb[0].mxu0
    %2709 = vdwg.mxu0
    %v2710 = vadd.f32 %v2218, %v2707
    %v2711 = vxor.u32 %v2710, 2147483648
    %v2712 = vmul.f32 %v2711, 1.442695
    %v2713 = vpow.pop %v2712
    %v2714 = vadd.f32 %v2713, 1.0
    %v2715 = vrcp.pop %v2714
    %v2716 = vmul.f32 1.0, %v2715
    %v2717 = vtanh.pop %v2710
    %v2718 = vmul.f32 %v2716, %v2206
    %2720 = vrot.lane.b32.xlu0 %v2717, 64
    %v2721 = vpop.permute.xlu0 %2720
    %v2723 = vmul.f32 %v2716, %v2721
    %2725 = vrot.lane.b32.xlu0 %v2723, 32
    %v2726 = vpop.permute.xlu0 %2725
    %v2728 = vadd.f32 %v2718, %v2726
    %v2729 = vtanh.pop %v2728
    %2731 = vrot.lane.b32.xlu0 %v2729, 64
    %v2732 = vpop.permute.xlu0 %2731
    %v2734 = vmul.f32 %v2716, %v2732
    %2736 = vrot.lane.b32.xlu0 %v2734, 32
    %v2737 = vpop.permute.xlu0 %2736
    %2739 = vst.msk [vmem:[#allocation4 + $0x6] sm:$0x3] %vm1172, %v2737
    %v2740 = vld [vmem:[#allocation3 + $0x8] sm:$0x3]
    %v2741 = vld [vmem:[%s5] sm:$0xff]
    %v2742 = vld [vmem:[%s5 + $0x8] sm:$0xff]
    %v2743 = vld [vmem:[%s5 + $0x10] sm:$0xff]
    %v2744 = vld [vmem:[%s5 + $0x18] sm:$0xff]
    %v2745 = vsel %vm107, %v2737, 0
    %2747 = vmatprep.subr.mxu0 0.0
    %v2748 = vand.u32 %v2741, 4294901760
    %2749 = vmatpush1.msra.mxu0 %v2748
    %2750 = vmatprep.subr.mxu0 0.0
    %v2751 = vand.u32 %v2742, 4294901760
    %2752 = vmatpush1.msra.mxu0 %v2751
    %2753 = vmatprep.subr.mxu0 0.0
    %v2754 = vand.u32 %v2743, 4294901760
    %2755 = vmatpush1.msra.mxu0 %v2754
    %2756 = vmatprep.subr.mxu0 0.0
    %v2757 = vand.u32 %v2744, 4294901760
    %2758 = vmatpush1.msra.mxu0 %v2757
    %2759 = vmatprep.subr.mxu0 0.0
    %2760 = vmatpush1.msra.mxu0 0.0
    %2761 = vmatprep.subr.mxu0 0.0
    %2762 = vmatpush1.msra.mxu0 0.0
    %2763 = vmatprep.subr.mxu0 0.0
    %2764 = vmatpush1.msra.mxu0 0.0
    %2765 = vmatprep.subr.mxu0 0.0
    %2766 = vmatpush1.msra.mxu0 0.0
    %2767 = vmatprep.subr.mxu0 0.0
    %2768 = vmatpush1.msra.mxu0 0.0
    %2769 = vmatprep.subr.mxu0 0.0
    %2770 = vmatpush1.msra.mxu0 0.0
    %2771 = vmatprep.subr.mxu0 0.0
    %2772 = vmatpush1.msra.mxu0 0.0
    %2773 = vmatprep.subr.mxu0 0.0
    %2774 = vmatpush1.msra.mxu0 0.0
    %2775 = vmatprep.subr.mxu0 0.0
    %2776 = vmatpush1.msra.mxu0 0.0
    %2777 = vmatprep.subr.mxu0 0.0
    %2778 = vmatpush1.msra.mxu0 0.0
    %2779 = vmatprep.subr.mxu0 0.0
    %2780 = vmatpush1.msra.mxu0 0.0
    %2781 = vmatprep.subr.mxu0 0.0
    %2782 = vmatpush1.msra.mxu0 0.0
    %2783 = vmatprep.subr.mxu0 0.0
    %2784 = vmatpush1.msra.mxu0 0.0
    %2785 = vmatprep.subr.mxu0 0.0
    %2786 = vmatpush1.msra.mxu0 0.0
    %2787 = vmatprep.subr.mxu0 0.0
    %2788 = vmatpush1.msra.mxu0 0.0
    %2789 = vmatprep.subr.mxu0 0.0
    %2790 = vmatpush1.msra.mxu0 0.0
    %2791 = vmatprep.subr.mxu0 0.0
    %2792 = vmatpush1.msra.mxu0 0.0
    %2793 = vmatprep.subr.mxu0 0.0
    %2794 = vmatpush1.msra.mxu0 0.0
    %2795 = vmatprep.subr.mxu0 0.0
    %2796 = vmatpush1.msra.mxu0 0.0
    %2797 = vmatprep.subr.mxu0 0.0
    %2798 = vmatpush1.msra.mxu0 0.0
    %2799 = vmatprep.subr.mxu0 0.0
    %2800 = vmatpush1.msra.mxu0 0.0
    %2801 = vmatprep.subr.mxu0 0.0
    %2802 = vmatpush1.msra.mxu0 0.0
    %2803 = vmatprep.subr.mxu0 0.0
    %2804 = vmatpush1.msra.mxu0 0.0
    %2805 = vmatprep.subr.mxu0 0.0
    %2806 = vmatpush1.msra.mxu0 0.0
    %2807 = vmatprep.subr.mxu0 0.0
    %2808 = vmatpush1.msra.mxu0 0.0
    %2809 = vmatprep.subr.mxu0 0.0
    %2810 = vmatpush1.msra.mxu0 0.0
    %2811 = vmatprep.subr.mxu0 0.0
    %2812 = vmatpush1.msra.mxu0 0.0
    %2813 = vmatprep.subr.mxu0 0.0
    %2814 = vmatpush1.msra.mxu0 0.0
    %2815 = vmatprep.mubr.f32.mxu0 0.0
    %v2816 = vand.u32 %v2745, 4294901760
    %v2817 = vsub.f32 %v2745, %v2816
    %v2818 = vand.u32 %v2817, 4294901760
    %v2819 = vsub.f32 %v2817, %v2818
    %v2820 = vand.u32 %v2819, 4294901760
    %2821 = vmatmul.mubr.f32.gmra.mrb[0].mxu0 %v2820
    %v2822 = vpop.f32.mrb[0].mxu0
    %v2823 = vadd.f32 0.0, %v2822
    %v2824 = vpop.f32.mrb[0].mxu0
    %2825 = vdwg.mxu0
    %2826 = vmatprep.subr.mxu0 0.0
    %v2827 = vand.u32 %v2741, 4294901760
    %v2828 = vsub.f32 %v2741, %v2827
    %v2829 = vand.u32 %v2828, 4294901760
    %v2830 = vsub.f32 %v2828, %v2829
    %v2831 = vand.u32 %v2830, 4294901760
    %2832 = vmatpush1.msra.mxu0 %v2831
    %2833 = vmatprep.subr.mxu0 0.0
    %v2834 = vand.u32 %v2742, 4294901760
    %v2835 = vsub.f32 %v2742, %v2834
    %v2836 = vand.u32 %v2835, 4294901760
    %v2837 = vsub.f32 %v2835, %v2836
    %v2838 = vand.u32 %v2837, 4294901760
    %2839 = vmatpush1.msra.mxu0 %v2838
    %2840 = vmatprep.subr.mxu0 0.0
    %v2841 = vand.u32 %v2743, 4294901760
    %v2842 = vsub.f32 %v2743, %v2841
    %v2843 = vand.u32 %v2842, 4294901760
    %v2844 = vsub.f32 %v2842, %v2843
    %v2845 = vand.u32 %v2844, 4294901760
    %2846 = vmatpush1.msra.mxu0 %v2845
    %2847 = vmatprep.subr.mxu0 0.0
    %v2848 = vand.u32 %v2744, 4294901760
    %v2849 = vsub.f32 %v2744, %v2848
    %v2850 = vand.u32 %v2849, 4294901760
    %v2851 = vsub.f32 %v2849, %v2850
    %v2852 = vand.u32 %v2851, 4294901760
    %2853 = vmatpush1.msra.mxu0 %v2852
    %2854 = vmatprep.subr.mxu0 0.0
    %2855 = vmatpush1.msra.mxu0 0.0
    %2856 = vmatprep.subr.mxu0 0.0
    %2857 = vmatpush1.msra.mxu0 0.0
    %2858 = vmatprep.subr.mxu0 0.0
    %2859 = vmatpush1.msra.mxu0 0.0
    %2860 = vmatprep.subr.mxu0 0.0
    %2861 = vmatpush1.msra.mxu0 0.0
    %2862 = vmatprep.subr.mxu0 0.0
    %2863 = vmatpush1.msra.mxu0 0.0
    %2864 = vmatprep.subr.mxu0 0.0
    %2865 = vmatpush1.msra.mxu0 0.0
    %2866 = vmatprep.subr.mxu0 0.0
    %2867 = vmatpush1.msra.mxu0 0.0
    %2868 = vmatprep.subr.mxu0 0.0
    %2869 = vmatpush1.msra.mxu0 0.0
    %2870 = vmatprep.subr.mxu0 0.0
    %2871 = vmatpush1.msra.mxu0 0.0
    %2872 = vmatprep.subr.mxu0 0.0
    %2873 = vmatpush1.msra.mxu0 0.0
    %2874 = vmatprep.subr.mxu0 0.0
    %2875 = vmatpush1.msra.mxu0 0.0
    %2876 = vmatprep.subr.mxu0 0.0
    %2877 = vmatpush1.msra.mxu0 0.0
    %2878 = vmatprep.subr.mxu0 0.0
    %2879 = vmatpush1.msra.mxu0 0.0
    %2880 = vmatprep.subr.mxu0 0.0
    %2881 = vmatpush1.msra.mxu0 0.0
    %2882 = vmatprep.subr.mxu0 0.0
    %2883 = vmatpush1.msra.mxu0 0.0
    %2884 = vmatprep.subr.mxu0 0.0
    %2885 = vmatpush1.msra.mxu0 0.0
    %2886 = vmatprep.subr.mxu0 0.0
    %2887 = vmatpush1.msra.mxu0 0.0
    %2888 = vmatprep.subr.mxu0 0.0
    %2889 = vmatpush1.msra.mxu0 0.0
    %2890 = vmatprep.subr.mxu0 0.0
    %2891 = vmatpush1.msra.mxu0 0.0
    %2892 = vmatprep.subr.mxu0 0.0
    %2893 = vmatpush1.msra.mxu0 0.0
    %2894 = vmatprep.subr.mxu0 0.0
    %2895 = vmatpush1.msra.mxu0 0.0
    %2896 = vmatprep.subr.mxu0 0.0
    %2897 = vmatpush1.msra.mxu0 0.0
    %2898 = vmatprep.subr.mxu0 0.0
    %2899 = vmatpush1.msra.mxu0 0.0
    %2900 = vmatprep.subr.mxu0 0.0
    %2901 = vmatpush1.msra.mxu0 0.0
    %2902 = vmatprep.subr.mxu0 0.0
    %2903 = vmatpush1.msra.mxu0 0.0
    %2904 = vmatprep.subr.mxu0 0.0
    %2905 = vmatpush1.msra.mxu0 0.0
    %2906 = vmatprep.subr.mxu0 0.0
    %2907 = vmatpush1.msra.mxu0 0.0
    %2908 = vmatprep.subr.mxu0 0.0
    %2909 = vmatpush1.msra.mxu0 0.0
    %2910 = vmatprep.mubr.f32.mxu0 0.0
    %v2911 = vand.u32 %v2745, 4294901760
    %2912 = vmatmul.mubr.f32.gmra.mrb[0].mxu0 %v2911
    %v2913 = vpop.f32.mrb[0].mxu0
    %v2914 = vadd.f32 %v2823, %v2913
    %v2915 = vpop.f32.mrb[0].mxu0
    %2916 = vdwg.mxu0
    %2917 = vmatprep.subr.mxu0 0.0
    %v2918 = vand.u32 %v2741, 4294901760
    %v2919 = vsub.f32 %v2741, %v2918
    %2920 = vmatpush1.msra.mxu0 %v2919
    %2921 = vmatprep.subr.mxu0 0.0
    %v2922 = vand.u32 %v2742, 4294901760
    %v2923 = vsub.f32 %v2742, %v2922
    %2924 = vmatpush1.msra.mxu0 %v2923
    %2925 = vmatprep.subr.mxu0 0.0
    %v2926 = vand.u32 %v2743, 4294901760
    %v2927 = vsub.f32 %v2743, %v2926
    %2928 = vmatpush1.msra.mxu0 %v2927
    %2929 = vmatprep.subr.mxu0 0.0
    %v2930 = vand.u32 %v2744, 4294901760
    %v2931 = vsub.f32 %v2744, %v2930
    %2932 = vmatpush1.msra.mxu0 %v2931
    %2933 = vmatprep.subr.mxu0 0.0
    %2934 = vmatpush1.msra.mxu0 0.0
    %2935 = vmatprep.subr.mxu0 0.0
    %2936 = vmatpush1.msra.mxu0 0.0
    %2937 = vmatprep.subr.mxu0 0.0
    %2938 = vmatpush1.msra.mxu0 0.0
    %2939 = vmatprep.subr.mxu0 0.0
    %2940 = vmatpush1.msra.mxu0 0.0
    %2941 = vmatprep.subr.mxu0 0.0
    %2942 = vmatpush1.msra.mxu0 0.0
    %2943 = vmatprep.subr.mxu0 0.0
    %2944 = vmatpush1.msra.mxu0 0.0
    %2945 = vmatprep.subr.mxu0 0.0
    %2946 = vmatpush1.msra.mxu0 0.0
    %2947 = vmatprep.subr.mxu0 0.0
    %2948 = vmatpush1.msra.mxu0 0.0
    %2949 = vmatprep.subr.mxu0 0.0
    %2950 = vmatpush1.msra.mxu0 0.0
    %2951 = vmatprep.subr.mxu0 0.0
    %2952 = vmatpush1.msra.mxu0 0.0
    %2953 = vmatprep.subr.mxu0 0.0
    %2954 = vmatpush1.msra.mxu0 0.0
    %2955 = vmatprep.subr.mxu0 0.0
    %2956 = vmatpush1.msra.mxu0 0.0
    %2957 = vmatprep.subr.mxu0 0.0
    %2958 = vmatpush1.msra.mxu0 0.0
    %2959 = vmatprep.subr.mxu0 0.0
    %2960 = vmatpush1.msra.mxu0 0.0
    %2961 = vmatprep.subr.mxu0 0.0
    %2962 = vmatpush1.msra.mxu0 0.0
    %2963 = vmatprep.subr.mxu0 0.0
    %2964 = vmatpush1.msra.mxu0 0.0
    %2965 = vmatprep.subr.mxu0 0.0
    %2966 = vmatpush1.msra.mxu0 0.0
    %2967 = vmatprep.subr.mxu0 0.0
    %2968 = vmatpush1.msra.mxu0 0.0
    %2969 = vmatprep.subr.mxu0 0.0
    %2970 = vmatpush1.msra.mxu0 0.0
    %2971 = vmatprep.subr.mxu0 0.0
    %2972 = vmatpush1.msra.mxu0 0.0
    %2973 = vmatprep.subr.mxu0 0.0
    %2974 = vmatpush1.msra.mxu0 0.0
    %2975 = vmatprep.subr.mxu0 0.0
    %2976 = vmatpush1.msra.mxu0 0.0
    %2977 = vmatprep.subr.mxu0 0.0
    %2978 = vmatpush1.msra.mxu0 0.0
    %2979 = vmatprep.subr.mxu0 0.0
    %2980 = vmatpush1.msra.mxu0 0.0
    %2981 = vmatprep.subr.mxu0 0.0
    %2982 = vmatpush1.msra.mxu0 0.0
    %2983 = vmatprep.subr.mxu0 0.0
    %2984 = vmatpush1.msra.mxu0 0.0
    %2985 = vmatprep.subr.mxu0 0.0
    %2986 = vmatpush1.msra.mxu0 0.0
    %2987 = vmatprep.subr.mxu0 0.0
    %2988 = vmatpush1.msra.mxu0 0.0
    %2989 = vmatprep.mubr.f32.mxu0 0.0
    %v2990 = vand.u32 %v2745, 4294901760
    %v2991 = vsub.f32 %v2745, %v2990
    %2992 = vmatmul.mubr.f32.gmra.mrb[0].mxu0 %v2991
    %v2993 = vpop.f32.mrb[0].mxu0
    %v2994 = vadd.f32 %v2914, %v2993
    %v2995 = vpop.f32.mrb[0].mxu0
    %2996 = vdwg.mxu0
    %2997 = vmatprep.subr.mxu0 0.0
    %v2998 = vand.u32 %v2741, 4294901760
    %2999 = vmatpush1.msra.mxu0 %v2998
    %3000 = vmatprep.subr.mxu0 0.0
    %v3001 = vand.u32 %v2742, 4294901760
    %3002 = vmatpush1.msra.mxu0 %v3001
    %3003 = vmatprep.subr.mxu0 0.0
    %v3004 = vand.u32 %v2743, 4294901760
    %3005 = vmatpush1.msra.mxu0 %v3004
    %3006 = vmatprep.subr.mxu0 0.0
    %v3007 = vand.u32 %v2744, 4294901760
    %3008 = vmatpush1.msra.mxu0 %v3007
    %3009 = vmatprep.subr.mxu0 0.0
    %3010 = vmatpush1.msra.mxu0 0.0
    %3011 = vmatprep.subr.mxu0 0.0
    %3012 = vmatpush1.msra.mxu0 0.0
    %3013 = vmatprep.subr.mxu0 0.0
    %3014 = vmatpush1.msra.mxu0 0.0
    %3015 = vmatprep.subr.mxu0 0.0
    %3016 = vmatpush1.msra.mxu0 0.0
    %3017 = vmatprep.subr.mxu0 0.0
    %3018 = vmatpush1.msra.mxu0 0.0
    %3019 = vmatprep.subr.mxu0 0.0
    %3020 = vmatpush1.msra.mxu0 0.0
    %3021 = vmatprep.subr.mxu0 0.0
    %3022 = vmatpush1.msra.mxu0 0.0
    %3023 = vmatprep.subr.mxu0 0.0
    %3024 = vmatpush1.msra.mxu0 0.0
    %3025 = vmatprep.subr.mxu0 0.0
    %3026 = vmatpush1.msra.mxu0 0.0
    %3027 = vmatprep.subr.mxu0 0.0
    %3028 = vmatpush1.msra.mxu0 0.0
    %3029 = vmatprep.subr.mxu0 0.0
    %3030 = vmatpush1.msra.mxu0 0.0
    %3031 = vmatprep.subr.mxu0 0.0
    %3032 = vmatpush1.msra.mxu0 0.0
    %3033 = vmatprep.subr.mxu0 0.0
    %3034 = vmatpush1.msra.mxu0 0.0
    %3035 = vmatprep.subr.mxu0 0.0
    %3036 = vmatpush1.msra.mxu0 0.0
    %3037 = vmatprep.subr.mxu0 0.0
    %3038 = vmatpush1.msra.mxu0 0.0
    %3039 = vmatprep.subr.mxu0 0.0
    %3040 = vmatpush1.msra.mxu0 0.0
    %3041 = vmatprep.subr.mxu0 0.0
    %3042 = vmatpush1.msra.mxu0 0.0
    %3043 = vmatprep.subr.mxu0 0.0
    %3044 = vmatpush1.msra.mxu0 0.0
    %3045 = vmatprep.subr.mxu0 0.0
    %3046 = vmatpush1.msra.mxu0 0.0
    %3047 = vmatprep.subr.mxu0 0.0
    %3048 = vmatpush1.msra.mxu0 0.0
    %3049 = vmatprep.subr.mxu0 0.0
    %3050 = vmatpush1.msra.mxu0 0.0
    %3051 = vmatprep.subr.mxu0 0.0
    %3052 = vmatpush1.msra.mxu0 0.0
    %3053 = vmatprep.subr.mxu0 0.0
    %3054 = vmatpush1.msra.mxu0 0.0
    %3055 = vmatprep.subr.mxu0 0.0
    %3056 = vmatpush1.msra.mxu0 0.0
    %3057 = vmatprep.subr.mxu0 0.0
    %3058 = vmatpush1.msra.mxu0 0.0
    %3059 = vmatprep.subr.mxu0 0.0
    %3060 = vmatpush1.msra.mxu0 0.0
    %3061 = vmatprep.subr.mxu0 0.0
    %3062 = vmatpush1.msra.mxu0 0.0
    %3063 = vmatprep.subr.mxu0 0.0
    %3064 = vmatpush1.msra.mxu0 0.0
    %3065 = vmatprep.mubr.f32.mxu0 0.0
    %v3066 = vand.u32 %v2745, 4294901760
    %v3067 = vsub.f32 %v2745, %v3066
    %v3068 = vand.u32 %v3067, 4294901760
    %3069 = vmatmul.mubr.f32.gmra.mrb[0].mxu0 %v3068
    %v3070 = vpop.f32.mrb[0].mxu0
    %v3071 = vadd.f32 %v2994, %v3070
    %v3072 = vpop.f32.mrb[0].mxu0
    %3073 = vdwg.mxu0
    %3074 = vmatprep.subr.mxu0 0.0
    %v3075 = vand.u32 %v2741, 4294901760
    %v3076 = vsub.f32 %v2741, %v3075
    %v3077 = vand.u32 %v3076, 4294901760
    %3078 = vmatpush1.msra.mxu0 %v3077
    %3079 = vmatprep.subr.mxu0 0.0
    %v3080 = vand.u32 %v2742, 4294901760
    %v3081 = vsub.f32 %v2742, %v3080
    %v3082 = vand.u32 %v3081, 4294901760
    %3083 = vmatpush1.msra.mxu0 %v3082
    %3084 = vmatprep.subr.mxu0 0.0
    %v3085 = vand.u32 %v2743, 4294901760
    %v3086 = vsub.f32 %v2743, %v3085
    %v3087 = vand.u32 %v3086, 4294901760
    %3088 = vmatpush1.msra.mxu0 %v3087
    %3089 = vmatprep.subr.mxu0 0.0
    %v3090 = vand.u32 %v2744, 4294901760
    %v3091 = vsub.f32 %v2744, %v3090
    %v3092 = vand.u32 %v3091, 4294901760
    %3093 = vmatpush1.msra.mxu0 %v3092
    %3094 = vmatprep.subr.mxu0 0.0
    %3095 = vmatpush1.msra.mxu0 0.0
    %3096 = vmatprep.subr.mxu0 0.0
    %3097 = vmatpush1.msra.mxu0 0.0
    %3098 = vmatprep.subr.mxu0 0.0
    %3099 = vmatpush1.msra.mxu0 0.0
    %3100 = vmatprep.subr.mxu0 0.0
    %3101 = vmatpush1.msra.mxu0 0.0
    %3102 = vmatprep.subr.mxu0 0.0
    %3103 = vmatpush1.msra.mxu0 0.0
    %3104 = vmatprep.subr.mxu0 0.0
    %3105 = vmatpush1.msra.mxu0 0.0
    %3106 = vmatprep.subr.mxu0 0.0
    %3107 = vmatpush1.msra.mxu0 0.0
    %3108 = vmatprep.subr.mxu0 0.0
    %3109 = vmatpush1.msra.mxu0 0.0
    %3110 = vmatprep.subr.mxu0 0.0
    %3111 = vmatpush1.msra.mxu0 0.0
    %3112 = vmatprep.subr.mxu0 0.0
    %3113 = vmatpush1.msra.mxu0 0.0
    %3114 = vmatprep.subr.mxu0 0.0
    %3115 = vmatpush1.msra.mxu0 0.0
    %3116 = vmatprep.subr.mxu0 0.0
    %3117 = vmatpush1.msra.mxu0 0.0
    %3118 = vmatprep.subr.mxu0 0.0
    %3119 = vmatpush1.msra.mxu0 0.0
    %3120 = vmatprep.subr.mxu0 0.0
    %3121 = vmatpush1.msra.mxu0 0.0
    %3122 = vmatprep.subr.mxu0 0.0
    %3123 = vmatpush1.msra.mxu0 0.0
    %3124 = vmatprep.subr.mxu0 0.0
    %3125 = vmatpush1.msra.mxu0 0.0
    %3126 = vmatprep.subr.mxu0 0.0
    %3127 = vmatpush1.msra.mxu0 0.0
    %3128 = vmatprep.subr.mxu0 0.0
    %3129 = vmatpush1.msra.mxu0 0.0
    %3130 = vmatprep.subr.mxu0 0.0
    %3131 = vmatpush1.msra.mxu0 0.0
    %3132 = vmatprep.subr.mxu0 0.0
    %3133 = vmatpush1.msra.mxu0 0.0
    %3134 = vmatprep.subr.mxu0 0.0
    %3135 = vmatpush1.msra.mxu0 0.0
    %3136 = vmatprep.subr.mxu0 0.0
    %3137 = vmatpush1.msra.mxu0 0.0
    %3138 = vmatprep.subr.mxu0 0.0
    %3139 = vmatpush1.msra.mxu0 0.0
    %3140 = vmatprep.subr.mxu0 0.0
    %3141 = vmatpush1.msra.mxu0 0.0
    %3142 = vmatprep.subr.mxu0 0.0
    %3143 = vmatpush1.msra.mxu0 0.0
    %3144 = vmatprep.subr.mxu0 0.0
    %3145 = vmatpush1.msra.mxu0 0.0
    %3146 = vmatprep.subr.mxu0 0.0
    %3147 = vmatpush1.msra.mxu0 0.0
    %3148 = vmatprep.subr.mxu0 0.0
    %3149 = vmatpush1.msra.mxu0 0.0
    %3150 = vmatprep.mubr.f32.mxu0 0.0
    %v3151 = vand.u32 %v2745, 4294901760
    %3152 = vmatmul.mubr.f32.gmra.mrb[0].mxu0 %v3151
    %v3153 = vpop.f32.mrb[0].mxu0
    %v3154 = vadd.f32 %v3071, %v3153
    %v3155 = vpop.f32.mrb[0].mxu0
    %3156 = vdwg.mxu0
    %3157 = vmatprep.subr.mxu0 0.0
    %v3158 = vand.u32 %v2741, 4294901760
    %3159 = vmatpush1.msra.mxu0 %v3158
    %3160 = vmatprep.subr.mxu0 0.0
    %v3161 = vand.u32 %v2742, 4294901760
    %3162 = vmatpush1.msra.mxu0 %v3161
    %3163 = vmatprep.subr.mxu0 0.0
    %v3164 = vand.u32 %v2743, 4294901760
    %3165 = vmatpush1.msra.mxu0 %v3164
    %3166 = vmatprep.subr.mxu0 0.0
    %v3167 = vand.u32 %v2744, 4294901760
    %3168 = vmatpush1.msra.mxu0 %v3167
    %3169 = vmatprep.subr.mxu0 0.0
    %3170 = vmatpush1.msra.mxu0 0.0
    %3171 = vmatprep.subr.mxu0 0.0
    %3172 = vmatpush1.msra.mxu0 0.0
    %3173 = vmatprep.subr.mxu0 0.0
    %3174 = vmatpush1.msra.mxu0 0.0
    %3175 = vmatprep.subr.mxu0 0.0
    %3176 = vmatpush1.msra.mxu0 0.0
    %3177 = vmatprep.subr.mxu0 0.0
    %3178 = vmatpush1.msra.mxu0 0.0
    %3179 = vmatprep.subr.mxu0 0.0
    %3180 = vmatpush1.msra.mxu0 0.0
    %3181 = vmatprep.subr.mxu0 0.0
    %3182 = vmatpush1.msra.mxu0 0.0
    %3183 = vmatprep.subr.mxu0 0.0
    %3184 = vmatpush1.msra.mxu0 0.0
    %3185 = vmatprep.subr.mxu0 0.0
    %3186 = vmatpush1.msra.mxu0 0.0
    %3187 = vmatprep.subr.mxu0 0.0
    %3188 = vmatpush1.msra.mxu0 0.0
    %3189 = vmatprep.subr.mxu0 0.0
    %3190 = vmatpush1.msra.mxu0 0.0
    %3191 = vmatprep.subr.mxu0 0.0
    %3192 = vmatpush1.msra.mxu0 0.0
    %3193 = vmatprep.subr.mxu0 0.0
    %3194 = vmatpush1.msra.mxu0 0.0
    %3195 = vmatprep.subr.mxu0 0.0
    %3196 = vmatpush1.msra.mxu0 0.0
    %3197 = vmatprep.subr.mxu0 0.0
    %3198 = vmatpush1.msra.mxu0 0.0
    %3199 = vmatprep.subr.mxu0 0.0
    %3200 = vmatpush1.msra.mxu0 0.0
    %3201 = vmatprep.subr.mxu0 0.0
    %3202 = vmatpush1.msra.mxu0 0.0
    %3203 = vmatprep.subr.mxu0 0.0
    %3204 = vmatpush1.msra.mxu0 0.0
    %3205 = vmatprep.subr.mxu0 0.0
    %3206 = vmatpush1.msra.mxu0 0.0
    %3207 = vmatprep.subr.mxu0 0.0
    %3208 = vmatpush1.msra.mxu0 0.0
    %3209 = vmatprep.subr.mxu0 0.0
    %3210 = vmatpush1.msra.mxu0 0.0
    %3211 = vmatprep.subr.mxu0 0.0
    %3212 = vmatpush1.msra.mxu0 0.0
    %3213 = vmatprep.subr.mxu0 0.0
    %3214 = vmatpush1.msra.mxu0 0.0
    %3215 = vmatprep.subr.mxu0 0.0
    %3216 = vmatpush1.msra.mxu0 0.0
    %3217 = vmatprep.subr.mxu0 0.0
    %3218 = vmatpush1.msra.mxu0 0.0
    %3219 = vmatprep.subr.mxu0 0.0
    %3220 = vmatpush1.msra.mxu0 0.0
    %3221 = vmatprep.subr.mxu0 0.0
    %3222 = vmatpush1.msra.mxu0 0.0
    %3223 = vmatprep.subr.mxu0 0.0
    %3224 = vmatpush1.msra.mxu0 0.0
    %3225 = vmatprep.mubr.f32.mxu0 0.0
    %v3226 = vand.u32 %v2745, 4294901760
    %3227 = vmatmul.mubr.f32.gmra.mrb[0].mxu0 %v3226
    %v3228 = vpop.f32.mrb[0].mxu0
    %v3229 = vadd.f32 %v3154, %v3228
    %v3230 = vpop.f32.mrb[0].mxu0
    %3231 = vdwg.mxu0
    %v3232 = vadd.f32 %v2740, %v3229
    %v3233 = vxor.u32 %v3232, 2147483648
    %v3234 = vmul.f32 %v3233, 1.442695
    %v3235 = vpow.pop %v3234
    %v3236 = vadd.f32 %v3235, 1.0
    %v3237 = vrcp.pop %v3236
    %v3238 = vmul.f32 1.0, %v3237
    %v3239 = vtanh.pop %v3232
    %v3240 = vmul.f32 %v3238, %v2728
    %3242 = vrot.lane.b32.xlu0 %v3239, 64
    %v3243 = vpop.permute.xlu0 %3242
    %v3245 = vmul.f32 %v3238, %v3243
    %3247 = vrot.lane.b32.xlu0 %v3245, 32
    %v3248 = vpop.permute.xlu0 %3247
    %v3250 = vadd.f32 %v3240, %v3248
    %v3251 = vtanh.pop %v3250
    %3253 = vrot.lane.b32.xlu0 %v3251, 64
    %v3254 = vpop.permute.xlu0 %3253
    %v3256 = vmul.f32 %v3238, %v3254
    %3258 = vrot.lane.b32.xlu0 %v3256, 32
    %v3259 = vpop.permute.xlu0 %3258
    %3261 = vst.msk [vmem:[#allocation4 + $0x8] sm:$0x3] %vm1172, %v3259
    %v3262 = vld [vmem:[#allocation3 + $0xa] sm:$0x3]
    %v3263 = vld [vmem:[%s5] sm:$0xff]
    %v3264 = vld [vmem:[%s5 + $0x8] sm:$0xff]
    %v3265 = vld [vmem:[%s5 + $0x10] sm:$0xff]
    %v3266 = vld [vmem:[%s5 + $0x18] sm:$0xff]
    %v3267 = vsel %vm107, %v3259, 0
    %3269 = vmatprep.subr.mxu0 0.0
    %v3270 = vand.u32 %v3263, 4294901760
    %3271 = vmatpush1.msra.mxu0 %v3270
    %3272 = vmatprep.subr.mxu0 0.0
    %v3273 = vand.u32 %v3264, 4294901760
    %3274 = vmatpush1.msra.mxu0 %v3273
    %3275 = vmatprep.subr.mxu0 0.0
    %v3276 = vand.u32 %v3265, 4294901760
    %3277 = vmatpush1.msra.mxu0 %v3276
    %3278 = vmatprep.subr.mxu0 0.0
    %v3279 = vand.u32 %v3266, 4294901760
    %3280 = vmatpush1.msra.mxu0 %v3279
    %3281 = vmatprep.subr.mxu0 0.0
    %3282 = vmatpush1.msra.mxu0 0.0
    %3283 = vmatprep.subr.mxu0 0.0
    %3284 = vmatpush1.msra.mxu0 0.0
    %3285 = vmatprep.subr.mxu0 0.0
    %3286 = vmatpush1.msra.mxu0 0.0
    %3287 = vmatprep.subr.mxu0 0.0
    %3288 = vmatpush1.msra.mxu0 0.0
    %3289 = vmatprep.subr.mxu0 0.0
    %3290 = vmatpush1.msra.mxu0 0.0
    %3291 = vmatprep.subr.mxu0 0.0
    %3292 = vmatpush1.msra.mxu0 0.0
    %3293 = vmatprep.subr.mxu0 0.0
    %3294 = vmatpush1.msra.mxu0 0.0
    %3295 = vmatprep.subr.mxu0 0.0
    %3296 = vmatpush1.msra.mxu0 0.0
    %3297 = vmatprep.subr.mxu0 0.0
    %3298 = vmatpush1.msra.mxu0 0.0
    %3299 = vmatprep.subr.mxu0 0.0
    %3300 = vmatpush1.msra.mxu0 0.0
    %3301 = vmatprep.subr.mxu0 0.0
    %3302 = vmatpush1.msra.mxu0 0.0
    %3303 = vmatprep.subr.mxu0 0.0
    %3304 = vmatpush1.msra.mxu0 0.0
    %3305 = vmatprep.subr.mxu0 0.0
    %3306 = vmatpush1.msra.mxu0 0.0
    %3307 = vmatprep.subr.mxu0 0.0
    %3308 = vmatpush1.msra.mxu0 0.0
    %3309 = vmatprep.subr.mxu0 0.0
    %3310 = vmatpush1.msra.mxu0 0.0
    %3311 = vmatprep.subr.mxu0 0.0
    %3312 = vmatpush1.msra.mxu0 0.0
    %3313 = vmatprep.subr.mxu0 0.0
    %3314 = vmatpush1.msra.mxu0 0.0
    %3315 = vmatprep.subr.mxu0 0.0
    %3316 = vmatpush1.msra.mxu0 0.0
    %3317 = vmatprep.subr.mxu0 0.0
    %3318 = vmatpush1.msra.mxu0 0.0
    %3319 = vmatprep.subr.mxu0 0.0
    %3320 = vmatpush1.msra.mxu0 0.0
    %3321 = vmatprep.subr.mxu0 0.0
    %3322 = vmatpush1.msra.mxu0 0.0
    %3323 = vmatprep.subr.mxu0 0.0
    %3324 = vmatpush1.msra.mxu0 0.0
    %3325 = vmatprep.subr.mxu0 0.0
    %3326 = vmatpush1.msra.mxu0 0.0
    %3327 = vmatprep.subr.mxu0 0.0
    %3328 = vmatpush1.msra.mxu0 0.0
    %3329 = vmatprep.subr.mxu0 0.0
    %3330 = vmatpush1.msra.mxu0 0.0
    %3331 = vmatprep.subr.mxu0 0.0
    %3332 = vmatpush1.msra.mxu0 0.0
    %3333 = vmatprep.subr.mxu0 0.0
    %3334 = vmatpush1.msra.mxu0 0.0
    %3335 = vmatprep.subr.mxu0 0.0
    %3336 = vmatpush1.msra.mxu0 0.0
    %3337 = vmatprep.mubr.f32.mxu0 0.0
    %v3338 = vand.u32 %v3267, 4294901760
    %v3339 = vsub.f32 %v3267, %v3338
    %v3340 = vand.u32 %v3339, 4294901760
    %v3341 = vsub.f32 %v3339, %v3340
    %v3342 = vand.u32 %v3341, 4294901760
    %3343 = vmatmul.mubr.f32.gmra.mrb[0].mxu0 %v3342
    %v3344 = vpop.f32.mrb[0].mxu0
    %v3345 = vadd.f32 0.0, %v3344
    %v3346 = vpop.f32.mrb[0].mxu0
    %3347 = vdwg.mxu0
    %3348 = vmatprep.subr.mxu0 0.0
    %v3349 = vand.u32 %v3263, 4294901760
    %v3350 = vsub.f32 %v3263, %v3349
    %v3351 = vand.u32 %v3350, 4294901760
    %v3352 = vsub.f32 %v3350, %v3351
    %v3353 = vand.u32 %v3352, 4294901760
    %3354 = vmatpush1.msra.mxu0 %v3353
    %3355 = vmatprep.subr.mxu0 0.0
    %v3356 = vand.u32 %v3264, 4294901760
    %v3357 = vsub.f32 %v3264, %v3356
    %v3358 = vand.u32 %v3357, 4294901760
    %v3359 = vsub.f32 %v3357, %v3358
    %v3360 = vand.u32 %v3359, 4294901760
    %3361 = vmatpush1.msra.mxu0 %v3360
    %3362 = vmatprep.subr.mxu0 0.0
    %v3363 = vand.u32 %v3265, 4294901760
    %v3364 = vsub.f32 %v3265, %v3363
    %v3365 = vand.u32 %v3364, 4294901760
    %v3366 = vsub.f32 %v3364, %v3365
    %v3367 = vand.u32 %v3366, 4294901760
    %3368 = vmatpush1.msra.mxu0 %v3367
    %3369 = vmatprep.subr.mxu0 0.0
    %v3370 = vand.u32 %v3266, 4294901760
    %v3371 = vsub.f32 %v3266, %v3370
    %v3372 = vand.u32 %v3371, 4294901760
    %v3373 = vsub.f32 %v3371, %v3372
    %v3374 = vand.u32 %v3373, 4294901760
    %3375 = vmatpush1.msra.mxu0 %v3374
    %3376 = vmatprep.subr.mxu0 0.0
    %3377 = vmatpush1.msra.mxu0 0.0
    %3378 = vmatprep.subr.mxu0 0.0
    %3379 = vmatpush1.msra.mxu0 0.0
    %3380 = vmatprep.subr.mxu0 0.0
    %3381 = vmatpush1.msra.mxu0 0.0
    %3382 = vmatprep.subr.mxu0 0.0
    %3383 = vmatpush1.msra.mxu0 0.0
    %3384 = vmatprep.subr.mxu0 0.0
    %3385 = vmatpush1.msra.mxu0 0.0
    %3386 = vmatprep.subr.mxu0 0.0
    %3387 = vmatpush1.msra.mxu0 0.0
    %3388 = vmatprep.subr.mxu0 0.0
    %3389 = vmatpush1.msra.mxu0 0.0
    %3390 = vmatprep.subr.mxu0 0.0
    %3391 = vmatpush1.msra.mxu0 0.0
    %3392 = vmatprep.subr.mxu0 0.0
    %3393 = vmatpush1.msra.mxu0 0.0
    %3394 = vmatprep.subr.mxu0 0.0
    %3395 = vmatpush1.msra.mxu0 0.0
    %3396 = vmatprep.subr.mxu0 0.0
    %3397 = vmatpush1.msra.mxu0 0.0
    %3398 = vmatprep.subr.mxu0 0.0
    %3399 = vmatpush1.msra.mxu0 0.0
    %3400 = vmatprep.subr.mxu0 0.0
    %3401 = vmatpush1.msra.mxu0 0.0
    %3402 = vmatprep.subr.mxu0 0.0
    %3403 = vmatpush1.msra.mxu0 0.0
    %3404 = vmatprep.subr.mxu0 0.0
    %3405 = vmatpush1.msra.mxu0 0.0
    %3406 = vmatprep.subr.mxu0 0.0
    %3407 = vmatpush1.msra.mxu0 0.0
    %3408 = vmatprep.subr.mxu0 0.0
    %3409 = vmatpush1.msra.mxu0 0.0
    %3410 = vmatprep.subr.mxu0 0.0
    %3411 = vmatpush1.msra.mxu0 0.0
    %3412 = vmatprep.subr.mxu0 0.0
    %3413 = vmatpush1.msra.mxu0 0.0
    %3414 = vmatprep.subr.mxu0 0.0
    %3415 = vmatpush1.msra.mxu0 0.0
    %3416 = vmatprep.subr.mxu0 0.0
    %3417 = vmatpush1.msra.mxu0 0.0
    %3418 = vmatprep.subr.mxu0 0.0
    %3419 = vmatpush1.msra.mxu0 0.0
    %3420 = vmatprep.subr.mxu0 0.0
    %3421 = vmatpush1.msra.mxu0 0.0
    %3422 = vmatprep.subr.mxu0 0.0
    %3423 = vmatpush1.msra.mxu0 0.0
    %3424 = vmatprep.subr.mxu0 0.0
    %3425 = vmatpush1.msra.mxu0 0.0
    %3426 = vmatprep.subr.mxu0 0.0
    %3427 = vmatpush1.msra.mxu0 0.0
    %3428 = vmatprep.subr.mxu0 0.0
    %3429 = vmatpush1.msra.mxu0 0.0
    %3430 = vmatprep.subr.mxu0 0.0
    %3431 = vmatpush1.msra.mxu0 0.0
    %3432 = vmatprep.mubr.f32.mxu0 0.0
    %v3433 = vand.u32 %v3267, 4294901760
    %3434 = vmatmul.mubr.f32.gmra.mrb[0].mxu0 %v3433
    %v3435 = vpop.f32.mrb[0].mxu0
    %v3436 = vadd.f32 %v3345, %v3435
    %v3437 = vpop.f32.mrb[0].mxu0
    %3438 = vdwg.mxu0
    %3439 = vmatprep.subr.mxu0 0.0
    %v3440 = vand.u32 %v3263, 4294901760
    %v3441 = vsub.f32 %v3263, %v3440
    %3442 = vmatpush1.msra.mxu0 %v3441
    %3443 = vmatprep.subr.mxu0 0.0
    %v3444 = vand.u32 %v3264, 4294901760
    %v3445 = vsub.f32 %v3264, %v3444
    %3446 = vmatpush1.msra.mxu0 %v3445
    %3447 = vmatprep.subr.mxu0 0.0
    %v3448 = vand.u32 %v3265, 4294901760
    %v3449 = vsub.f32 %v3265, %v3448
    %3450 = vmatpush1.msra.mxu0 %v3449
    %3451 = vmatprep.subr.mxu0 0.0
    %v3452 = vand.u32 %v3266, 4294901760
    %v3453 = vsub.f32 %v3266, %v3452
    %3454 = vmatpush1.msra.mxu0 %v3453
    %3455 = vmatprep.subr.mxu0 0.0
    %3456 = vmatpush1.msra.mxu0 0.0
    %3457 = vmatprep.subr.mxu0 0.0
    %3458 = vmatpush1.msra.mxu0 0.0
    %3459 = vmatprep.subr.mxu0 0.0
    %3460 = vmatpush1.msra.mxu0 0.0
    %3461 = vmatprep.subr.mxu0 0.0
    %3462 = vmatpush1.msra.mxu0 0.0
    %3463 = vmatprep.subr.mxu0 0.0
    %3464 = vmatpush1.msra.mxu0 0.0
    %3465 = vmatprep.subr.mxu0 0.0
    %3466 = vmatpush1.msra.mxu0 0.0
    %3467 = vmatprep.subr.mxu0 0.0
    %3468 = vmatpush1.msra.mxu0 0.0
    %3469 = vmatprep.subr.mxu0 0.0
    %3470 = vmatpush1.msra.mxu0 0.0
    %3471 = vmatprep.subr.mxu0 0.0
    %3472 = vmatpush1.msra.mxu0 0.0
    %3473 = vmatprep.subr.mxu0 0.0
    %3474 = vmatpush1.msra.mxu0 0.0
    %3475 = vmatprep.subr.mxu0 0.0
    %3476 = vmatpush1.msra.mxu0 0.0
    %3477 = vmatprep.subr.mxu0 0.0
    %3478 = vmatpush1.msra.mxu0 0.0
    %3479 = vmatprep.subr.mxu0 0.0
    %3480 = vmatpush1.msra.mxu0 0.0
    %3481 = vmatprep.subr.mxu0 0.0
    %3482 = vmatpush1.msra.mxu0 0.0
    %3483 = vmatprep.subr.mxu0 0.0
    %3484 = vmatpush1.msra.mxu0 0.0
    %3485 = vmatprep.subr.mxu0 0.0
    %3486 = vmatpush1.msra.mxu0 0.0
    %3487 = vmatprep.subr.mxu0 0.0
    %3488 = vmatpush1.msra.mxu0 0.0
    %3489 = vmatprep.subr.mxu0 0.0
    %3490 = vmatpush1.msra.mxu0 0.0
    %3491 = vmatprep.subr.mxu0 0.0
    %3492 = vmatpush1.msra.mxu0 0.0
    %3493 = vmatprep.subr.mxu0 0.0
    %3494 = vmatpush1.msra.mxu0 0.0
    %3495 = vmatprep.subr.mxu0 0.0
    %3496 = vmatpush1.msra.mxu0 0.0
    %3497 = vmatprep.subr.mxu0 0.0
    %3498 = vmatpush1.msra.mxu0 0.0
    %3499 = vmatprep.subr.mxu0 0.0
    %3500 = vmatpush1.msra.mxu0 0.0
    %3501 = vmatprep.subr.mxu0 0.0
    %3502 = vmatpush1.msra.mxu0 0.0
    %3503 = vmatprep.subr.mxu0 0.0
    %3504 = vmatpush1.msra.mxu0 0.0
    %3505 = vmatprep.subr.mxu0 0.0
    %3506 = vmatpush1.msra.mxu0 0.0
    %3507 = vmatprep.subr.mxu0 0.0
    %3508 = vmatpush1.msra.mxu0 0.0
    %3509 = vmatprep.subr.mxu0 0.0
    %3510 = vmatpush1.msra.mxu0 0.0
    %3511 = vmatprep.mubr.f32.mxu0 0.0
    %v3512 = vand.u32 %v3267, 4294901760
    %v3513 = vsub.f32 %v3267, %v3512
    %3514 = vmatmul.mubr.f32.gmra.mrb[0].mxu0 %v3513
    %v3515 = vpop.f32.mrb[0].mxu0
    %v3516 = vadd.f32 %v3436, %v3515
    %v3517 = vpop.f32.mrb[0].mxu0
    %3518 = vdwg.mxu0
    %3519 = vmatprep.subr.mxu0 0.0
    %v3520 = vand.u32 %v3263, 4294901760
    %3521 = vmatpush1.msra.mxu0 %v3520
    %3522 = vmatprep.subr.mxu0 0.0
    %v3523 = vand.u32 %v3264, 4294901760
    %3524 = vmatpush1.msra.mxu0 %v3523
    %3525 = vmatprep.subr.mxu0 0.0
    %v3526 = vand.u32 %v3265, 4294901760
    %3527 = vmatpush1.msra.mxu0 %v3526
    %3528 = vmatprep.subr.mxu0 0.0
    %v3529 = vand.u32 %v3266, 4294901760
    %3530 = vmatpush1.msra.mxu0 %v3529
    %3531 = vmatprep.subr.mxu0 0.0
    %3532 = vmatpush1.msra.mxu0 0.0
    %3533 = vmatprep.subr.mxu0 0.0
    %3534 = vmatpush1.msra.mxu0 0.0
    %3535 = vmatprep.subr.mxu0 0.0
    %3536 = vmatpush1.msra.mxu0 0.0
    %3537 = vmatprep.subr.mxu0 0.0
    %3538 = vmatpush1.msra.mxu0 0.0
    %3539 = vmatprep.subr.mxu0 0.0
    %3540 = vmatpush1.msra.mxu0 0.0
    %3541 = vmatprep.subr.mxu0 0.0
    %3542 = vmatpush1.msra.mxu0 0.0
    %3543 = vmatprep.subr.mxu0 0.0
    %3544 = vmatpush1.msra.mxu0 0.0
    %3545 = vmatprep.subr.mxu0 0.0
    %3546 = vmatpush1.msra.mxu0 0.0
    %3547 = vmatprep.subr.mxu0 0.0
    %3548 = vmatpush1.msra.mxu0 0.0
    %3549 = vmatprep.subr.mxu0 0.0
    %3550 = vmatpush1.msra.mxu0 0.0
    %3551 = vmatprep.subr.mxu0 0.0
    %3552 = vmatpush1.msra.mxu0 0.0
    %3553 = vmatprep.subr.mxu0 0.0
    %3554 = vmatpush1.msra.mxu0 0.0
    %3555 = vmatprep.subr.mxu0 0.0
    %3556 = vmatpush1.msra.mxu0 0.0
    %3557 = vmatprep.subr.mxu0 0.0
    %3558 = vmatpush1.msra.mxu0 0.0
    %3559 = vmatprep.subr.mxu0 0.0
    %3560 = vmatpush1.msra.mxu0 0.0
    %3561 = vmatprep.subr.mxu0 0.0
    %3562 = vmatpush1.msra.mxu0 0.0
    %3563 = vmatprep.subr.mxu0 0.0
    %3564 = vmatpush1.msra.mxu0 0.0
    %3565 = vmatprep.subr.mxu0 0.0
    %3566 = vmatpush1.msra.mxu0 0.0
    %3567 = vmatprep.subr.mxu0 0.0
    %3568 = vmatpush1.msra.mxu0 0.0
    %3569 = vmatprep.subr.mxu0 0.0
    %3570 = vmatpush1.msra.mxu0 0.0
    %3571 = vmatprep.subr.mxu0 0.0
    %3572 = vmatpush1.msra.mxu0 0.0
    %3573 = vmatprep.subr.mxu0 0.0
    %3574 = vmatpush1.msra.mxu0 0.0
    %3575 = vmatprep.subr.mxu0 0.0
    %3576 = vmatpush1.msra.mxu0 0.0
    %3577 = vmatprep.subr.mxu0 0.0
    %3578 = vmatpush1.msra.mxu0 0.0
    %3579 = vmatprep.subr.mxu0 0.0
    %3580 = vmatpush1.msra.mxu0 0.0
    %3581 = vmatprep.subr.mxu0 0.0
    %3582 = vmatpush1.msra.mxu0 0.0
    %3583 = vmatprep.subr.mxu0 0.0
    %3584 = vmatpush1.msra.mxu0 0.0
    %3585 = vmatprep.subr.mxu0 0.0
    %3586 = vmatpush1.msra.mxu0 0.0
    %3587 = vmatprep.mubr.f32.mxu0 0.0
    %v3588 = vand.u32 %v3267, 4294901760
    %v3589 = vsub.f32 %v3267, %v3588
    %v3590 = vand.u32 %v3589, 4294901760
    %3591 = vmatmul.mubr.f32.gmra.mrb[0].mxu0 %v3590
    %v3592 = vpop.f32.mrb[0].mxu0
    %v3593 = vadd.f32 %v3516, %v3592
    %v3594 = vpop.f32.mrb[0].mxu0
    %3595 = vdwg.mxu0
    %3596 = vmatprep.subr.mxu0 0.0
    %v3597 = vand.u32 %v3263, 4294901760
    %v3598 = vsub.f32 %v3263, %v3597
    %v3599 = vand.u32 %v3598, 4294901760
    %3600 = vmatpush1.msra.mxu0 %v3599
    %3601 = vmatprep.subr.mxu0 0.0
    %v3602 = vand.u32 %v3264, 4294901760
    %v3603 = vsub.f32 %v3264, %v3602
    %v3604 = vand.u32 %v3603, 4294901760
    %3605 = vmatpush1.msra.mxu0 %v3604
    %3606 = vmatprep.subr.mxu0 0.0
    %v3607 = vand.u32 %v3265, 4294901760
    %v3608 = vsub.f32 %v3265, %v3607
    %v3609 = vand.u32 %v3608, 4294901760
    %3610 = vmatpush1.msra.mxu0 %v3609
    %3611 = vmatprep.subr.mxu0 0.0
    %v3612 = vand.u32 %v3266, 4294901760
    %v3613 = vsub.f32 %v3266, %v3612
    %v3614 = vand.u32 %v3613, 4294901760
    %3615 = vmatpush1.msra.mxu0 %v3614
    %3616 = vmatprep.subr.mxu0 0.0
    %3617 = vmatpush1.msra.mxu0 0.0
    %3618 = vmatprep.subr.mxu0 0.0
    %3619 = vmatpush1.msra.mxu0 0.0
    %3620 = vmatprep.subr.mxu0 0.0
    %3621 = vmatpush1.msra.mxu0 0.0
    %3622 = vmatprep.subr.mxu0 0.0
    %3623 = vmatpush1.msra.mxu0 0.0
    %3624 = vmatprep.subr.mxu0 0.0
    %3625 = vmatpush1.msra.mxu0 0.0
    %3626 = vmatprep.subr.mxu0 0.0
    %3627 = vmatpush1.msra.mxu0 0.0
    %3628 = vmatprep.subr.mxu0 0.0
    %3629 = vmatpush1.msra.mxu0 0.0
    %3630 = vmatprep.subr.mxu0 0.0
    %3631 = vmatpush1.msra.mxu0 0.0
    %3632 = vmatprep.subr.mxu0 0.0
    %3633 = vmatpush1.msra.mxu0 0.0
    %3634 = vmatprep.subr.mxu0 0.0
    %3635 = vmatpush1.msra.mxu0 0.0
    %3636 = vmatprep.subr.mxu0 0.0
    %3637 = vmatpush1.msra.mxu0 0.0
    %3638 = vmatprep.subr.mxu0 0.0
    %3639 = vmatpush1.msra.mxu0 0.0
    %3640 = vmatprep.subr.mxu0 0.0
    %3641 = vmatpush1.msra.mxu0 0.0
    %3642 = vmatprep.subr.mxu0 0.0
    %3643 = vmatpush1.msra.mxu0 0.0
    %3644 = vmatprep.subr.mxu0 0.0
    %3645 = vmatpush1.msra.mxu0 0.0
    %3646 = vmatprep.subr.mxu0 0.0
    %3647 = vmatpush1.msra.mxu0 0.0
    %3648 = vmatprep.subr.mxu0 0.0
    %3649 = vmatpush1.msra.mxu0 0.0
    %3650 = vmatprep.subr.mxu0 0.0
    %3651 = vmatpush1.msra.mxu0 0.0
    %3652 = vmatprep.subr.mxu0 0.0
    %3653 = vmatpush1.msra.mxu0 0.0
    %3654 = vmatprep.subr.mxu0 0.0
    %3655 = vmatpush1.msra.mxu0 0.0
    %3656 = vmatprep.subr.mxu0 0.0
    %3657 = vmatpush1.msra.mxu0 0.0
    %3658 = vmatprep.subr.mxu0 0.0
    %3659 = vmatpush1.msra.mxu0 0.0
    %3660 = vmatprep.subr.mxu0 0.0
    %3661 = vmatpush1.msra.mxu0 0.0
    %3662 = vmatprep.subr.mxu0 0.0
    %3663 = vmatpush1.msra.mxu0 0.0
    %3664 = vmatprep.subr.mxu0 0.0
    %3665 = vmatpush1.msra.mxu0 0.0
    %3666 = vmatprep.subr.mxu0 0.0
    %3667 = vmatpush1.msra.mxu0 0.0
    %3668 = vmatprep.subr.mxu0 0.0
    %3669 = vmatpush1.msra.mxu0 0.0
    %3670 = vmatprep.subr.mxu0 0.0
    %3671 = vmatpush1.msra.mxu0 0.0
    %3672 = vmatprep.mubr.f32.mxu0 0.0
    %v3673 = vand.u32 %v3267, 4294901760
    %3674 = vmatmul.mubr.f32.gmra.mrb[0].mxu0 %v3673
    %v3675 = vpop.f32.mrb[0].mxu0
    %v3676 = vadd.f32 %v3593, %v3675
    %v3677 = vpop.f32.mrb[0].mxu0
    %3678 = vdwg.mxu0
    %3679 = vmatprep.subr.mxu0 0.0
    %v3680 = vand.u32 %v3263, 4294901760
    %3681 = vmatpush1.msra.mxu0 %v3680
    %3682 = vmatprep.subr.mxu0 0.0
    %v3683 = vand.u32 %v3264, 4294901760
    %3684 = vmatpush1.msra.mxu0 %v3683
    %3685 = vmatprep.subr.mxu0 0.0
    %v3686 = vand.u32 %v3265, 4294901760
    %3687 = vmatpush1.msra.mxu0 %v3686
    %3688 = vmatprep.subr.mxu0 0.0
    %v3689 = vand.u32 %v3266, 4294901760
    %3690 = vmatpush1.msra.mxu0 %v3689
    %3691 = vmatprep.subr.mxu0 0.0
    %3692 = vmatpush1.msra.mxu0 0.0
    %3693 = vmatprep.subr.mxu0 0.0
    %3694 = vmatpush1.msra.mxu0 0.0
    %3695 = vmatprep.subr.mxu0 0.0
    %3696 = vmatpush1.msra.mxu0 0.0
    %3697 = vmatprep.subr.mxu0 0.0
    %3698 = vmatpush1.msra.mxu0 0.0
    %3699 = vmatprep.subr.mxu0 0.0
    %3700 = vmatpush1.msra.mxu0 0.0
    %3701 = vmatprep.subr.mxu0 0.0
    %3702 = vmatpush1.msra.mxu0 0.0
    %3703 = vmatprep.subr.mxu0 0.0
    %3704 = vmatpush1.msra.mxu0 0.0
    %3705 = vmatprep.subr.mxu0 0.0
    %3706 = vmatpush1.msra.mxu0 0.0
    %3707 = vmatprep.subr.mxu0 0.0
    %3708 = vmatpush1.msra.mxu0 0.0
    %3709 = vmatprep.subr.mxu0 0.0
    %3710 = vmatpush1.msra.mxu0 0.0
    %3711 = vmatprep.subr.mxu0 0.0
    %3712 = vmatpush1.msra.mxu0 0.0
    %3713 = vmatprep.subr.mxu0 0.0
    %3714 = vmatpush1.msra.mxu0 0.0
    %3715 = vmatprep.subr.mxu0 0.0
    %3716 = vmatpush1.msra.mxu0 0.0
    %3717 = vmatprep.subr.mxu0 0.0
    %3718 = vmatpush1.msra.mxu0 0.0
    %3719 = vmatprep.subr.mxu0 0.0
    %3720 = vmatpush1.msra.mxu0 0.0
    %3721 = vmatprep.subr.mxu0 0.0
    %3722 = vmatpush1.msra.mxu0 0.0
    %3723 = vmatprep.subr.mxu0 0.0
    %3724 = vmatpush1.msra.mxu0 0.0
    %3725 = vmatprep.subr.mxu0 0.0
    %3726 = vmatpush1.msra.mxu0 0.0
    %3727 = vmatprep.subr.mxu0 0.0
    %3728 = vmatpush1.msra.mxu0 0.0
    %3729 = vmatprep.subr.mxu0 0.0
    %3730 = vmatpush1.msra.mxu0 0.0
    %3731 = vmatprep.subr.mxu0 0.0
    %3732 = vmatpush1.msra.mxu0 0.0
    %3733 = vmatprep.subr.mxu0 0.0
    %3734 = vmatpush1.msra.mxu0 0.0
    %3735 = vmatprep.subr.mxu0 0.0
    %3736 = vmatpush1.msra.mxu0 0.0
    %3737 = vmatprep.subr.mxu0 0.0
    %3738 = vmatpush1.msra.mxu0 0.0
    %3739 = vmatprep.subr.mxu0 0.0
    %3740 = vmatpush1.msra.mxu0 0.0
    %3741 = vmatprep.subr.mxu0 0.0
    %3742 = vmatpush1.msra.mxu0 0.0
    %3743 = vmatprep.subr.mxu0 0.0
    %3744 = vmatpush1.msra.mxu0 0.0
    %3745 = vmatprep.subr.mxu0 0.0
    %3746 = vmatpush1.msra.mxu0 0.0
    %3747 = vmatprep.mubr.f32.mxu0 0.0
    %v3748 = vand.u32 %v3267, 4294901760
    %3749 = vmatmul.mubr.f32.gmra.mrb[0].mxu0 %v3748
    %v3750 = vpop.f32.mrb[0].mxu0
    %v3751 = vadd.f32 %v3676, %v3750
    %v3752 = vpop.f32.mrb[0].mxu0
    %3753 = vdwg.mxu0
    %v3754 = vadd.f32 %v3262, %v3751
    %v3755 = vxor.u32 %v3754, 2147483648
    %v3756 = vmul.f32 %v3755, 1.442695
    %v3757 = vpow.pop %v3756
    %v3758 = vadd.f32 %v3757, 1.0
    %v3759 = vrcp.pop %v3758
    %v3760 = vmul.f32 1.0, %v3759
    %v3761 = vtanh.pop %v3754
    %v3762 = vmul.f32 %v3760, %v3250
    %3764 = vrot.lane.b32.xlu0 %v3761, 64
    %v3765 = vpop.permute.xlu0 %3764
    %v3767 = vmul.f32 %v3760, %v3765
    %3769 = vrot.lane.b32.xlu0 %v3767, 32
    %v3770 = vpop.permute.xlu0 %3769
    %v3772 = vadd.f32 %v3762, %v3770
    %v3773 = vtanh.pop %v3772
    %3775 = vrot.lane.b32.xlu0 %v3773, 64
    %v3776 = vpop.permute.xlu0 %3775
    %v3778 = vmul.f32 %v3760, %v3776
    %3780 = vrot.lane.b32.xlu0 %v3778, 32
    %v3781 = vpop.permute.xlu0 %3780
    %3783 = vst.msk [vmem:[#allocation4 + $0xa] sm:$0x3] %vm1172, %v3781
    %3784 = vst.msk [vmem:[#allocation8] sm:$0x3] %vm1172, %v3781
    %3786 = vrot.lane.b32.xlu0 %v3772, 96
    %v3787 = vpop.permute.xlu0 %3786
    %s3789 = scalar_lea.vmem [#allocation8], 2
    %3790 = vst.msk [vmem:[%s3789] sm:$0x3] %vm1172, %v3787
    %v3791 = vld [vmem:[#allocation4] sm:$0xff]
    %v3792 = vld [vmem:[#allocation4 + $0x8] sm:$0xf]
    %v3793 = vld [vmem:[%s3] sm:$0xff]
    %v3794 = vld [vmem:[%s3 + $0x8] sm:$0xff]
    %v3795 = vld [vmem:[%s3 + $0x10] sm:$0xff]
    %v3796 = vld [vmem:[%s3 + $0x18] sm:$0xff]
    %v3797 = vld [vmem:[%s3 + $0x20] sm:$0xff]
    %v3798 = vld [vmem:[%s3 + $0x28] sm:$0xff]
    %v3799 = vld [vmem:[%s3 + $0x30] sm:$0xff]
    %v3800 = vld [vmem:[%s3 + $0x38] sm:$0xff]
    %v3801 = vld [vmem:[%s3 + $0x40] sm:$0xff]
    %v3802 = vld [vmem:[%s3 + $0x48] sm:$0xff]
    %v3803 = vld [vmem:[%s3 + $0x50] sm:$0xff]
    %v3804 = vld [vmem:[%s3 + $0x58] sm:$0xff]
    %v3805 = vld [vmem:[%s3 + $0x60] sm:$0xff]
    %v3806 = vld [vmem:[%s3 + $0x68] sm:$0xff]
    %v3807 = vld [vmem:[%s3 + $0x70] sm:$0xff]
    %v3808 = vld [vmem:[%s3 + $0x78] sm:$0xff]
    %v3809 = vld [vmem:[%s7] sm:$0x1]
    %v3811 = vlaneseq
    %v3812 = vshrl.u32 %v3811, 7
    %v3813 = vsub.s32 0, %v3812
    %v3814 = vrot.slane %v3809, %v3813
    %v3817 = vsel %vm107, %v3791, 0
    %v3820 = vsel %vm107, %v3792, 0
    %v3823 = vsel %vm107, %v3793, 0
    %v3826 = vsel %vm107, %v3794, 0
    %v3829 = vsel %vm107, %v3795, 0
    %v3832 = vsel %vm107, %v3796, 0
    %v3835 = vsel %vm107, %v3797, 0
    %v3838 = vsel %vm107, %v3798, 0
    %v3841 = vsel %vm107, %v3799, 0
    %v3844 = vsel %vm107, %v3800, 0
    %v3847 = vsel %vm107, %v3801, 0
    %v3850 = vsel %vm107, %v3802, 0
    %v3853 = vsel %vm107, %v3803, 0
    %v3856 = vsel %vm107, %v3804, 0
    %v3859 = vsel %vm107, %v3805, 0
    %v3862 = vsel %vm107, %v3806, 0
    %v3865 = vsel %vm107, %v3807, 0
    %v3868 = vsel %vm107, %v3808, 0
    %3870 = vmatprep.subr.mxu0 0.0
    %v3871 = vand.u32 %v3823, 4294901760
    %3872 = vmatpush1.xpose.msra.mxu0 %v3871
    %3873 = vmatprep.subr.mxu0 0.0
    %v3874 = vand.u32 %v3826, 4294901760
    %3875 = vmatpush1.xpose.msra.mxu0 %v3874
    %3876 = vmatprep.subr.mxu0 0.0
    %v3877 = vand.u32 %v3829, 4294901760
    %3878 = vmatpush1.xpose.msra.mxu0 %v3877
    %3879 = vmatprep.subr.mxu0 0.0
    %v3880 = vand.u32 %v3832, 4294901760
    %3881 = vmatpush1.xpose.msra.mxu0 %v3880
    %3882 = vmatprep.subr.mxu0 0.0
    %v3883 = vand.u32 %v3835, 4294901760
    %3884 = vmatpush1.xpose.msra.mxu0 %v3883
    %3885 = vmatprep.subr.mxu0 0.0
    %v3886 = vand.u32 %v3838, 4294901760
    %3887 = vmatpush1.xpose.msra.mxu0 %v3886
    %3888 = vmatprep.subr.mxu0 0.0
    %v3889 = vand.u32 %v3841, 4294901760
    %3890 = vmatpush1.xpose.msra.mxu0 %v3889
    %3891 = vmatprep.subr.mxu0 0.0
    %v3892 = vand.u32 %v3844, 4294901760
    %3893 = vmatpush1.xpose.msra.mxu0 %v3892
    %3894 = vmatprep.subr.mxu0 0.0
    %v3895 = vand.u32 %v3847, 4294901760
    %3896 = vmatpush1.xpose.msra.mxu0 %v3895
    %3897 = vmatprep.subr.mxu0 0.0
    %v3898 = vand.u32 %v3850, 4294901760
    %3899 = vmatpush1.xpose.msra.mxu0 %v3898
    %3900 = vmatprep.subr.mxu0 0.0
    %v3901 = vand.u32 %v3853, 4294901760
    %3902 = vmatpush1.xpose.msra.mxu0 %v3901
    %3903 = vmatprep.subr.mxu0 0.0
    %v3904 = vand.u32 %v3856, 4294901760
    %3905 = vmatpush1.xpose.msra.mxu0 %v3904
    %3906 = vmatprep.subr.mxu0 0.0
    %v3907 = vand.u32 %v3859, 4294901760
    %3908 = vmatpush1.xpose.msra.mxu0 %v3907
    %3909 = vmatprep.subr.mxu0 0.0
    %v3910 = vand.u32 %v3862, 4294901760
    %3911 = vmatpush1.xpose.msra.mxu0 %v3910
    %3912 = vmatprep.subr.mxu0 0.0
    %v3913 = vand.u32 %v3865, 4294901760
    %3914 = vmatpush1.xpose.msra.mxu0 %v3913
    %3915 = vmatprep.subr.mxu0 0.0
    %v3916 = vand.u32 %v3868, 4294901760
    %3917 = vmatpush1.xpose.msra.mxu0 %v3916
    %3918 = vmatprep.subr.mxu0 0.0
    %3919 = vmatpush1.xpose.msra.mxu0 0.0
    %3920 = vmatprep.subr.mxu0 0.0
    %3921 = vmatpush1.xpose.msra.mxu0 0.0
    %3922 = vmatprep.subr.mxu0 0.0
    %3923 = vmatpush1.xpose.msra.mxu0 0.0
    %3924 = vmatprep.subr.mxu0 0.0
    %3925 = vmatpush1.xpose.msra.mxu0 0.0
    %3926 = vmatprep.subr.mxu0 0.0
    %3927 = vmatpush1.xpose.msra.mxu0 0.0
    %3928 = vmatprep.subr.mxu0 0.0
    %3929 = vmatpush1.xpose.msra.mxu0 0.0
    %3930 = vmatprep.subr.mxu0 0.0
    %3931 = vmatpush1.xpose.msra.mxu0 0.0
    %3932 = vmatprep.subr.mxu0 0.0
    %3933 = vmatpush1.xpose.msra.mxu0 0.0
    %3934 = vmatprep.subr.mxu0 0.0
    %3935 = vmatpush1.xpose.msra.mxu0 0.0
    %3936 = vmatprep.subr.mxu0 0.0
    %3937 = vmatpush1.xpose.msra.mxu0 0.0
    %3938 = vmatprep.subr.mxu0 0.0
    %3939 = vmatpush1.xpose.msra.mxu0 0.0
    %3940 = vmatprep.subr.mxu0 0.0
    %3941 = vmatpush1.xpose.msra.mxu0 0.0
    %3942 = vmatprep.subr.mxu0 0.0
    %3943 = vmatpush1.xpose.msra.mxu0 0.0
    %3944 = vmatprep.subr.mxu0 0.0
    %3945 = vmatpush1.xpose.msra.mxu0 0.0
    %3946 = vmatprep.subr.mxu0 0.0
    %3947 = vmatpush1.xpose.msra.mxu0 0.0
    %3948 = vmatprep.subr.mxu0 0.0
    %3949 = vmatpush1.xpose.msra.mxu0 0.0
    %3950 = vmatprep.mubr.f32.mxu0 0.0
    %v3951 = vand.u32 %v3817, 4294901760
    %v3952 = vsub.f32 %v3817, %v3951
    %v3953 = vand.u32 %v3952, 4294901760
    %v3954 = vsub.f32 %v3952, %v3953
    %v3955 = vand.u32 %v3954, 4294901760
    %3956 = vmatmul.mubr.f32.gmra.mrb[0].mxu0 %v3955
    %v3957 = vpop.f32.mrb[0].mxu0
    %v3958 = vadd.f32 %v3814, %v3957
    %v3959 = vpop.f32.mrb[0].mxu0
    %3960 = vmatprep.mubr.f32.mxu0 0.0
    %v3961 = vand.u32 %v3820, 4294901760
    %v3962 = vsub.f32 %v3820, %v3961
    %v3963 = vand.u32 %v3962, 4294901760
    %v3964 = vsub.f32 %v3962, %v3963
    %v3965 = vand.u32 %v3964, 4294901760
    %3966 = vmatmul.mubr.f32.gmra.mrb[0].mxu0 %v3965
    %v3967 = vpop.f32.mrb[0].mxu0
    %v3968 = vadd.f32 %v3814, %v3967
    %v3969 = vpop.f32.mrb[0].mxu0
    %3970 = vdwg.mxu0
    %3971 = vmatprep.subr.mxu0 0.0
    %v3972 = vand.u32 %v3823, 4294901760
    %v3973 = vsub.f32 %v3823, %v3972
    %v3974 = vand.u32 %v3973, 4294901760
    %v3975 = vsub.f32 %v3973, %v3974
    %v3976 = vand.u32 %v3975, 4294901760
    %3977 = vmatpush1.xpose.msra.mxu0 %v3976
    %3978 = vmatprep.subr.mxu0 0.0
    %v3979 = vand.u32 %v3826, 4294901760
    %v3980 = vsub.f32 %v3826, %v3979
    %v3981 = vand.u32 %v3980, 4294901760
    %v3982 = vsub.f32 %v3980, %v3981
    %v3983 = vand.u32 %v3982, 4294901760
    %3984 = vmatpush1.xpose.msra.mxu0 %v3983
    %3985 = vmatprep.subr.mxu0 0.0
    %v3986 = vand.u32 %v3829, 4294901760
    %v3987 = vsub.f32 %v3829, %v3986
    %v3988 = vand.u32 %v3987, 4294901760
    %v3989 = vsub.f32 %v3987, %v3988
    %v3990 = vand.u32 %v3989, 4294901760
    %3991 = vmatpush1.xpose.msra.mxu0 %v3990
    %3992 = vmatprep.subr.mxu0 0.0
    %v3993 = vand.u32 %v3832, 4294901760
    %v3994 = vsub.f32 %v3832, %v3993
    %v3995 = vand.u32 %v3994, 4294901760
    %v3996 = vsub.f32 %v3994, %v3995
    %v3997 = vand.u32 %v3996, 4294901760
    %3998 = vmatpush1.xpose.msra.mxu0 %v3997
    %3999 = vmatprep.subr.mxu0 0.0
    %v4000 = vand.u32 %v3835, 4294901760
    %v4001 = vsub.f32 %v3835, %v4000
    %v4002 = vand.u32 %v4001, 4294901760
    %v4003 = vsub.f32 %v4001, %v4002
    %v4004 = vand.u32 %v4003, 4294901760
    %4005 = vmatpush1.xpose.msra.mxu0 %v4004
    %4006 = vmatprep.subr.mxu0 0.0
    %v4007 = vand.u32 %v3838, 4294901760
    %v4008 = vsub.f32 %v3838, %v4007
    %v4009 = vand.u32 %v4008, 4294901760
    %v4010 = vsub.f32 %v4008, %v4009
    %v4011 = vand.u32 %v4010, 4294901760
    %4012 = vmatpush1.xpose.msra.mxu0 %v4011
    %4013 = vmatprep.subr.mxu0 0.0
    %v4014 = vand.u32 %v3841, 4294901760
    %v4015 = vsub.f32 %v3841, %v4014
    %v4016 = vand.u32 %v4015, 4294901760
    %v4017 = vsub.f32 %v4015, %v4016
    %v4018 = vand.u32 %v4017, 4294901760
    %4019 = vmatpush1.xpose.msra.mxu0 %v4018
    %4020 = vmatprep.subr.mxu0 0.0
    %v4021 = vand.u32 %v3844, 4294901760
    %v4022 = vsub.f32 %v3844, %v4021
    %v4023 = vand.u32 %v4022, 4294901760
    %v4024 = vsub.f32 %v4022, %v4023
    %v4025 = vand.u32 %v4024, 4294901760
    %4026 = vmatpush1.xpose.msra.mxu0 %v4025
    %4027 = vmatprep.subr.mxu0 0.0
    %v4028 = vand.u32 %v3847, 4294901760
    %v4029 = vsub.f32 %v3847, %v4028
    %v4030 = vand.u32 %v4029, 4294901760
    %v4031 = vsub.f32 %v4029, %v4030
    %v4032 = vand.u32 %v4031, 4294901760
    %4033 = vmatpush1.xpose.msra.mxu0 %v4032
    %4034 = vmatprep.subr.mxu0 0.0
    %v4035 = vand.u32 %v3850, 4294901760
    %v4036 = vsub.f32 %v3850, %v4035
    %v4037 = vand.u32 %v4036, 4294901760
    %v4038 = vsub.f32 %v4036, %v4037
    %v4039 = vand.u32 %v4038, 4294901760
    %4040 = vmatpush1.xpose.msra.mxu0 %v4039
    %4041 = vmatprep.subr.mxu0 0.0
    %v4042 = vand.u32 %v3853, 4294901760
    %v4043 = vsub.f32 %v3853, %v4042
    %v4044 = vand.u32 %v4043, 4294901760
    %v4045 = vsub.f32 %v4043, %v4044
    %v4046 = vand.u32 %v4045, 4294901760
    %4047 = vmatpush1.xpose.msra.mxu0 %v4046
    %4048 = vmatprep.subr.mxu0 0.0
    %v4049 = vand.u32 %v3856, 4294901760
    %v4050 = vsub.f32 %v3856, %v4049
    %v4051 = vand.u32 %v4050, 4294901760
    %v4052 = vsub.f32 %v4050, %v4051
    %v4053 = vand.u32 %v4052, 4294901760
    %4054 = vmatpush1.xpose.msra.mxu0 %v4053
    %4055 = vmatprep.subr.mxu0 0.0
    %v4056 = vand.u32 %v3859, 4294901760
    %v4057 = vsub.f32 %v3859, %v4056
    %v4058 = vand.u32 %v4057, 4294901760
    %v4059 = vsub.f32 %v4057, %v4058
    %v4060 = vand.u32 %v4059, 4294901760
    %4061 = vmatpush1.xpose.msra.mxu0 %v4060
    %4062 = vmatprep.subr.mxu0 0.0
    %v4063 = vand.u32 %v3862, 4294901760
    %v4064 = vsub.f32 %v3862, %v4063
    %v4065 = vand.u32 %v4064, 4294901760
    %v4066 = vsub.f32 %v4064, %v4065
    %v4067 = vand.u32 %v4066, 4294901760
    %4068 = vmatpush1.xpose.msra.mxu0 %v4067
    %4069 = vmatprep.subr.mxu0 0.0
    %v4070 = vand.u32 %v3865, 4294901760
    %v4071 = vsub.f32 %v3865, %v4070
    %v4072 = vand.u32 %v4071, 4294901760
    %v4073 = vsub.f32 %v4071, %v4072
    %v4074 = vand.u32 %v4073, 4294901760
    %4075 = vmatpush1.xpose.msra.mxu0 %v4074
    %4076 = vmatprep.subr.mxu0 0.0
    %v4077 = vand.u32 %v3868, 4294901760
    %v4078 = vsub.f32 %v3868, %v4077
    %v4079 = vand.u32 %v4078, 4294901760
    %v4080 = vsub.f32 %v4078, %v4079
    %v4081 = vand.u32 %v4080, 4294901760
    %4082 = vmatpush1.xpose.msra.mxu0 %v4081
    %4083 = vmatprep.subr.mxu0 0.0
    %4084 = vmatpush1.xpose.msra.mxu0 0.0
    %4085 = vmatprep.subr.mxu0 0.0
    %4086 = vmatpush1.xpose.msra.mxu0 0.0
    %4087 = vmatprep.subr.mxu0 0.0
    %4088 = vmatpush1.xpose.msra.mxu0 0.0
    %4089 = vmatprep.subr.mxu0 0.0
    %4090 = vmatpush1.xpose.msra.mxu0 0.0
    %4091 = vmatprep.subr.mxu0 0.0
    %4092 = vmatpush1.xpose.msra.mxu0 0.0
    %4093 = vmatprep.subr.mxu0 0.0
    %4094 = vmatpush1.xpose.msra.mxu0 0.0
    %4095 = vmatprep.subr.mxu0 0.0
    %4096 = vmatpush1.xpose.msra.mxu0 0.0
    %4097 = vmatprep.subr.mxu0 0.0
    %4098 = vmatpush1.xpose.msra.mxu0 0.0
    %4099 = vmatprep.subr.mxu0 0.0
    %4100 = vmatpush1.xpose.msra.mxu0 0.0
    %4101 = vmatprep.subr.mxu0 0.0
    %4102 = vmatpush1.xpose.msra.mxu0 0.0
    %4103 = vmatprep.subr.mxu0 0.0
    %4104 = vmatpush1.xpose.msra.mxu0 0.0
    %4105 = vmatprep.subr.mxu0 0.0
    %4106 = vmatpush1.xpose.msra.mxu0 0.0
    %4107 = vmatprep.subr.mxu0 0.0
    %4108 = vmatpush1.xpose.msra.mxu0 0.0
    %4109 = vmatprep.subr.mxu0 0.0
    %4110 = vmatpush1.xpose.msra.mxu0 0.0
    %4111 = vmatprep.subr.mxu0 0.0
    %4112 = vmatpush1.xpose.msra.mxu0 0.0
    %4113 = vmatprep.subr.mxu0 0.0
    %4114 = vmatpush1.xpose.msra.mxu0 0.0
    %4115 = vmatprep.mubr.f32.mxu0 0.0
    %v4116 = vand.u32 %v3817, 4294901760
    %4117 = vmatmul.mubr.f32.gmra.mrb[0].mxu0 %v4116
    %v4118 = vpop.f32.mrb[0].mxu0
    %v4119 = vadd.f32 %v3958, %v4118
    %v4120 = vpop.f32.mrb[0].mxu0
    %4121 = vmatprep.mubr.f32.mxu0 0.0
    %v4122 = vand.u32 %v3820, 4294901760
    %4123 = vmatmul.mubr.f32.gmra.mrb[0].mxu0 %v4122
    %v4124 = vpop.f32.mrb[0].mxu0
    %v4125 = vadd.f32 %v3968, %v4124
    %v4126 = vpop.f32.mrb[0].mxu0
    %4127 = vdwg.mxu0
    %4128 = vmatprep.subr.mxu0 0.0
    %v4129 = vand.u32 %v3823, 4294901760
    %v4130 = vsub.f32 %v3823, %v4129
    %4131 = vmatpush1.xpose.msra.mxu0 %v4130
    %4132 = vmatprep.subr.mxu0 0.0
    %v4133 = vand.u32 %v3826, 4294901760
    %v4134 = vsub.f32 %v3826, %v4133
    %4135 = vmatpush1.xpose.msra.mxu0 %v4134
    %4136 = vmatprep.subr.mxu0 0.0
    %v4137 = vand.u32 %v3829, 4294901760
    %v4138 = vsub.f32 %v3829, %v4137
    %4139 = vmatpush1.xpose.msra.mxu0 %v4138
    %4140 = vmatprep.subr.mxu0 0.0
    %v4141 = vand.u32 %v3832, 4294901760
    %v4142 = vsub.f32 %v3832, %v4141
    %4143 = vmatpush1.xpose.msra.mxu0 %v4142
    %4144 = vmatprep.subr.mxu0 0.0
    %v4145 = vand.u32 %v3835, 4294901760
    %v4146 = vsub.f32 %v3835, %v4145
    %4147 = vmatpush1.xpose.msra.mxu0 %v4146
    %4148 = vmatprep.subr.mxu0 0.0
    %v4149 = vand.u32 %v3838, 4294901760
    %v4150 = vsub.f32 %v3838, %v4149
    %4151 = vmatpush1.xpose.msra.mxu0 %v4150
    %4152 = vmatprep.subr.mxu0 0.0
    %v4153 = vand.u32 %v3841, 4294901760
    %v4154 = vsub.f32 %v3841, %v4153
    %4155 = vmatpush1.xpose.msra.mxu0 %v4154
    %4156 = vmatprep.subr.mxu0 0.0
    %v4157 = vand.u32 %v3844, 4294901760
    %v4158 = vsub.f32 %v3844, %v4157
    %4159 = vmatpush1.xpose.msra.mxu0 %v4158
    %4160 = vmatprep.subr.mxu0 0.0
    %v4161 = vand.u32 %v3847, 4294901760
    %v4162 = vsub.f32 %v3847, %v4161
    %4163 = vmatpush1.xpose.msra.mxu0 %v4162
    %4164 = vmatprep.subr.mxu0 0.0
    %v4165 = vand.u32 %v3850, 4294901760
    %v4166 = vsub.f32 %v3850, %v4165
    %4167 = vmatpush1.xpose.msra.mxu0 %v4166
    %4168 = vmatprep.subr.mxu0 0.0
    %v4169 = vand.u32 %v3853, 4294901760
    %v4170 = vsub.f32 %v3853, %v4169
    %4171 = vmatpush1.xpose.msra.mxu0 %v4170
    %4172 = vmatprep.subr.mxu0 0.0
    %v4173 = vand.u32 %v3856, 4294901760
    %v4174 = vsub.f32 %v3856, %v4173
    %4175 = vmatpush1.xpose.msra.mxu0 %v4174
    %4176 = vmatprep.subr.mxu0 0.0
    %v4177 = vand.u32 %v3859, 4294901760
    %v4178 = vsub.f32 %v3859, %v4177
    %4179 = vmatpush1.xpose.msra.mxu0 %v4178
    %4180 = vmatprep.subr.mxu0 0.0
    %v4181 = vand.u32 %v3862, 4294901760
    %v4182 = vsub.f32 %v3862, %v4181
    %4183 = vmatpush1.xpose.msra.mxu0 %v4182
    %4184 = vmatprep.subr.mxu0 0.0
    %v4185 = vand.u32 %v3865, 4294901760
    %v4186 = vsub.f32 %v3865, %v4185
    %4187 = vmatpush1.xpose.msra.mxu0 %v4186
    %4188 = vmatprep.subr.mxu0 0.0
    %v4189 = vand.u32 %v3868, 4294901760
    %v4190 = vsub.f32 %v3868, %v4189
    %4191 = vmatpush1.xpose.msra.mxu0 %v4190
    %4192 = vmatprep.subr.mxu0 0.0
    %4193 = vmatpush1.xpose.msra.mxu0 0.0
    %4194 = vmatprep.subr.mxu0 0.0
    %4195 = vmatpush1.xpose.msra.mxu0 0.0
    %4196 = vmatprep.subr.mxu0 0.0
    %4197 = vmatpush1.xpose.msra.mxu0 0.0
    %4198 = vmatprep.subr.mxu0 0.0
    %4199 = vmatpush1.xpose.msra.mxu0 0.0
    %4200 = vmatprep.subr.mxu0 0.0
    %4201 = vmatpush1.xpose.msra.mxu0 0.0
    %4202 = vmatprep.subr.mxu0 0.0
    %4203 = vmatpush1.xpose.msra.mxu0 0.0
    %4204 = vmatprep.subr.mxu0 0.0
    %4205 = vmatpush1.xpose.msra.mxu0 0.0
    %4206 = vmatprep.subr.mxu0 0.0
    %4207 = vmatpush1.xpose.msra.mxu0 0.0
    %4208 = vmatprep.subr.mxu0 0.0
    %4209 = vmatpush1.xpose.msra.mxu0 0.0
    %4210 = vmatprep.subr.mxu0 0.0
    %4211 = vmatpush1.xpose.msra.mxu0 0.0
    %4212 = vmatprep.subr.mxu0 0.0
    %4213 = vmatpush1.xpose.msra.mxu0 0.0
    %4214 = vmatprep.subr.mxu0 0.0
    %4215 = vmatpush1.xpose.msra.mxu0 0.0
    %4216 = vmatprep.subr.mxu0 0.0
    %4217 = vmatpush1.xpose.msra.mxu0 0.0
    %4218 = vmatprep.subr.mxu0 0.0
    %4219 = vmatpush1.xpose.msra.mxu0 0.0
    %4220 = vmatprep.subr.mxu0 0.0
    %4221 = vmatpush1.xpose.msra.mxu0 0.0
    %4222 = vmatprep.subr.mxu0 0.0
    %4223 = vmatpush1.xpose.msra.mxu0 0.0
    %4224 = vmatprep.mubr.f32.mxu0 0.0
    %v4225 = vand.u32 %v3817, 4294901760
    %v4226 = vsub.f32 %v3817, %v4225
    %4227 = vmatmul.mubr.f32.gmra.mrb[0].mxu0 %v4226
    %v4228 = vpop.f32.mrb[0].mxu0
    %v4229 = vadd.f32 %v4119, %v4228
    %v4230 = vpop.f32.mrb[0].mxu0
    %4231 = vmatprep.mubr.f32.mxu0 0.0
    %v4232 = vand.u32 %v3820, 4294901760
    %v4233 = vsub.f32 %v3820, %v4232
    %4234 = vmatmul.mubr.f32.gmra.mrb[0].mxu0 %v4233
    %v4235 = vpop.f32.mrb[0].mxu0
    %v4236 = vadd.f32 %v4125, %v4235
    %v4237 = vpop.f32.mrb[0].mxu0
    %4238 = vdwg.mxu0
    %4239 = vmatprep.subr.mxu0 0.0
    %v4240 = vand.u32 %v3823, 4294901760
    %4241 = vmatpush1.xpose.msra.mxu0 %v4240
    %4242 = vmatprep.subr.mxu0 0.0
    %v4243 = vand.u32 %v3826, 4294901760
    %4244 = vmatpush1.xpose.msra.mxu0 %v4243
    %4245 = vmatprep.subr.mxu0 0.0
    %v4246 = vand.u32 %v3829, 4294901760
    %4247 = vmatpush1.xpose.msra.mxu0 %v4246
    %4248 = vmatprep.subr.mxu0 0.0
    %v4249 = vand.u32 %v3832, 4294901760
    %4250 = vmatpush1.xpose.msra.mxu0 %v4249
    %4251 = vmatprep.subr.mxu0 0.0
    %v4252 = vand.u32 %v3835, 4294901760
    %4253 = vmatpush1.xpose.msra.mxu0 %v4252
    %4254 = vmatprep.subr.mxu0 0.0
    %v4255 = vand.u32 %v3838, 4294901760
    %4256 = vmatpush1.xpose.msra.mxu0 %v4255
    %4257 = vmatprep.subr.mxu0 0.0
    %v4258 = vand.u32 %v3841, 4294901760
    %4259 = vmatpush1.xpose.msra.mxu0 %v4258
    %4260 = vmatprep.subr.mxu0 0.0
    %v4261 = vand.u32 %v3844, 4294901760
    %4262 = vmatpush1.xpose.msra.mxu0 %v4261
    %4263 = vmatprep.subr.mxu0 0.0
    %v4264 = vand.u32 %v3847, 4294901760
    %4265 = vmatpush1.xpose.msra.mxu0 %v4264
    %4266 = vmatprep.subr.mxu0 0.0
    %v4267 = vand.u32 %v3850, 4294901760
    %4268 = vmatpush1.xpose.msra.mxu0 %v4267
    %4269 = vmatprep.subr.mxu0 0.0
    %v4270 = vand.u32 %v3853, 4294901760
    %4271 = vmatpush1.xpose.msra.mxu0 %v4270
    %4272 = vmatprep.subr.mxu0 0.0
    %v4273 = vand.u32 %v3856, 4294901760
    %4274 = vmatpush1.xpose.msra.mxu0 %v4273
    %4275 = vmatprep.subr.mxu0 0.0
    %v4276 = vand.u32 %v3859, 4294901760
    %4277 = vmatpush1.xpose.msra.mxu0 %v4276
    %4278 = vmatprep.subr.mxu0 0.0
    %v4279 = vand.u32 %v3862, 4294901760
    %4280 = vmatpush1.xpose.msra.mxu0 %v4279
    %4281 = vmatprep.subr.mxu0 0.0
    %v4282 = vand.u32 %v3865, 4294901760
    %4283 = vmatpush1.xpose.msra.mxu0 %v4282
    %4284 = vmatprep.subr.mxu0 0.0
    %v4285 = vand.u32 %v3868, 4294901760
    %4286 = vmatpush1.xpose.msra.mxu0 %v4285
    %4287 = vmatprep.subr.mxu0 0.0
    %4288 = vmatpush1.xpose.msra.mxu0 0.0
    %4289 = vmatprep.subr.mxu0 0.0
    %4290 = vmatpush1.xpose.msra.mxu0 0.0
    %4291 = vmatprep.subr.mxu0 0.0
    %4292 = vmatpush1.xpose.msra.mxu0 0.0
    %4293 = vmatprep.subr.mxu0 0.0
    %4294 = vmatpush1.xpose.msra.mxu0 0.0
    %4295 = vmatprep.subr.mxu0 0.0
    %4296 = vmatpush1.xpose.msra.mxu0 0.0
    %4297 = vmatprep.subr.mxu0 0.0
    %4298 = vmatpush1.xpose.msra.mxu0 0.0
    %4299 = vmatprep.subr.mxu0 0.0
    %4300 = vmatpush1.xpose.msra.mxu0 0.0
    %4301 = vmatprep.subr.mxu0 0.0
    %4302 = vmatpush1.xpose.msra.mxu0 0.0
    %4303 = vmatprep.subr.mxu0 0.0
    %4304 = vmatpush1.xpose.msra.mxu0 0.0
    %4305 = vmatprep.subr.mxu0 0.0
    %4306 = vmatpush1.xpose.msra.mxu0 0.0
    %4307 = vmatprep.subr.mxu0 0.0
    %4308 = vmatpush1.xpose.msra.mxu0 0.0
    %4309 = vmatprep.subr.mxu0 0.0
    %4310 = vmatpush1.xpose.msra.mxu0 0.0
    %4311 = vmatprep.subr.mxu0 0.0
    %4312 = vmatpush1.xpose.msra.mxu0 0.0
    %4313 = vmatprep.subr.mxu0 0.0
    %4314 = vmatpush1.xpose.msra.mxu0 0.0
    %4315 = vmatprep.subr.mxu0 0.0
    %4316 = vmatpush1.xpose.msra.mxu0 0.0
    %4317 = vmatprep.subr.mxu0 0.0
    %4318 = vmatpush1.xpose.msra.mxu0 0.0
    %4319 = vmatprep.mubr.f32.mxu0 0.0
    %v4320 = vand.u32 %v3817, 4294901760
    %v4321 = vsub.f32 %v3817, %v4320
    %v4322 = vand.u32 %v4321, 4294901760
    %4323 = vmatmul.mubr.f32.gmra.mrb[0].mxu0 %v4322
    %v4324 = vpop.f32.mrb[0].mxu0
    %v4325 = vadd.f32 %v4229, %v4324
    %v4326 = vpop.f32.mrb[0].mxu0
    %4327 = vmatprep.mubr.f32.mxu0 0.0
    %v4328 = vand.u32 %v3820, 4294901760
    %v4329 = vsub.f32 %v3820, %v4328
    %v4330 = vand.u32 %v4329, 4294901760
    %4331 = vmatmul.mubr.f32.gmra.mrb[0].mxu0 %v4330
    %v4332 = vpop.f32.mrb[0].mxu0
    %v4333 = vadd.f32 %v4236, %v4332
    %v4334 = vpop.f32.mrb[0].mxu0
    %4335 = vdwg.mxu0
    %4336 = vmatprep.subr.mxu0 0.0
    %v4337 = vand.u32 %v3823, 4294901760
    %v4338 = vsub.f32 %v3823, %v4337
    %v4339 = vand.u32 %v4338, 4294901760
    %4340 = vmatpush1.xpose.msra.mxu0 %v4339
    %4341 = vmatprep.subr.mxu0 0.0
    %v4342 = vand.u32 %v3826, 4294901760
    %v4343 = vsub.f32 %v3826, %v4342
    %v4344 = vand.u32 %v4343, 4294901760
    %4345 = vmatpush1.xpose.msra.mxu0 %v4344
    %4346 = vmatprep.subr.mxu0 0.0
    %v4347 = vand.u32 %v3829, 4294901760
    %v4348 = vsub.f32 %v3829, %v4347
    %v4349 = vand.u32 %v4348, 4294901760
    %4350 = vmatpush1.xpose.msra.mxu0 %v4349
    %4351 = vmatprep.subr.mxu0 0.0
    %v4352 = vand.u32 %v3832, 4294901760
    %v4353 = vsub.f32 %v3832, %v4352
    %v4354 = vand.u32 %v4353, 4294901760
    %4355 = vmatpush1.xpose.msra.mxu0 %v4354
    %4356 = vmatprep.subr.mxu0 0.0
    %v4357 = vand.u32 %v3835, 4294901760
    %v4358 = vsub.f32 %v3835, %v4357
    %v4359 = vand.u32 %v4358, 4294901760
    %4360 = vmatpush1.xpose.msra.mxu0 %v4359
    %4361 = vmatprep.subr.mxu0 0.0
    %v4362 = vand.u32 %v3838, 4294901760
    %v4363 = vsub.f32 %v3838, %v4362
    %v4364 = vand.u32 %v4363, 4294901760
    %4365 = vmatpush1.xpose.msra.mxu0 %v4364
    %4366 = vmatprep.subr.mxu0 0.0
    %v4367 = vand.u32 %v3841, 4294901760
    %v4368 = vsub.f32 %v3841, %v4367
    %v4369 = vand.u32 %v4368, 4294901760
    %4370 = vmatpush1.xpose.msra.mxu0 %v4369
    %4371 = vmatprep.subr.mxu0 0.0
    %v4372 = vand.u32 %v3844, 4294901760
    %v4373 = vsub.f32 %v3844, %v4372
    %v4374 = vand.u32 %v4373, 4294901760
    %4375 = vmatpush1.xpose.msra.mxu0 %v4374
    %4376 = vmatprep.subr.mxu0 0.0
    %v4377 = vand.u32 %v3847, 4294901760
    %v4378 = vsub.f32 %v3847, %v4377
    %v4379 = vand.u32 %v4378, 4294901760
    %4380 = vmatpush1.xpose.msra.mxu0 %v4379
    %4381 = vmatprep.subr.mxu0 0.0
    %v4382 = vand.u32 %v3850, 4294901760
    %v4383 = vsub.f32 %v3850, %v4382
    %v4384 = vand.u32 %v4383, 4294901760
    %4385 = vmatpush1.xpose.msra.mxu0 %v4384
    %4386 = vmatprep.subr.mxu0 0.0
    %v4387 = vand.u32 %v3853, 4294901760
    %v4388 = vsub.f32 %v3853, %v4387
    %v4389 = vand.u32 %v4388, 4294901760
    %4390 = vmatpush1.xpose.msra.mxu0 %v4389
    %4391 = vmatprep.subr.mxu0 0.0
    %v4392 = vand.u32 %v3856, 4294901760
    %v4393 = vsub.f32 %v3856, %v4392
    %v4394 = vand.u32 %v4393, 4294901760
    %4395 = vmatpush1.xpose.msra.mxu0 %v4394
    %4396 = vmatprep.subr.mxu0 0.0
    %v4397 = vand.u32 %v3859, 4294901760
    %v4398 = vsub.f32 %v3859, %v4397
    %v4399 = vand.u32 %v4398, 4294901760
    %4400 = vmatpush1.xpose.msra.mxu0 %v4399
    %4401 = vmatprep.subr.mxu0 0.0
    %v4402 = vand.u32 %v3862, 4294901760
    %v4403 = vsub.f32 %v3862, %v4402
    %v4404 = vand.u32 %v4403, 4294901760
    %4405 = vmatpush1.xpose.msra.mxu0 %v4404
    %4406 = vmatprep.subr.mxu0 0.0
    %v4407 = vand.u32 %v3865, 4294901760
    %v4408 = vsub.f32 %v3865, %v4407
    %v4409 = vand.u32 %v4408, 4294901760
    %4410 = vmatpush1.xpose.msra.mxu0 %v4409
    %4411 = vmatprep.subr.mxu0 0.0
    %v4412 = vand.u32 %v3868, 4294901760
    %v4413 = vsub.f32 %v3868, %v4412
    %v4414 = vand.u32 %v4413, 4294901760
    %4415 = vmatpush1.xpose.msra.mxu0 %v4414
    %4416 = vmatprep.subr.mxu0 0.0
    %4417 = vmatpush1.xpose.msra.mxu0 0.0
    %4418 = vmatprep.subr.mxu0 0.0
    %4419 = vmatpush1.xpose.msra.mxu0 0.0
    %4420 = vmatprep.subr.mxu0 0.0
    %4421 = vmatpush1.xpose.msra.mxu0 0.0
    %4422 = vmatprep.subr.mxu0 0.0
    %4423 = vmatpush1.xpose.msra.mxu0 0.0
    %4424 = vmatprep.subr.mxu0 0.0
    %4425 = vmatpush1.xpose.msra.mxu0 0.0
    %4426 = vmatprep.subr.mxu0 0.0
    %4427 = vmatpush1.xpose.msra.mxu0 0.0
    %4428 = vmatprep.subr.mxu0 0.0
    %4429 = vmatpush1.xpose.msra.mxu0 0.0
    %4430 = vmatprep.subr.mxu0 0.0
    %4431 = vmatpush1.xpose.msra.mxu0 0.0
    %4432 = vmatprep.subr.mxu0 0.0
    %4433 = vmatpush1.xpose.msra.mxu0 0.0
    %4434 = vmatprep.subr.mxu0 0.0
    %4435 = vmatpush1.xpose.msra.mxu0 0.0
    %4436 = vmatprep.subr.mxu0 0.0
    %4437 = vmatpush1.xpose.msra.mxu0 0.0
    %4438 = vmatprep.subr.mxu0 0.0
    %4439 = vmatpush1.xpose.msra.mxu0 0.0
    %4440 = vmatprep.subr.mxu0 0.0
    %4441 = vmatpush1.xpose.msra.mxu0 0.0
    %4442 = vmatprep.subr.mxu0 0.0
    %4443 = vmatpush1.xpose.msra.mxu0 0.0
    %4444 = vmatprep.subr.mxu0 0.0
    %4445 = vmatpush1.xpose.msra.mxu0 0.0
    %4446 = vmatprep.subr.mxu0 0.0
    %4447 = vmatpush1.xpose.msra.mxu0 0.0
    %4448 = vmatprep.mubr.f32.mxu0 0.0
    %v4449 = vand.u32 %v3817, 4294901760
    %4450 = vmatmul.mubr.f32.gmra.mrb[0].mxu0 %v4449
    %v4451 = vpop.f32.mrb[0].mxu0
    %v4452 = vadd.f32 %v4325, %v4451
    %v4453 = vpop.f32.mrb[0].mxu0
    %4454 = vmatprep.mubr.f32.mxu0 0.0
    %v4455 = vand.u32 %v3820, 4294901760
    %4456 = vmatmul.mubr.f32.gmra.mrb[0].mxu0 %v4455
    %v4457 = vpop.f32.mrb[0].mxu0
    %v4458 = vadd.f32 %v4333, %v4457
    %v4459 = vpop.f32.mrb[0].mxu0
    %4460 = vdwg.mxu0
    %4461 = vmatprep.subr.mxu0 0.0
    %v4462 = vand.u32 %v3823, 4294901760
    %4463 = vmatpush1.xpose.msra.mxu0 %v4462
    %4464 = vmatprep.subr.mxu0 0.0
    %v4465 = vand.u32 %v3826, 4294901760
    %4466 = vmatpush1.xpose.msra.mxu0 %v4465
    %4467 = vmatprep.subr.mxu0 0.0
    %v4468 = vand.u32 %v3829, 4294901760
    %4469 = vmatpush1.xpose.msra.mxu0 %v4468
    %4470 = vmatprep.subr.mxu0 0.0
    %v4471 = vand.u32 %v3832, 4294901760
    %4472 = vmatpush1.xpose.msra.mxu0 %v4471
    %4473 = vmatprep.subr.mxu0 0.0
    %v4474 = vand.u32 %v3835, 4294901760
    %4475 = vmatpush1.xpose.msra.mxu0 %v4474
    %4476 = vmatprep.subr.mxu0 0.0
    %v4477 = vand.u32 %v3838, 4294901760
    %4478 = vmatpush1.xpose.msra.mxu0 %v4477
    %4479 = vmatprep.subr.mxu0 0.0
    %v4480 = vand.u32 %v3841, 4294901760
    %4481 = vmatpush1.xpose.msra.mxu0 %v4480
    %4482 = vmatprep.subr.mxu0 0.0
    %v4483 = vand.u32 %v3844, 4294901760
    %4484 = vmatpush1.xpose.msra.mxu0 %v4483
    %4485 = vmatprep.subr.mxu0 0.0
    %v4486 = vand.u32 %v3847, 4294901760
    %4487 = vmatpush1.xpose.msra.mxu0 %v4486
    %4488 = vmatprep.subr.mxu0 0.0
    %v4489 = vand.u32 %v3850, 4294901760
    %4490 = vmatpush1.xpose.msra.mxu0 %v4489
    %4491 = vmatprep.subr.mxu0 0.0
    %v4492 = vand.u32 %v3853, 4294901760
    %4493 = vmatpush1.xpose.msra.mxu0 %v4492
    %4494 = vmatprep.subr.mxu0 0.0
    %v4495 = vand.u32 %v3856, 4294901760
    %4496 = vmatpush1.xpose.msra.mxu0 %v4495
    %4497 = vmatprep.subr.mxu0 0.0
    %v4498 = vand.u32 %v3859, 4294901760
    %4499 = vmatpush1.xpose.msra.mxu0 %v4498
    %4500 = vmatprep.subr.mxu0 0.0
    %v4501 = vand.u32 %v3862, 4294901760
    %4502 = vmatpush1.xpose.msra.mxu0 %v4501
    %4503 = vmatprep.subr.mxu0 0.0
    %v4504 = vand.u32 %v3865, 4294901760
    %4505 = vmatpush1.xpose.msra.mxu0 %v4504
    %4506 = vmatprep.subr.mxu0 0.0
    %v4507 = vand.u32 %v3868, 4294901760
    %4508 = vmatpush1.xpose.msra.mxu0 %v4507
    %4509 = vmatprep.subr.mxu0 0.0
    %4510 = vmatpush1.xpose.msra.mxu0 0.0
    %4511 = vmatprep.subr.mxu0 0.0
    %4512 = vmatpush1.xpose.msra.mxu0 0.0
    %4513 = vmatprep.subr.mxu0 0.0
    %4514 = vmatpush1.xpose.msra.mxu0 0.0
    %4515 = vmatprep.subr.mxu0 0.0
    %4516 = vmatpush1.xpose.msra.mxu0 0.0
    %4517 = vmatprep.subr.mxu0 0.0
    %4518 = vmatpush1.xpose.msra.mxu0 0.0
    %4519 = vmatprep.subr.mxu0 0.0
    %4520 = vmatpush1.xpose.msra.mxu0 0.0
    %4521 = vmatprep.subr.mxu0 0.0
    %4522 = vmatpush1.xpose.msra.mxu0 0.0
    %4523 = vmatprep.subr.mxu0 0.0
    %4524 = vmatpush1.xpose.msra.mxu0 0.0
    %4525 = vmatprep.subr.mxu0 0.0
    %4526 = vmatpush1.xpose.msra.mxu0 0.0
    %4527 = vmatprep.subr.mxu0 0.0
    %4528 = vmatpush1.xpose.msra.mxu0 0.0
    %4529 = vmatprep.subr.mxu0 0.0
    %4530 = vmatpush1.xpose.msra.mxu0 0.0
    %4531 = vmatprep.subr.mxu0 0.0
    %4532 = vmatpush1.xpose.msra.mxu0 0.0
    %4533 = vmatprep.subr.mxu0 0.0
    %4534 = vmatpush1.xpose.msra.mxu0 0.0
    %4535 = vmatprep.subr.mxu0 0.0
    %4536 = vmatpush1.xpose.msra.mxu0 0.0
    %4537 = vmatprep.subr.mxu0 0.0
    %4538 = vmatpush1.xpose.msra.mxu0 0.0
    %4539 = vmatprep.subr.mxu0 0.0
    %4540 = vmatpush1.xpose.msra.mxu0 0.0
    %4541 = vmatprep.mubr.f32.mxu0 0.0
    %v4542 = vand.u32 %v3817, 4294901760
    %4543 = vmatmul.mubr.f32.gmra.mrb[0].mxu0 %v4542
    %v4544 = vpop.f32.mrb[0].mxu0
    %v4545 = vadd.f32 %v4452, %v4544
    %v4546 = vpop.f32.mrb[0].mxu0
    %4547 = vmatprep.mubr.f32.mxu0 0.0
    %v4548 = vand.u32 %v3820, 4294901760
    %4549 = vmatmul.mubr.f32.gmra.mrb[0].mxu0 %v4548
    %v4550 = vpop.f32.mrb[0].mxu0
    %v4551 = vadd.f32 %v4458, %v4550
    %v4552 = vpop.f32.mrb[0].mxu0
    %4553 = vdwg.mxu0
    %4554 = vst [vmem:[%s8] sm:$0xff] %v4545
    %4555 = vst [vmem:[%s8 + $0x8] sm:$0xf] %v4551
    // Predicated region
    $region38: #{decoder_forward.1} parent=1 // pred_check
      _
    $region39: #{decoder_forward.1} parent=1 // pred_check_branch
      %4557 = sbr.rel (0) target = $region41
    $region40: #{decoder_forward.1} parent=1 // pred_region
      _
    $region41: #{decoder_forward.1} parent=1 // pred_fallthru
      _
    // Predicated region
    $region42: #{decoder_forward.1} parent=1 // pred_check
      _
    $region43: #{decoder_forward.1} parent=1 // pred_check_branch
      %4559 = sbr.rel (0) target = $region45
    $region44: #{decoder_forward.1} parent=1 // pred_region
      %s4561 = ssub.s32 64, 64
      %4562 = vsyncadd [#allocation6], %s4561
      %s4563 = sshll.u32 [#allocation8], 4
      %s4564 = int_to_ptr.vmem [resolvable:$true] %s4563
      %4569 = dma.vmem_to_hbm [thread:$0]  %s4564, 64, %s9, [#allocation6], 32, 32, 2
    $region45: #{decoder_forward.1} parent=1 // pred_fallthru
      _
    // Predicated region
    $region46: #{decoder_forward.1} parent=1 // pred_check
      _
    $region47: #{decoder_forward.1} parent=1 // pred_check_branch
      %4571 = sbr.rel (0) target = $region49
    $region48: #{decoder_forward.1} parent=1 // pred_region
      _
    $region49: #{decoder_forward.1} parent=1 // pred_fallthru
      _
    // Predicated region
    $region50: #{decoder_forward.1} parent=1 // pred_check
      _
    $region51: #{decoder_forward.1} parent=1 // pred_check_branch
      %4573 = sbr.rel (0) target = $region53
    $region52: #{decoder_forward.1} parent=1 // pred_region
      %4574 = dma.done [#allocation6], 64
    $region53: #{decoder_forward.1} parent=1 // pred_fallthru
      _
    %4575 = vsyncpa [#allocation6], 1
    %4576 = vsyncpa [#allocation7], 1

</llo_original>
